<compile_context>
chip_gen: v7x
topology: tpu7x:2x2x1
jax: 0.10.0
libtpu: 0.0.40
codegen_flags: <defaults>
</compile_context>

<pallas_src>
import functools
import math

import jax
import jax.numpy as jnp
from jax import lax
from jax.experimental import pallas as pl
from jax.experimental.pallas import tpu as pltpu

LANE = 128          # TPU lane width; all stored feature dims padded to this.
_EPS = 1e-5         # PyTorch LayerNorm default eps.
_NEG = -1e9         # matches masked_fill(-1000000000.0)


def _round_up(x, m):
    return ((x + m - 1) // m) * m


# ----------------------------------------------------------------------------
# In-kernel helpers (traced inside the Pallas kernels)
# ----------------------------------------------------------------------------

def _masked_layernorm(z, gamma, beta, d_real):
    """LayerNorm over the first `d_real` lanes of z (remaining lanes are pad)."""
    rows, dp = z.shape
    inv_n = jnp.float32(1.0 / d_real)
    if dp == d_real:
        mu = jnp.sum(z, axis=-1, keepdims=True) * inv_n
        zc = z - mu
    else:
        lane = lax.broadcasted_iota(jnp.int32, (rows, dp), 1)
        real = lane < d_real
        zr = jnp.where(real, z, 0.0)
        mu = jnp.sum(zr, axis=-1, keepdims=True) * inv_n
        zc = jnp.where(real, z - mu, 0.0)
    var = jnp.sum(zc * zc, axis=-1, keepdims=True) * inv_n
    # gamma/beta are zero in padded lanes, so padded output lanes stay 0.
    return zc * lax.rsqrt(var + _EPS) * gamma + beta


def _attention(q, k, v, allowed, wo, bo, *, num_heads, d_k, scale):
    """Multi-head attention on full-width (S, Dp) projections.

    bf16 casts of q/k/v hoisted out of the head loop; per-head contexts are
    concatenated and projected by ONE (S, Dp) x (Dp, Dp) matmul (wo rows
    beyond d_model are zero).
    """
    f32, bf16 = jnp.float32, jnp.bfloat16
    sq, dp = q.shape
    qb, kb, vb = q.astype(bf16), k.astype(bf16), v.astype(bf16)
    parts = []
    for h in range(num_heads):                       # static unroll (small H)
        lo = h * d_k
        s = lax.dot_general(qb[:, lo:lo + d_k], kb[:, lo:lo + d_k],
                            (((1,), (1,)), ((), ())),
                            preferred_element_type=f32) * scale
        s = jnp.where(allowed, s, _NEG)              # exact masked_fill(-1e9)
        m = jnp.max(s, axis=-1, keepdims=True)
        p = jnp.exp(s - m)
        p = p * pl.reciprocal(jnp.sum(p, axis=-1, keepdims=True), approx=True)
        parts.append(jnp.dot(p.astype(bf16), vb[:, lo:lo + d_k],
                             preferred_element_type=f32))
    hd = num_heads * d_k
    if hd < dp:
        parts.append(jnp.zeros((sq, dp - hd), f32))
    ctx = jnp.concatenate(parts, axis=-1)            # (S, Dp)
    return jnp.dot(ctx.astype(bf16), wo, preferred_element_type=f32) + bo


# ----------------------------------------------------------------------------
# Fused stack kernels (grid = (batch, layer); layer axis carries activation)
# ----------------------------------------------------------------------------

def _encoder_stack_kernel(x_ref, kvalid_ref,
                          wqkv_ref, wo_ref, w1_ref, w2_ref, vec_ref,
                          out_ref, carry_ref, *,
                          num_heads, d_k, d_real, dp, fp, scale):
    f32, bf16 = jnp.float32, jnp.bfloat16
    l = pl.program_id(1)
    nl = pl.num_programs(1)

    @pl.when(l == 0)
    def _():                                   # load embedded src on layer 0
        carry_ref[...] = x_ref[0]

    x = carry_ref[...]                         # (S_src, Dp) f32
    vec = vec_ref[0]                           # (16, W)  packed biases/gammas

    # Encoder self-attention: key-column padding mask on src.
    allowed = kvalid_ref[0] > 0.5              # (1, S_src)
    qkv = jnp.dot(x.astype(bf16), wqkv_ref[0], preferred_element_type=f32)
    q = qkv[:, :dp] + vec[0:1, :dp]
    k = qkv[:, dp:2 * dp] + vec[1:2, :dp]
    v = qkv[:, 2 * dp:3 * dp] + vec[2:3, :dp]
    attn = _attention(q, k, v, allowed, wo_ref[0], vec[3:4, :dp],
                      num_heads=num_heads, d_k=d_k, scale=scale)
    x = _masked_layernorm(x + attn, vec[4:5, :dp], vec[5:6, :dp], d_real)

    # Feed-forward.
    h1 = jnp.dot(x.astype(bf16), w1_ref[0],
                 preferred_element_type=f32) + vec[6:7, :fp]
    h1 = jnp.maximum(h1, 0.0)
    y = jnp.dot(h1.astype(bf16), w2_ref[0],
                preferred_element_type=f32) + vec[7:8, :dp]
    x = _masked_layernorm(x + y, vec[8:9, :dp], vec[9:10, :dp], d_real)

    carry_ref[...] = x

    @pl.when(l == nl - 1)
    def _():                                   # only write HBM on last layer
        out_ref[0] = x


def _decoder_stack_kernel(x_ref, enc_ref, kvalid_ref, qvalid_ref,
                          sa_wqkv_ref, sa_wo_ref,
                          ca_wq_ref, ca_wkv_ref, ca_wo_ref,
                          w1_ref, w2_ref, vec_ref, fcw_ref, fcb_ref,
                          logits_ref, carry_ref, *,
                          num_heads, d_k, d_real, dp, fp, scale):
    f32, bf16 = jnp.float32, jnp.bfloat16
    l = pl.program_id(1)
    nl = pl.num_programs(1)

    @pl.when(l == 0)
    def _():                                   # load embedded tgt on layer 0
        carry_ref[...] = x_ref[0]

    x = carry_ref[...]                         # (S_tgt, Dp) f32
    enc = enc_ref[0]                           # (S_src, Dp) f32
    vec = vec_ref[0]                           # (16, W)
    st = x.shape[0]

    # Decoder self-attention: query-row tgt-padding mask AND causal.
    row = lax.broadcasted_iota(jnp.int32, (st, st), 0)
    col = lax.broadcasted_iota(jnp.int32, (st, st), 1)
    sa_allowed = jnp.logical_and(qvalid_ref[0] > 0.5, row >= col)  # (St, St)

    qkv = jnp.dot(x.astype(bf16), sa_wqkv_ref[0], preferred_element_type=f32)
    q = qkv[:, :dp] + vec[0:1, :dp]
    k = qkv[:, dp:2 * dp] + vec[1:2, :dp]
    v = qkv[:, 2 * dp:3 * dp] + vec[2:3, :dp]
    attn = _attention(q, k, v, sa_allowed, sa_wo_ref[0], vec[3:4, :dp],
                      num_heads=num_heads, d_k=d_k, scale=scale)
    x = _masked_layernorm(x + attn, vec[4:5, :dp], vec[5:6, :dp], d_real)

    # Cross-attention: key-column padding mask on src.
    ca_allowed = kvalid_ref[0] > 0.5                                # (1, Ss)
    q = jnp.dot(x.astype(bf16), ca_wq_ref[0],
                preferred_element_type=f32) + vec[6:7, :dp]
    kv = jnp.dot(enc.astype(bf16), ca_wkv_ref[0], preferred_element_type=f32)
    k = kv[:, :dp] + vec[7:8, :dp]
    v = kv[:, dp:2 * dp] + vec[8:9, :dp]
    attn = _attention(q, k, v, ca_allowed, ca_wo_ref[0], vec[9:10, :dp],
                      num_heads=num_heads, d_k=d_k, scale=scale)
    x = _masked_layernorm(x + attn, vec[10:11, :dp], vec[11:12, :dp], d_real)

    # Feed-forward.
    h1 = jnp.dot(x.astype(bf16), w1_ref[0],
                 preferred_element_type=f32) + vec[12:13, :fp]
    h1 = jnp.maximum(h1, 0.0)
    y = jnp.dot(h1.astype(bf16), w2_ref[0],
                preferred_element_type=f32) + vec[13:14, :dp]
    x = _masked_layernorm(x + y, vec[14:15, :dp], vec[15:16, :dp], d_real)

    carry_ref[...] = x

    @pl.when(l == nl - 1)
    def _():                                   # fused final vocab projection
        logits_ref[0] = (jnp.dot(x.astype(bf16), fcw_ref[...],
                                 preferred_element_type=f32) + fcb_ref[...])


# ----------------------------------------------------------------------------
# pallas_call wrappers
# ----------------------------------------------------------------------------

def encoder_stack(params, src_x, src_kvalid, *, num_heads, d_k, d_real):
    B, Ss, Dp = src_x.shape
    L = params["enc_wqkv"].shape[0]
    Fp = params["enc_w1"].shape[2]
    W = params["enc_vec"].shape[2]
    kern = functools.partial(
        _encoder_stack_kernel, num_heads=num_heads, d_k=d_k, d_real=d_real,
        dp=Dp, fp=Fp, scale=1.0 / math.sqrt(d_k))
    return pl.pallas_call(
        kern,
        out_shape=jax.ShapeDtypeStruct((B, Ss, Dp), jnp.float32),
        grid=(B, L),
        in_specs=[
            pl.BlockSpec((1, Ss, Dp), lambda b, l: (b, 0, 0)),
            pl.BlockSpec((1, 1, Ss), lambda b, l: (b, 0, 0)),
            pl.BlockSpec((1, Dp, 3 * Dp), lambda b, l: (l, 0, 0)),
            pl.BlockSpec((1, Dp, Dp), lambda b, l: (l, 0, 0)),
            pl.BlockSpec((1, Dp, Fp), lambda b, l: (l, 0, 0)),
            pl.BlockSpec((1, Fp, Dp), lambda b, l: (l, 0, 0)),
            pl.BlockSpec((1, 16, W), lambda b, l: (l, 0, 0)),
        ],
        out_specs=pl.BlockSpec((1, Ss, Dp), lambda b, l: (b, 0, 0)),
        scratch_shapes=[pltpu.VMEM((Ss, Dp), jnp.float32)],
        compiler_params=pltpu.CompilerParams(
            dimension_semantics=("parallel", "arbitrary")),
    )(src_x, src_kvalid, params["enc_wqkv"], params["enc_wo"],
      params["enc_w1"], params["enc_w2"], params["enc_vec"])


def decoder_stack(params, tgt_x, enc, src_kvalid, tgt_qvalid, *,
                  num_heads, d_k, d_real):
    B, St, Dp = tgt_x.shape
    Ss = enc.shape[1]
    L = params["dec_sa_wqkv"].shape[0]
    Fp = params["dec_w1"].shape[2]
    W = params["dec_vec"].shape[2]
    Vp = params["fc_w"].shape[1]
    kern = functools.partial(
        _decoder_stack_kernel, num_heads=num_heads, d_k=d_k, d_real=d_real,
        dp=Dp, fp=Fp, scale=1.0 / math.sqrt(d_k))
    return pl.pallas_call(
        kern,
        out_shape=jax.ShapeDtypeStruct((B, St, Vp), jnp.float32),
        grid=(B, L),
        in_specs=[
            pl.BlockSpec((1, St, Dp), lambda b, l: (b, 0, 0)),
            pl.BlockSpec((1, Ss, Dp), lambda b, l: (b, 0, 0)),
            pl.BlockSpec((1, 1, Ss), lambda b, l: (b, 0, 0)),
            pl.BlockSpec((1, St, 1), lambda b, l: (b, 0, 0)),
            pl.BlockSpec((1, Dp, 3 * Dp), lambda b, l: (l, 0, 0)),
            pl.BlockSpec((1, Dp, Dp), lambda b, l: (l, 0, 0)),
            pl.BlockSpec((1, Dp, Dp), lambda b, l: (l, 0, 0)),
            pl.BlockSpec((1, Dp, 2 * Dp), lambda b, l: (l, 0, 0)),
            pl.BlockSpec((1, Dp, Dp), lambda b, l: (l, 0, 0)),
            pl.BlockSpec((1, Dp, Fp), lambda b, l: (l, 0, 0)),
            pl.BlockSpec((1, Fp, Dp), lambda b, l: (l, 0, 0)),
            pl.BlockSpec((1, 16, W), lambda b, l: (l, 0, 0)),
            pl.BlockSpec((Dp, Vp), lambda b, l: (0, 0)),
            pl.BlockSpec((1, Vp), lambda b, l: (0, 0)),
        ],
        out_specs=pl.BlockSpec((1, St, Vp), lambda b, l: (b, 0, 0)),
        scratch_shapes=[pltpu.VMEM((St, Dp), jnp.float32)],
        compiler_params=pltpu.CompilerParams(
            dimension_semantics=("parallel", "arbitrary")),
    )(tgt_x, enc, src_kvalid, tgt_qvalid,
      params["dec_sa_wqkv"], params["dec_sa_wo"],
      params["dec_ca_wq"], params["dec_ca_wkv"], params["dec_ca_wo"],
      params["dec_w1"], params["dec_w2"], params["dec_vec"],
      params["fc_w"], params["fc_b"])


# ----------------------------------------------------------------------------
# Model forward (static config passed as Python ints, never traced)
# ----------------------------------------------------------------------------

def transformer_forward(params, src, tgt, *, d_model, num_heads, tgt_vocab):
    d_k = d_model // num_heads
    B = src.shape[0]

    # generate_mask(): encoder self-attn & decoder cross-attn mask key columns
    # by src padding; decoder self-attn masks query rows by tgt padding and
    # applies the causal mask in-kernel.
    src_kvalid = (src != 0).astype(jnp.float32)[:, None, :]    # (B, 1, S_src)
    tgt_qvalid = (tgt != 0).astype(jnp.float32)[:, :, None]    # (B, S_tgt, 1)

    # Embedding * sqrt(d_model) + positional encoding (PyTorch quirk kept:
    # pe[:B] indexes the positional table by BATCH and broadcasts over seq).
    scale = math.sqrt(d_model)                                 # static float
    pe_b = params["pe"][:B]                                    # (B, 1, Dp)
    src_x = params["embedding"][src] * scale + pe_b            # (B, S_src, Dp)
    tgt_x = params["embedding"][tgt] * scale + pe_b            # (B, S_tgt, Dp)

    kw = dict(num_heads=num_heads, d_k=d_k, d_real=d_model)
    enc = encoder_stack(params, src_x, src_kvalid, **kw)
    logits = decoder_stack(params, tgt_x, enc, src_kvalid, tgt_qvalid, **kw)
    return logits[:, :, :tgt_vocab]                            # strip lane pad


# ----------------------------------------------------------------------------
# Deterministic parameter initialization (lane-padded, layer-stacked,
# matmul weights in bf16, biases/gammas packed into (L, 16, W) vectors)
# ----------------------------------------------------------------------------

def _pad2(w, rows, cols):
    return jnp.pad(w, ((0, rows - w.shape[0]), (0, cols - w.shape[1])))


def _attn_weights(key, d_model, dp):
    ks = jax.random.split(key, 4)
    mk = lambda k: _pad2(
        jax.random.normal(k, (d_model, d_model), jnp.float32) * 0.02, dp, dp)
    return mk(ks[0]), mk(ks[1]), mk(ks[2]), mk(ks[3])          # wq, wk, wv, wo


def _ffn_weights(key, d_model, d_ff, dp, fp):
    k1, k2 = jax.random.split(key)
    w1 = _pad2(jax.random.normal(k1, (d_model, d_ff), jnp.float32) * 0.02, dp, fp)
    w2 = _pad2(jax.random.normal(k2, (d_ff, d_model), jnp.float32) * 0.02, fp, dp)
    return w1, w2


def _init_encoder_stack(keys, d_model, d_ff, dp, fp, w):
    wqkv_l, wo_l, w1_l, w2_l, vec_l = [], [], [], [], []
    for key in keys:
        k1, k2 = jax.random.split(key)
        wq, wk, wv, wo = _attn_weights(k1, d_model, dp)
        w1, w2 = _ffn_weights(k2, d_model, d_ff, dp, fp)
        wqkv_l.append(jnp.concatenate([wq, wk, wv], axis=1).astype(jnp.bfloat16))
        wo_l.append(wo.astype(jnp.bfloat16))
        w1_l.append(w1.astype(jnp.bfloat16))
        w2_l.append(w2.astype(jnp.bfloat16))
        # Packed vectors: rows 0-3 attn biases, 4/5 ln1 g/b, 6/7 ffn biases,
        # 8/9 ln2 g/b.  Biases zero, gammas one in the real d_model lanes.
        vec = jnp.zeros((16, w), jnp.float32)
        vec = vec.at[4, :d_model].set(1.0)
        vec = vec.at[8, :d_model].set(1.0)
        vec_l.append(vec)
    return dict(enc_wqkv=jnp.stack(wqkv_l), enc_wo=jnp.stack(wo_l),
                enc_w1=jnp.stack(w1_l), enc_w2=jnp.stack(w2_l),
                enc_vec=jnp.stack(vec_l))


def _init_decoder_stack(keys, d_model, d_ff, dp, fp, w):
    sa_wqkv, sa_wo, ca_wq, ca_wkv, ca_wo = [], [], [], [], []
    w1_l, w2_l, vec_l = [], [], []
    for key in keys:
        k1, k2, k3 = jax.random.split(key, 3)
        wq, wk, wv, wo = _attn_weights(k1, d_model, dp)
        sa_wqkv.append(jnp.concatenate([wq, wk, wv], axis=1).astype(jnp.bfloat16))
        sa_wo.append(wo.astype(jnp.bfloat16))
        wq, wk, wv, wo = _attn_weights(k2, d_model, dp)
        ca_wq.append(wq.astype(jnp.bfloat16))
        ca_wkv.append(jnp.concatenate([wk, wv], axis=1).astype(jnp.bfloat16))
        ca_wo.append(wo.astype(jnp.bfloat16))
        w1, w2 = _ffn_weights(k3, d_model, d_ff, dp, fp)
        w1_l.append(w1.astype(jnp.bfloat16))
        w2_l.append(w2.astype(jnp.bfloat16))
        # rows: 0-3 self-attn biases, 4/5 ln1, 6-9 cross-attn biases,
        # 10/11 ln2, 12/13 ffn biases, 14/15 ln3.
        vec = jnp.zeros((16, w), jnp.float32)
        vec = vec.at[4, :d_model].set(1.0)
        vec = vec.at[10, :d_model].set(1.0)
        vec = vec.at[14, :d_model].set(1.0)
        vec_l.append(vec)
    return dict(dec_sa_wqkv=jnp.stack(sa_wqkv), dec_sa_wo=jnp.stack(sa_wo),
                dec_ca_wq=jnp.stack(ca_wq), dec_ca_wkv=jnp.stack(ca_wkv),
                dec_ca_wo=jnp.stack(ca_wo), dec_w1=jnp.stack(w1_l),
                dec_w2=jnp.stack(w2_l), dec_vec=jnp.stack(vec_l))


def _make_pos_encoding(max_len, d_model, dp):
    position = jnp.arange(max_len, dtype=jnp.float32)[:, None]          # (L,1)
    div_term = jnp.exp(jnp.arange(0, d_model, 2, dtype=jnp.float32)
                       * (-math.log(10000.0) / d_model))                # (D/2,)
    pe = jnp.zeros((max_len, 1, d_model), jnp.float32)
    pe = pe.at[:, 0, 0::2].set(jnp.sin(position * div_term))
    pe = pe.at[:, 0, 1::2].set(jnp.cos(position * div_term))
    return jnp.pad(pe, ((0, 0), (0, 0), (0, dp - d_model)))


def init_transformer_params(key, src_vocab, tgt_vocab, d_model, num_heads,
                            num_enc, num_dec, d_ff, max_len):
    assert d_model % num_heads == 0
    dp = _round_up(d_model, LANE)
    fp = _round_up(d_ff, LANE)
    vp = _round_up(tgt_vocab, LANE)
    w = max(dp, fp)
    keys = jax.random.split(key, 2 + num_enc + num_dec)
    emb = jax.random.normal(keys[0], (src_vocab, d_model), jnp.float32) * 0.02
    emb = jnp.pad(emb, ((0, 0), (0, dp - d_model)))
    fc_w = _pad2(jax.random.normal(keys[1], (d_model, tgt_vocab),
                                   jnp.float32) * 0.02, dp, vp)
    params = dict(embedding=emb,
                  pe=_make_pos_encoding(max_len, d_model, dp),
                  fc_w=fc_w.astype(jnp.bfloat16),
                  fc_b=jnp.zeros((1, vp), jnp.float32))
    params.update(_init_encoder_stack(keys[2:2 + num_enc],
                                      d_model, d_ff, dp, fp, w))
    params.update(_init_decoder_stack(keys[2 + num_enc:2 + num_enc + num_dec],
                                      d_model, d_ff, dp, fp, w))
    # NOTE: only arrays live in this pytree; all static config (d_model,
    # num_heads, vocab sizes) is passed to transformer_forward as Python ints.
    return params


# ----------------------------------------------------------------------------
# Main
# ----------------------------------------------------------------------------

if __name__ == "__main__":
    SRC_VOCAB = 50
    TGT_VOCAB = 50
    D_MODEL = 32
    NUM_HEADS = 4
    NUM_ENC = 2
    NUM_DEC = 2
    D_FF = 64
    MAX_LEN = 64
    B, S = 2, 8

    root = jax.random.PRNGKey(0)
    k_params, k_src, k_tgt = jax.random.split(root, 3)

    params = init_transformer_params(
        k_params, SRC_VOCAB, TGT_VOCAB, D_MODEL, NUM_HEADS,
        NUM_ENC, NUM_DEC, D_FF, MAX_LEN)

    # Token ids (0 acts as padding and exercises the masks).
    src = jax.random.randint(k_src, (B, S), 0, SRC_VOCAB, dtype=jnp.int32)
    tgt = jax.random.randint(k_tgt, (B, S), 0, TGT_VOCAB, dtype=jnp.int32)

    fwd = jax.jit(functools.partial(transformer_forward,
                                    d_model=D_MODEL,
                                    num_heads=NUM_HEADS,
                                    tgt_vocab=TGT_VOCAB))
    logits = fwd(params, src, tgt)
    jax.block_until_ready(logits)

    assert logits.shape == (B, S, TGT_VOCAB), logits.shape
    assert logits.dtype == jnp.float32
    assert bool(jnp.all(jnp.isfinite(logits)))
    print("KERNEL_OK")
</pallas_src>

<mosaic_0001>
module attributes {stable_mosaic.version = 11 : i64} {
  func.func @_encoder_stack_kernel(%arg0: i32, %arg1: i32, %arg2: memref<1x8x128xf32, #tpu.memory_space<vmem>>, %arg3: memref<1x1x8xf32, #tpu.memory_space<vmem>>, %arg4: memref<1x128x384xbf16, #tpu.memory_space<vmem>>, %arg5: memref<1x128x128xbf16, #tpu.memory_space<vmem>>, %arg6: memref<1x128x128xbf16, #tpu.memory_space<vmem>>, %arg7: memref<1x128x128xbf16, #tpu.memory_space<vmem>>, %arg8: memref<1x16x128xf32, #tpu.memory_space<vmem>>, %arg9: memref<1x8x128xf32, #tpu.memory_space<vmem>>, %arg10: memref<8x128xf32, #tpu.memory_space<vmem>>) attributes {dimension_semantics = [#tpu.dimension_semantics<parallel>, #tpu.dimension_semantics<arbitrary>], iteration_bounds = array<i64: 2, 2>, scalar_prefetch = 0 : i64, scratch_operands = 1 : i64, tpu.core_type = #tpu.core_type<tc>, window_params = [{transform_indices = @transform_0, window_bounds = array<i64: 1, 8, 128>}, {transform_indices = @transform_1, window_bounds = array<i64: 1, 1, 8>}, {transform_indices = @transform_2, window_bounds = array<i64: 1, 128, 384>}, {transform_indices = @transform_3, window_bounds = array<i64: 1, 128, 128>}, {transform_indices = @transform_4, window_bounds = array<i64: 1, 128, 128>}, {transform_indices = @transform_5, window_bounds = array<i64: 1, 128, 128>}, {transform_indices = @transform_6, window_bounds = array<i64: 1, 16, 128>}, {transform_indices = @transform_7, window_bounds = array<i64: 1, 8, 128>}]} {
    %c0_i32 = arith.constant 0 : i32
    %0 = arith.cmpi eq, %arg1, %c0_i32 : i32
    %1 = arith.extui %0 : i1 to i32
    %c0_i32_0 = arith.constant 0 : i32
    %2 = arith.cmpi ne, %1, %c0_i32_0 : i32
    scf.if %2 {
      %c0_68 = arith.constant 0 : index
      %c0_69 = arith.constant 0 : index
      %c0_70 = arith.constant 0 : index
      %206 = vector.load %arg2[%c0_68, %c0_69, %c0_70] : memref<1x8x128xf32, #tpu.memory_space<vmem>>, vector<1x8x128xf32>
      %207 = vector.shape_cast %206 : vector<1x8x128xf32> to vector<8x128xf32>
      %c0_71 = arith.constant 0 : index
      %c0_72 = arith.constant 0 : index
      %208 = vector.load %arg10[%c0_71, %c0_72] : memref<8x128xf32, #tpu.memory_space<vmem>>, vector<8x128xf32>
      tpu.vector_store %arg10[%c0_71, %c0_72], %207 {strides = array<i32>} : memref<8x128xf32, #tpu.memory_space<vmem>>, vector<8x128xf32>,
    } else {
    }
    %c0 = arith.constant 0 : index
    %c0_1 = arith.constant 0 : index
    %3 = vector.load %arg10[%c0, %c0_1] : memref<8x128xf32, #tpu.memory_space<vmem>>, vector<8x128xf32>
    %c0_2 = arith.constant 0 : index
    %c0_3 = arith.constant 0 : index
    %c0_4 = arith.constant 0 : index
    %4 = vector.load %arg8[%c0_2, %c0_3, %c0_4] : memref<1x16x128xf32, #tpu.memory_space<vmem>>, vector<1x16x128xf32>
    %5 = vector.shape_cast %4 : vector<1x16x128xf32> to vector<16x128xf32>
    %c0_5 = arith.constant 0 : index
    %c0_6 = arith.constant 0 : index
    %c0_7 = arith.constant 0 : index
    %6 = vector.load %arg3[%c0_5, %c0_6, %c0_7] : memref<1x1x8xf32, #tpu.memory_space<vmem>>, vector<1x1x8xf32>
    %7 = vector.shape_cast %6 : vector<1x1x8xf32> to vector<1x8xf32>
    %cst = arith.constant 5.000000e-01 : f32
    %8 = vector.broadcast %cst : f32 to vector<1x8xf32>
    %9 = arith.cmpf ogt, %7, %8 : vector<1x8xf32>
    %10 = arith.truncf %3 : vector<8x128xf32> to vector<8x128xbf16>
    %c0_8 = arith.constant 0 : index
    %c0_9 = arith.constant 0 : index
    %c0_10 = arith.constant 0 : index
    %11 = vector.load %arg4[%c0_8, %c0_9, %c0_10] : memref<1x128x384xbf16, #tpu.memory_space<vmem>>, vector<1x128x384xbf16>
    %12 = vector.shape_cast %11 : vector<1x128x384xbf16> to vector<128x384xbf16>
    %cst_11 = arith.constant dense<0.000000e+00> : vector<8x384xf32>
    %13 = tpu.matmul %10, %12, %cst_11 {dimension_numbers = #tpu.dot_dimension_numbers<[1], [0], [0], [1], [0, 0, 1, 1], [], []>} : vector<8x128xbf16>, vector<128x384xbf16>, vector<8x384xf32> -> vector<8x384xf32>
    %14 = vector.extract_strided_slice %13 {offsets = [0, 0], sizes = [8, 128], strides = [1, 1]} : vector<8x384xf32> to vector<8x128xf32>
    %15 = vector.extract_strided_slice %5 {offsets = [0, 0], sizes = [1, 128], strides = [1, 1]} : vector<16x128xf32> to vector<1x128xf32>
    %16 = vector.broadcast %15 : vector<1x128xf32> to vector<8x128xf32>
    %17 = arith.addf %14, %16 : vector<8x128xf32>
    %18 = vector.extract_strided_slice %13 {offsets = [0, 128], sizes = [8, 128], strides = [1, 1]} : vector<8x384xf32> to vector<8x128xf32>
    %19 = vector.extract_strided_slice %5 {offsets = [1, 0], sizes = [1, 128], strides = [1, 1]} : vector<16x128xf32> to vector<1x128xf32>
    %20 = vector.broadcast %19 : vector<1x128xf32> to vector<8x128xf32>
    %21 = arith.addf %18, %20 : vector<8x128xf32>
    %22 = vector.extract_strided_slice %13 {offsets = [0, 256], sizes = [8, 128], strides = [1, 1]} : vector<8x384xf32> to vector<8x128xf32>
    %23 = vector.extract_strided_slice %5 {offsets = [2, 0], sizes = [1, 128], strides = [1, 1]} : vector<16x128xf32> to vector<1x128xf32>
    %24 = vector.broadcast %23 : vector<1x128xf32> to vector<8x128xf32>
    %25 = arith.addf %22, %24 : vector<8x128xf32>
    %c0_12 = arith.constant 0 : index
    %c0_13 = arith.constant 0 : index
    %c0_14 = arith.constant 0 : index
    %26 = vector.load %arg5[%c0_12, %c0_13, %c0_14] : memref<1x128x128xbf16, #tpu.memory_space<vmem>>, vector<1x128x128xbf16>
    %27 = vector.shape_cast %26 : vector<1x128x128xbf16> to vector<128x128xbf16>
    %28 = vector.extract_strided_slice %5 {offsets = [3, 0], sizes = [1, 128], strides = [1, 1]} : vector<16x128xf32> to vector<1x128xf32>
    %29 = arith.truncf %17 : vector<8x128xf32> to vector<8x128xbf16>
    %30 = arith.truncf %21 : vector<8x128xf32> to vector<8x128xbf16>
    %31 = arith.truncf %25 : vector<8x128xf32> to vector<8x128xbf16>
    %32 = vector.extract_strided_slice %29 {offsets = [0, 0], sizes = [8, 8], strides = [1, 1]} : vector<8x128xbf16> to vector<8x8xbf16>
    %33 = vector.extract_strided_slice %30 {offsets = [0, 0], sizes = [8, 8], strides = [1, 1]} : vector<8x128xbf16> to vector<8x8xbf16>
    %cst_15 = arith.constant dense<0.000000e+00> : vector<8x8xf32>
    %34 = tpu.matmul %32, %33, %cst_15 {dimension_numbers = #tpu.dot_dimension_numbers<[1], [1], [0], [0], [0, 0, 1, 0], [], []>} : vector<8x8xbf16>, vector<8x8xbf16>, vector<8x8xf32> -> vector<8x8xf32>
    %cst_16 = arith.constant 0.353553385 : f32
    %35 = vector.broadcast %cst_16 : f32 to vector<8x8xf32>
    %36 = arith.mulf %34, %35 : vector<8x8xf32>
    %cst_17 = arith.constant -1.000000e+09 : f32
    %37 = vector.shape_cast %9 : vector<1x8xi1> to vector<1x8xi1>
    %38 = vector.broadcast %37 : vector<1x8xi1> to vector<8x8xi1>
    %39 = vector.broadcast %cst_17 : f32 to vector<8x8xf32>
    %40 = arith.select %38, %36, %39 : vector<8x8xi1>, vector<8x8xf32>
    %cst_18 = arith.constant dense<0xFF800000> : vector<8xf32>
    %41 = vector.multi_reduction <maximumf>, %40, %cst_18 [1] : vector<8x8xf32> to vector<8xf32>
    %42 = vector.shape_cast %41 : vector<8xf32> to vector<8x1xf32>
    %43 = vector.broadcast %42 : vector<8x1xf32> to vector<8x8xf32>
    %44 = arith.subf %40, %43 : vector<8x8xf32>
    %45 = math.exp %44 : vector<8x8xf32>
    %cst_19 = arith.constant dense<0.000000e+00> : vector<8xf32>
    %46 = vector.multi_reduction <add>, %45, %cst_19 [1] : vector<8x8xf32> to vector<8xf32>
    %47 = vector.shape_cast %46 : vector<8xf32> to vector<8x1xf32>
    %48 = tpu.reciprocal %47 {approx = true} : vector<8x1xf32> -> vector<8x1xf32>
    %49 = vector.broadcast %48 : vector<8x1xf32> to vector<8x8xf32>
    %50 = arith.mulf %45, %49 : vector<8x8xf32>
    %51 = arith.truncf %50 : vector<8x8xf32> to vector<8x8xbf16>
    %52 = vector.extract_strided_slice %31 {offsets = [0, 0], sizes = [8, 8], strides = [1, 1]} : vector<8x128xbf16> to vector<8x8xbf16>
    %cst_20 = arith.constant dense<0.000000e+00> : vector<8x8xf32>
    %53 = tpu.matmul %51, %52, %cst_20 {dimension_numbers = #tpu.dot_dimension_numbers<[1], [0], [0], [1], [0, 0, 1, 1], [], []>} : vector<8x8xbf16>, vector<8x8xbf16>, vector<8x8xf32> -> vector<8x8xf32>
    %54 = vector.extract_strided_slice %29 {offsets = [0, 8], sizes = [8, 8], strides = [1, 1]} : vector<8x128xbf16> to vector<8x8xbf16>
    %55 = vector.extract_strided_slice %30 {offsets = [0, 8], sizes = [8, 8], strides = [1, 1]} : vector<8x128xbf16> to vector<8x8xbf16>
    %cst_21 = arith.constant dense<0.000000e+00> : vector<8x8xf32>
    %56 = tpu.matmul %54, %55, %cst_21 {dimension_numbers = #tpu.dot_dimension_numbers<[1], [1], [0], [0], [0, 0, 1, 0], [], []>} : vector<8x8xbf16>, vector<8x8xbf16>, vector<8x8xf32> -> vector<8x8xf32>
    %cst_22 = arith.constant 0.353553385 : f32
    %57 = vector.broadcast %cst_22 : f32 to vector<8x8xf32>
    %58 = arith.mulf %56, %57 : vector<8x8xf32>
    %cst_23 = arith.constant -1.000000e+09 : f32
    %59 = vector.shape_cast %9 : vector<1x8xi1> to vector<1x8xi1>
    %60 = vector.broadcast %59 : vector<1x8xi1> to vector<8x8xi1>
    %61 = vector.broadcast %cst_23 : f32 to vector<8x8xf32>
    %62 = arith.select %60, %58, %61 : vector<8x8xi1>, vector<8x8xf32>
    %cst_24 = arith.constant dense<0xFF800000> : vector<8xf32>
    %63 = vector.multi_reduction <maximumf>, %62, %cst_24 [1] : vector<8x8xf32> to vector<8xf32>
    %64 = vector.shape_cast %63 : vector<8xf32> to vector<8x1xf32>
    %65 = vector.broadcast %64 : vector<8x1xf32> to vector<8x8xf32>
    %66 = arith.subf %62, %65 : vector<8x8xf32>
    %67 = math.exp %66 : vector<8x8xf32>
    %cst_25 = arith.constant dense<0.000000e+00> : vector<8xf32>
    %68 = vector.multi_reduction <add>, %67, %cst_25 [1] : vector<8x8xf32> to vector<8xf32>
    %69 = vector.shape_cast %68 : vector<8xf32> to vector<8x1xf32>
    %70 = tpu.reciprocal %69 {approx = true} : vector<8x1xf32> -> vector<8x1xf32>
    %71 = vector.broadcast %70 : vector<8x1xf32> to vector<8x8xf32>
    %72 = arith.mulf %67, %71 : vector<8x8xf32>
    %73 = arith.truncf %72 : vector<8x8xf32> to vector<8x8xbf16>
    %74 = vector.extract_strided_slice %31 {offsets = [0, 8], sizes = [8, 8], strides = [1, 1]} : vector<8x128xbf16> to vector<8x8xbf16>
    %cst_26 = arith.constant dense<0.000000e+00> : vector<8x8xf32>
    %75 = tpu.matmul %73, %74, %cst_26 {dimension_numbers = #tpu.dot_dimension_numbers<[1], [0], [0], [1], [0, 0, 1, 1], [], []>} : vector<8x8xbf16>, vector<8x8xbf16>, vector<8x8xf32> -> vector<8x8xf32>
    %76 = vector.extract_strided_slice %29 {offsets = [0, 16], sizes = [8, 8], strides = [1, 1]} : vector<8x128xbf16> to vector<8x8xbf16>
    %77 = vector.extract_strided_slice %30 {offsets = [0, 16], sizes = [8, 8], strides = [1, 1]} : vector<8x128xbf16> to vector<8x8xbf16>
    %cst_27 = arith.constant dense<0.000000e+00> : vector<8x8xf32>
    %78 = tpu.matmul %76, %77, %cst_27 {dimension_numbers = #tpu.dot_dimension_numbers<[1], [1], [0], [0], [0, 0, 1, 0], [], []>} : vector<8x8xbf16>, vector<8x8xbf16>, vector<8x8xf32> -> vector<8x8xf32>
    %cst_28 = arith.constant 0.353553385 : f32
    %79 = vector.broadcast %cst_28 : f32 to vector<8x8xf32>
    %80 = arith.mulf %78, %79 : vector<8x8xf32>
    %cst_29 = arith.constant -1.000000e+09 : f32
    %81 = vector.shape_cast %9 : vector<1x8xi1> to vector<1x8xi1>
    %82 = vector.broadcast %81 : vector<1x8xi1> to vector<8x8xi1>
    %83 = vector.broadcast %cst_29 : f32 to vector<8x8xf32>
    %84 = arith.select %82, %80, %83 : vector<8x8xi1>, vector<8x8xf32>
    %cst_30 = arith.constant dense<0xFF800000> : vector<8xf32>
    %85 = vector.multi_reduction <maximumf>, %84, %cst_30 [1] : vector<8x8xf32> to vector<8xf32>
    %86 = vector.shape_cast %85 : vector<8xf32> to vector<8x1xf32>
    %87 = vector.broadcast %86 : vector<8x1xf32> to vector<8x8xf32>
    %88 = arith.subf %84, %87 : vector<8x8xf32>
    %89 = math.exp %88 : vector<8x8xf32>
    %cst_31 = arith.constant dense<0.000000e+00> : vector<8xf32>
    %90 = vector.multi_reduction <add>, %89, %cst_31 [1] : vector<8x8xf32> to vector<8xf32>
    %91 = vector.shape_cast %90 : vector<8xf32> to vector<8x1xf32>
    %92 = tpu.reciprocal %91 {approx = true} : vector<8x1xf32> -> vector<8x1xf32>
    %93 = vector.broadcast %92 : vector<8x1xf32> to vector<8x8xf32>
    %94 = arith.mulf %89, %93 : vector<8x8xf32>
    %95 = arith.truncf %94 : vector<8x8xf32> to vector<8x8xbf16>
    %96 = vector.extract_strided_slice %31 {offsets = [0, 16], sizes = [8, 8], strides = [1, 1]} : vector<8x128xbf16> to vector<8x8xbf16>
    %cst_32 = arith.constant dense<0.000000e+00> : vector<8x8xf32>
    %97 = tpu.matmul %95, %96, %cst_32 {dimension_numbers = #tpu.dot_dimension_numbers<[1], [0], [0], [1], [0, 0, 1, 1], [], []>} : vector<8x8xbf16>, vector<8x8xbf16>, vector<8x8xf32> -> vector<8x8xf32>
    %98 = vector.extract_strided_slice %29 {offsets = [0, 24], sizes = [8, 8], strides = [1, 1]} : vector<8x128xbf16> to vector<8x8xbf16>
    %99 = vector.extract_strided_slice %30 {offsets = [0, 24], sizes = [8, 8], strides = [1, 1]} : vector<8x128xbf16> to vector<8x8xbf16>
    %cst_33 = arith.constant dense<0.000000e+00> : vector<8x8xf32>
    %100 = tpu.matmul %98, %99, %cst_33 {dimension_numbers = #tpu.dot_dimension_numbers<[1], [1], [0], [0], [0, 0, 1, 0], [], []>} : vector<8x8xbf16>, vector<8x8xbf16>, vector<8x8xf32> -> vector<8x8xf32>
    %cst_34 = arith.constant 0.353553385 : f32
    %101 = vector.broadcast %cst_34 : f32 to vector<8x8xf32>
    %102 = arith.mulf %100, %101 : vector<8x8xf32>
    %cst_35 = arith.constant -1.000000e+09 : f32
    %103 = vector.shape_cast %9 : vector<1x8xi1> to vector<1x8xi1>
    %104 = vector.broadcast %103 : vector<1x8xi1> to vector<8x8xi1>
    %105 = vector.broadcast %cst_35 : f32 to vector<8x8xf32>
    %106 = arith.select %104, %102, %105 : vector<8x8xi1>, vector<8x8xf32>
    %cst_36 = arith.constant dense<0xFF800000> : vector<8xf32>
    %107 = vector.multi_reduction <maximumf>, %106, %cst_36 [1] : vector<8x8xf32> to vector<8xf32>
    %108 = vector.shape_cast %107 : vector<8xf32> to vector<8x1xf32>
    %109 = vector.broadcast %108 : vector<8x1xf32> to vector<8x8xf32>
    %110 = arith.subf %106, %109 : vector<8x8xf32>
    %111 = math.exp %110 : vector<8x8xf32>
    %cst_37 = arith.constant dense<0.000000e+00> : vector<8xf32>
    %112 = vector.multi_reduction <add>, %111, %cst_37 [1] : vector<8x8xf32> to vector<8xf32>
    %113 = vector.shape_cast %112 : vector<8xf32> to vector<8x1xf32>
    %114 = tpu.reciprocal %113 {approx = true} : vector<8x1xf32> -> vector<8x1xf32>
    %115 = vector.broadcast %114 : vector<8x1xf32> to vector<8x8xf32>
    %116 = arith.mulf %111, %115 : vector<8x8xf32>
    %117 = arith.truncf %116 : vector<8x8xf32> to vector<8x8xbf16>
    %118 = vector.extract_strided_slice %31 {offsets = [0, 24], sizes = [8, 8], strides = [1, 1]} : vector<8x128xbf16> to vector<8x8xbf16>
    %cst_38 = arith.constant dense<0.000000e+00> : vector<8x8xf32>
    %119 = tpu.matmul %117, %118, %cst_38 {dimension_numbers = #tpu.dot_dimension_numbers<[1], [0], [0], [1], [0, 0, 1, 1], [], []>} : vector<8x8xbf16>, vector<8x8xbf16>, vector<8x8xf32> -> vector<8x8xf32>
    %cst_39 = arith.constant 0.000000e+00 : f32
    %120 = vector.broadcast %cst_39 : f32 to vector<8x96xf32>
    %121 = tpu.concatenate %53, %75, %97, %119, %120 in 1 : vector<8x8xf32>, vector<8x8xf32>, vector<8x8xf32>, vector<8x8xf32>, vector<8x96xf32> -> vector<8x128xf32>
    %122 = arith.truncf %121 : vector<8x128xf32> to vector<8x128xbf16>
    %cst_40 = arith.constant dense<0.000000e+00> : vector<8x128xf32>
    %123 = tpu.matmul %122, %27, %cst_40 {dimension_numbers = #tpu.dot_dimension_numbers<[1], [0], [0], [1], [0, 0, 1, 1], [], []>} : vector<8x128xbf16>, vector<128x128xbf16>, vector<8x128xf32> -> vector<8x128xf32>
    %124 = vector.broadcast %28 : vector<1x128xf32> to vector<8x128xf32>
    %125 = arith.addf %123, %124 : vector<8x128xf32>
    %126 = arith.addf %3, %125 : vector<8x128xf32>
    %127 = vector.extract_strided_slice %5 {offsets = [4, 0], sizes = [1, 128], strides = [1, 1]} : vector<16x128xf32> to vector<1x128xf32>
    %128 = vector.extract_strided_slice %5 {offsets = [5, 0], sizes = [1, 128], strides = [1, 1]} : vector<16x128xf32> to vector<1x128xf32>
    %129 = tpu.iota {dimensions = array<i32: 1>} : vector<8x128xi32>
    %c32_i32 = arith.constant 32 : i32
    %130 = vector.broadcast %c32_i32 : i32 to vector<8x128xi32>
    %131 = arith.cmpi slt, %129, %130 : vector<8x128xi32>
    %cst_41 = arith.constant 0.000000e+00 : f32
    %132 = vector.broadcast %cst_41 : f32 to vector<8x128xf32>
    %133 = arith.select %131, %126, %132 : vector<8x128xi1>, vector<8x128xf32>
    %cst_42 = arith.constant dense<0.000000e+00> : vector<8xf32>
    %134 = vector.multi_reduction <add>, %133, %cst_42 [1] : vector<8x128xf32> to vector<8xf32>
    %135 = vector.shape_cast %134 : vector<8xf32> to vector<8x1xf32>
    %cst_43 = arith.constant 3.125000e-02 : f32
    %136 = vector.broadcast %cst_43 : f32 to vector<8x1xf32>
    %137 = arith.mulf %135, %136 : vector<8x1xf32>
    %138 = vector.broadcast %137 : vector<8x1xf32> to vector<8x128xf32>
    %139 = arith.subf %126, %138 : vector<8x128xf32>
    %cst_44 = arith.constant 0.000000e+00 : f32
    %140 = vector.broadcast %cst_44 : f32 to vector<8x128xf32>
    %141 = arith.select %131, %139, %140 : vector<8x128xi1>, vector<8x128xf32>
    %142 = arith.mulf %141, %141 : vector<8x128xf32>
    %cst_45 = arith.constant dense<0.000000e+00> : vector<8xf32>
    %143 = vector.multi_reduction <add>, %142, %cst_45 [1] : vector<8x128xf32> to vector<8xf32>
    %144 = vector.shape_cast %143 : vector<8xf32> to vector<8x1xf32>
    %cst_46 = arith.constant 3.125000e-02 : f32
    %145 = vector.broadcast %cst_46 : f32 to vector<8x1xf32>
    %146 = arith.mulf %144, %145 : vector<8x1xf32>
    %cst_47 = arith.constant 9.99999974E-6 : f32
    %147 = vector.broadcast %cst_47 : f32 to vector<8x1xf32>
    %148 = arith.addf %146, %147 : vector<8x1xf32>
    %149 = math.rsqrt %148 : vector<8x1xf32>
    %150 = vector.broadcast %149 : vector<8x1xf32> to vector<8x128xf32>
    %151 = arith.mulf %141, %150 : vector<8x128xf32>
    %152 = vector.broadcast %127 : vector<1x128xf32> to vector<8x128xf32>
    %153 = arith.mulf %151, %152 : vector<8x128xf32>
    %154 = vector.broadcast %128 : vector<1x128xf32> to vector<8x128xf32>
    %155 = arith.addf %153, %154 : vector<8x128xf32>
    %156 = arith.truncf %155 : vector<8x128xf32> to vector<8x128xbf16>
    %c0_48 = arith.constant 0 : index
    %c0_49 = arith.constant 0 : index
    %c0_50 = arith.constant 0 : index
    %157 = vector.load %arg6[%c0_48, %c0_49, %c0_50] : memref<1x128x128xbf16, #tpu.memory_space<vmem>>, vector<1x128x128xbf16>
    %158 = vector.shape_cast %157 : vector<1x128x128xbf16> to vector<128x128xbf16>
    %cst_51 = arith.constant dense<0.000000e+00> : vector<8x128xf32>
    %159 = tpu.matmul %156, %158, %cst_51 {dimension_numbers = #tpu.dot_dimension_numbers<[1], [0], [0], [1], [0, 0, 1, 1], [], []>} : vector<8x128xbf16>, vector<128x128xbf16>, vector<8x128xf32> -> vector<8x128xf32>
    %160 = vector.extract_strided_slice %5 {offsets = [6, 0], sizes = [1, 128], strides = [1, 1]} : vector<16x128xf32> to vector<1x128xf32>
    %161 = vector.broadcast %160 : vector<1x128xf32> to vector<8x128xf32>
    %162 = arith.addf %159, %161 : vector<8x128xf32>
    %cst_52 = arith.constant 0.000000e+00 : f32
    %163 = vector.broadcast %cst_52 : f32 to vector<8x128xf32>
    %164 = arith.maximumf %162, %163 : vector<8x128xf32>
    %165 = arith.truncf %164 : vector<8x128xf32> to vector<8x128xbf16>
    %c0_53 = arith.constant 0 : index
    %c0_54 = arith.constant 0 : index
    %c0_55 = arith.constant 0 : index
    %166 = vector.load %arg7[%c0_53, %c0_54, %c0_55] : memref<1x128x128xbf16, #tpu.memory_space<vmem>>, vector<1x128x128xbf16>
    %167 = vector.shape_cast %166 : vector<1x128x128xbf16> to vector<128x128xbf16>
    %cst_56 = arith.constant dense<0.000000e+00> : vector<8x128xf32>
    %168 = tpu.matmul %165, %167, %cst_56 {dimension_numbers = #tpu.dot_dimension_numbers<[1], [0], [0], [1], [0, 0, 1, 1], [], []>} : vector<8x128xbf16>, vector<128x128xbf16>, vector<8x128xf32> -> vector<8x128xf32>
    %169 = vector.extract_strided_slice %5 {offsets = [7, 0], sizes = [1, 128], strides = [1, 1]} : vector<16x128xf32> to vector<1x128xf32>
    %170 = vector.broadcast %169 : vector<1x128xf32> to vector<8x128xf32>
    %171 = arith.addf %168, %170 : vector<8x128xf32>
    %172 = arith.addf %155, %171 : vector<8x128xf32>
    %173 = vector.extract_strided_slice %5 {offsets = [8, 0], sizes = [1, 128], strides = [1, 1]} : vector<16x128xf32> to vector<1x128xf32>
    %174 = vector.extract_strided_slice %5 {offsets = [9, 0], sizes = [1, 128], strides = [1, 1]} : vector<16x128xf32> to vector<1x128xf32>
    %175 = tpu.iota {dimensions = array<i32: 1>} : vector<8x128xi32>
    %c32_i32_57 = arith.constant 32 : i32
    %176 = vector.broadcast %c32_i32_57 : i32 to vector<8x128xi32>
    %177 = arith.cmpi slt, %175, %176 : vector<8x128xi32>
    %cst_58 = arith.constant 0.000000e+00 : f32
    %178 = vector.broadcast %cst_58 : f32 to vector<8x128xf32>
    %179 = arith.select %177, %172, %178 : vector<8x128xi1>, vector<8x128xf32>
    %cst_59 = arith.constant dense<0.000000e+00> : vector<8xf32>
    %180 = vector.multi_reduction <add>, %179, %cst_59 [1] : vector<8x128xf32> to vector<8xf32>
    %181 = vector.shape_cast %180 : vector<8xf32> to vector<8x1xf32>
    %cst_60 = arith.constant 3.125000e-02 : f32
    %182 = vector.broadcast %cst_60 : f32 to vector<8x1xf32>
    %183 = arith.mulf %181, %182 : vector<8x1xf32>
    %184 = vector.broadcast %183 : vector<8x1xf32> to vector<8x128xf32>
    %185 = arith.subf %172, %184 : vector<8x128xf32>
    %cst_61 = arith.constant 0.000000e+00 : f32
    %186 = vector.broadcast %cst_61 : f32 to vector<8x128xf32>
    %187 = arith.select %177, %185, %186 : vector<8x128xi1>, vector<8x128xf32>
    %188 = arith.mulf %187, %187 : vector<8x128xf32>
    %cst_62 = arith.constant dense<0.000000e+00> : vector<8xf32>
    %189 = vector.multi_reduction <add>, %188, %cst_62 [1] : vector<8x128xf32> to vector<8xf32>
    %190 = vector.shape_cast %189 : vector<8xf32> to vector<8x1xf32>
    %cst_63 = arith.constant 3.125000e-02 : f32
    %191 = vector.broadcast %cst_63 : f32 to vector<8x1xf32>
    %192 = arith.mulf %190, %191 : vector<8x1xf32>
    %cst_64 = arith.constant 9.99999974E-6 : f32
    %193 = vector.broadcast %cst_64 : f32 to vector<8x1xf32>
    %194 = arith.addf %192, %193 : vector<8x1xf32>
    %195 = math.rsqrt %194 : vector<8x1xf32>
    %196 = vector.broadcast %195 : vector<8x1xf32> to vector<8x128xf32>
    %197 = arith.mulf %187, %196 : vector<8x128xf32>
    %198 = vector.broadcast %173 : vector<1x128xf32> to vector<8x128xf32>
    %199 = arith.mulf %197, %198 : vector<8x128xf32>
    %200 = vector.broadcast %174 : vector<1x128xf32> to vector<8x128xf32>
    %201 = arith.addf %199, %200 : vector<8x128xf32>
    %c0_65 = arith.constant 0 : index
    %c0_66 = arith.constant 0 : index
    %202 = vector.load %arg10[%c0_65, %c0_66] : memref<8x128xf32, #tpu.memory_space<vmem>>, vector<8x128xf32>
    tpu.vector_store %arg10[%c0_65, %c0_66], %201 {strides = array<i32>} : memref<8x128xf32, #tpu.memory_space<vmem>>, vector<8x128xf32>,
    %c1_i32 = arith.constant 1 : i32
    %203 = arith.cmpi eq, %arg1, %c1_i32 : i32
    %204 = arith.extui %203 : i1 to i32
    %c0_i32_67 = arith.constant 0 : i32
    %205 = arith.cmpi ne, %204, %c0_i32_67 : i32
    scf.if %205 {
      %c0_68 = arith.constant 0 : index
      %c0_69 = arith.constant 0 : index
      %c0_70 = arith.constant 0 : index
      %206 = vector.load %arg9[%c0_68, %c0_69, %c0_70] : memref<1x8x128xf32, #tpu.memory_space<vmem>>, vector<1x8x128xf32>
      %207 = vector.shape_cast %206 : vector<1x8x128xf32> to vector<8x128xf32>
      %208 = vector.shape_cast %201 : vector<8x128xf32> to vector<1x8x128xf32>
      tpu.vector_store %arg9[%c0_68, %c0_69, %c0_70], %208 {strides = array<i32>} : memref<1x8x128xf32, #tpu.memory_space<vmem>>, vector<1x8x128xf32>,
    } else {
    }
    return
  }
  func.func @transform_0(%arg0: i32, %arg1: i32) -> (i32, i32, i32) {
    %c0_i32 = arith.constant 0 : i32
    %c0_i32_0 = arith.constant 0 : i32
    %c0_i32_1 = arith.constant 0 : i32
    return %arg0, %c0_i32, %c0_i32_0 : i32, i32, i32
  }
  func.func @transform_1(%arg0: i32, %arg1: i32) -> (i32, i32, i32) {
    %c0_i32 = arith.constant 0 : i32
    %c0_i32_0 = arith.constant 0 : i32
    %c0_i32_1 = arith.constant 0 : i32
    return %arg0, %c0_i32, %c0_i32_0 : i32, i32, i32
  }
  func.func @transform_2(%arg0: i32, %arg1: i32) -> (i32, i32, i32) {
    %c0_i32 = arith.constant 0 : i32
    %c0_i32_0 = arith.constant 0 : i32
    %c0_i32_1 = arith.constant 0 : i32
    return %arg1, %c0_i32, %c0_i32_0 : i32, i32, i32
  }
  func.func @transform_3(%arg0: i32, %arg1: i32) -> (i32, i32, i32) {
    %c0_i32 = arith.constant 0 : i32
    %c0_i32_0 = arith.constant 0 : i32
    %c0_i32_1 = arith.constant 0 : i32
    return %arg1, %c0_i32, %c0_i32_0 : i32, i32, i32
  }
  func.func @transform_4(%arg0: i32, %arg1: i32) -> (i32, i32, i32) {
    %c0_i32 = arith.constant 0 : i32
    %c0_i32_0 = arith.constant 0 : i32
    %c0_i32_1 = arith.constant 0 : i32
    return %arg1, %c0_i32, %c0_i32_0 : i32, i32, i32
  }
  func.func @transform_5(%arg0: i32, %arg1: i32) -> (i32, i32, i32) {
    %c0_i32 = arith.constant 0 : i32
    %c0_i32_0 = arith.constant 0 : i32
    %c0_i32_1 = arith.constant 0 : i32
    return %arg1, %c0_i32, %c0_i32_0 : i32, i32, i32
  }
  func.func @transform_6(%arg0: i32, %arg1: i32) -> (i32, i32, i32) {
    %c0_i32 = arith.constant 0 : i32
    %c0_i32_0 = arith.constant 0 : i32
    %c0_i32_1 = arith.constant 0 : i32
    return %arg1, %c0_i32, %c0_i32_0 : i32, i32, i32
  }
  func.func @transform_7(%arg0: i32, %arg1: i32) -> (i32, i32, i32) {
    %c0_i32 = arith.constant 0 : i32
    %c0_i32_0 = arith.constant 0 : i32
    %c0_i32_1 = arith.constant 0 : i32
    return %arg0, %c0_i32, %c0_i32_0 : i32, i32, i32
  }
}

module attributes {stable_mosaic.version = 11 : i64} {
  func.func @_decoder_stack_kernel(%arg0: i32, %arg1: i32, %arg2: memref<1x8x128xf32, #tpu.memory_space<vmem>>, %arg3: memref<1x8x128xf32, #tpu.memory_space<vmem>>, %arg4: memref<1x1x8xf32, #tpu.memory_space<vmem>>, %arg5: memref<1x8x1xf32, #tpu.memory_space<vmem>>, %arg6: memref<1x128x384xbf16, #tpu.memory_space<vmem>>, %arg7: memref<1x128x128xbf16, #tpu.memory_space<vmem>>, %arg8: memref<1x128x128xbf16, #tpu.memory_space<vmem>>, %arg9: memref<1x128x256xbf16, #tpu.memory_space<vmem>>, %arg10: memref<1x128x128xbf16, #tpu.memory_space<vmem>>, %arg11: memref<1x128x128xbf16, #tpu.memory_space<vmem>>, %arg12: memref<1x128x128xbf16, #tpu.memory_space<vmem>>, %arg13: memref<1x16x128xf32, #tpu.memory_space<vmem>>, %arg14: memref<128x128xbf16, #tpu.memory_space<vmem>>, %arg15: memref<1x128xf32, #tpu.memory_space<vmem>>, %arg16: memref<1x8x128xf32, #tpu.memory_space<vmem>>, %arg17: memref<8x128xf32, #tpu.memory_space<vmem>>) attributes {dimension_semantics = [#tpu.dimension_semantics<parallel>, #tpu.dimension_semantics<arbitrary>], iteration_bounds = array<i64: 2, 2>, scalar_prefetch = 0 : i64, scratch_operands = 1 : i64, tpu.core_type = #tpu.core_type<tc>, window_params = [{transform_indices = @transform_0, window_bounds = array<i64: 1, 8, 128>}, {transform_indices = @transform_1, window_bounds = array<i64: 1, 8, 128>}, {transform_indices = @transform_2, window_bounds = array<i64: 1, 1, 8>}, {transform_indices = @transform_3, window_bounds = array<i64: 1, 8, 1>}, {transform_indices = @transform_4, window_bounds = array<i64: 1, 128, 384>}, {transform_indices = @transform_5, window_bounds = array<i64: 1, 128, 128>}, {transform_indices = @transform_6, window_bounds = array<i64: 1, 128, 128>}, {transform_indices = @transform_7, window_bounds = array<i64: 1, 128, 256>}, {transform_indices = @transform_8, window_bounds = array<i64: 1, 128, 128>}, {transform_indices = @transform_9, window_bounds = array<i64: 1, 128, 128>}, {transform_indices = @transform_10, window_bounds = array<i64: 1, 128, 128>}, {transform_indices = @transform_11, window_bounds = array<i64: 1, 16, 128>}, {pipeline_mode = #tpu.pipeline_mode<synchronous>, transform_indices = @transform_12, window_bounds = array<i64: 128, 128>}, {pipeline_mode = #tpu.pipeline_mode<synchronous>, transform_indices = @transform_13, window_bounds = array<i64: 1, 128>}, {transform_indices = @transform_14, window_bounds = array<i64: 1, 8, 128>}]} {
    %c0_i32 = arith.constant 0 : i32
    %0 = arith.cmpi eq, %arg1, %c0_i32 : i32
    %1 = arith.extui %0 : i1 to i32
    %c0_i32_0 = arith.constant 0 : i32
    %2 = arith.cmpi ne, %1, %c0_i32_0 : i32
    scf.if %2 {
      %c0_120 = arith.constant 0 : index
      %c0_121 = arith.constant 0 : index
      %c0_122 = arith.constant 0 : index
      %358 = vector.load %arg2[%c0_120, %c0_121, %c0_122] : memref<1x8x128xf32, #tpu.memory_space<vmem>>, vector<1x8x128xf32>
      %359 = vector.shape_cast %358 : vector<1x8x128xf32> to vector<8x128xf32>
      %c0_123 = arith.constant 0 : index
      %c0_124 = arith.constant 0 : index
      %360 = vector.load %arg17[%c0_123, %c0_124] : memref<8x128xf32, #tpu.memory_space<vmem>>, vector<8x128xf32>
      tpu.vector_store %arg17[%c0_123, %c0_124], %359 {strides = array<i32>} : memref<8x128xf32, #tpu.memory_space<vmem>>, vector<8x128xf32>,
    } else {
    }
    %c0 = arith.constant 0 : index
    %c0_1 = arith.constant 0 : index
    %3 = vector.load %arg17[%c0, %c0_1] : memref<8x128xf32, #tpu.memory_space<vmem>>, vector<8x128xf32>
    %c0_2 = arith.constant 0 : index
    %c0_3 = arith.constant 0 : index
    %c0_4 = arith.constant 0 : index
    %4 = vector.load %arg3[%c0_2, %c0_3, %c0_4] : memref<1x8x128xf32, #tpu.memory_space<vmem>>, vector<1x8x128xf32>
    %5 = vector.shape_cast %4 : vector<1x8x128xf32> to vector<8x128xf32>
    %c0_5 = arith.constant 0 : index
    %c0_6 = arith.constant 0 : index
    %c0_7 = arith.constant 0 : index
    %6 = vector.load %arg13[%c0_5, %c0_6, %c0_7] : memref<1x16x128xf32, #tpu.memory_space<vmem>>, vector<1x16x128xf32>
    %7 = vector.shape_cast %6 : vector<1x16x128xf32> to vector<16x128xf32>
    %8 = tpu.iota {dimensions = array<i32: 0>} : vector<8x8xi32>
    %9 = tpu.iota {dimensions = array<i32: 1>} : vector<8x8xi32>
    %c0_8 = arith.constant 0 : index
    %c0_9 = arith.constant 0 : index
    %c0_10 = arith.constant 0 : index
    %10 = vector.load %arg5[%c0_8, %c0_9, %c0_10] : memref<1x8x1xf32, #tpu.memory_space<vmem>>, vector<1x8x1xf32>
    %11 = vector.shape_cast %10 : vector<1x8x1xf32> to vector<8x1xf32>
    %cst = arith.constant 5.000000e-01 : f32
    %12 = vector.broadcast %cst : f32 to vector<8x1xf32>
    %13 = arith.cmpf ogt, %11, %12 : vector<8x1xf32>
    %14 = arith.cmpi sge, %8, %9 : vector<8x8xi32>
    %15 = vector.broadcast %13 : vector<8x1xi1> to vector<8x8xi1>
    %16 = arith.andi %15, %14 : vector<8x8xi1>
    %17 = arith.truncf %3 : vector<8x128xf32> to vector<8x128xbf16>
    %c0_11 = arith.constant 0 : index
    %c0_12 = arith.constant 0 : index
    %c0_13 = arith.constant 0 : index
    %18 = vector.load %arg6[%c0_11, %c0_12, %c0_13] : memref<1x128x384xbf16, #tpu.memory_space<vmem>>, vector<1x128x384xbf16>
    %19 = vector.shape_cast %18 : vector<1x128x384xbf16> to vector<128x384xbf16>
    %cst_14 = arith.constant dense<0.000000e+00> : vector<8x384xf32>
    %20 = tpu.matmul %17, %19, %cst_14 {dimension_numbers = #tpu.dot_dimension_numbers<[1], [0], [0], [1], [0, 0, 1, 1], [], []>} : vector<8x128xbf16>, vector<128x384xbf16>, vector<8x384xf32> -> vector<8x384xf32>
    %21 = vector.extract_strided_slice %20 {offsets = [0, 0], sizes = [8, 128], strides = [1, 1]} : vector<8x384xf32> to vector<8x128xf32>
    %22 = vector.extract_strided_slice %7 {offsets = [0, 0], sizes = [1, 128], strides = [1, 1]} : vector<16x128xf32> to vector<1x128xf32>
    %23 = vector.broadcast %22 : vector<1x128xf32> to vector<8x128xf32>
    %24 = arith.addf %21, %23 : vector<8x128xf32>
    %25 = vector.extract_strided_slice %20 {offsets = [0, 128], sizes = [8, 128], strides = [1, 1]} : vector<8x384xf32> to vector<8x128xf32>
    %26 = vector.extract_strided_slice %7 {offsets = [1, 0], sizes = [1, 128], strides = [1, 1]} : vector<16x128xf32> to vector<1x128xf32>
    %27 = vector.broadcast %26 : vector<1x128xf32> to vector<8x128xf32>
    %28 = arith.addf %25, %27 : vector<8x128xf32>
    %29 = vector.extract_strided_slice %20 {offsets = [0, 256], sizes = [8, 128], strides = [1, 1]} : vector<8x384xf32> to vector<8x128xf32>
    %30 = vector.extract_strided_slice %7 {offsets = [2, 0], sizes = [1, 128], strides = [1, 1]} : vector<16x128xf32> to vector<1x128xf32>
    %31 = vector.broadcast %30 : vector<1x128xf32> to vector<8x128xf32>
    %32 = arith.addf %29, %31 : vector<8x128xf32>
    %c0_15 = arith.constant 0 : index
    %c0_16 = arith.constant 0 : index
    %c0_17 = arith.constant 0 : index
    %33 = vector.load %arg7[%c0_15, %c0_16, %c0_17] : memref<1x128x128xbf16, #tpu.memory_space<vmem>>, vector<1x128x128xbf16>
    %34 = vector.shape_cast %33 : vector<1x128x128xbf16> to vector<128x128xbf16>
    %35 = vector.extract_strided_slice %7 {offsets = [3, 0], sizes = [1, 128], strides = [1, 1]} : vector<16x128xf32> to vector<1x128xf32>
    %36 = arith.truncf %24 : vector<8x128xf32> to vector<8x128xbf16>
    %37 = arith.truncf %28 : vector<8x128xf32> to vector<8x128xbf16>
    %38 = arith.truncf %32 : vector<8x128xf32> to vector<8x128xbf16>
    %39 = vector.extract_strided_slice %36 {offsets = [0, 0], sizes = [8, 8], strides = [1, 1]} : vector<8x128xbf16> to vector<8x8xbf16>
    %40 = vector.extract_strided_slice %37 {offsets = [0, 0], sizes = [8, 8], strides = [1, 1]} : vector<8x128xbf16> to vector<8x8xbf16>
    %cst_18 = arith.constant dense<0.000000e+00> : vector<8x8xf32>
    %41 = tpu.matmul %39, %40, %cst_18 {dimension_numbers = #tpu.dot_dimension_numbers<[1], [1], [0], [0], [0, 0, 1, 0], [], []>} : vector<8x8xbf16>, vector<8x8xbf16>, vector<8x8xf32> -> vector<8x8xf32>
    %cst_19 = arith.constant 0.353553385 : f32
    %42 = vector.broadcast %cst_19 : f32 to vector<8x8xf32>
    %43 = arith.mulf %41, %42 : vector<8x8xf32>
    %cst_20 = arith.constant -1.000000e+09 : f32
    %44 = vector.broadcast %cst_20 : f32 to vector<8x8xf32>
    %45 = arith.select %16, %43, %44 : vector<8x8xi1>, vector<8x8xf32>
    %cst_21 = arith.constant dense<0xFF800000> : vector<8xf32>
    %46 = vector.multi_reduction <maximumf>, %45, %cst_21 [1] : vector<8x8xf32> to vector<8xf32>
    %47 = vector.shape_cast %46 : vector<8xf32> to vector<8x1xf32>
    %48 = vector.broadcast %47 : vector<8x1xf32> to vector<8x8xf32>
    %49 = arith.subf %45, %48 : vector<8x8xf32>
    %50 = math.exp %49 : vector<8x8xf32>
    %cst_22 = arith.constant dense<0.000000e+00> : vector<8xf32>
    %51 = vector.multi_reduction <add>, %50, %cst_22 [1] : vector<8x8xf32> to vector<8xf32>
    %52 = vector.shape_cast %51 : vector<8xf32> to vector<8x1xf32>
    %53 = tpu.reciprocal %52 {approx = true} : vector<8x1xf32> -> vector<8x1xf32>
    %54 = vector.broadcast %53 : vector<8x1xf32> to vector<8x8xf32>
    %55 = arith.mulf %50, %54 : vector<8x8xf32>
    %56 = arith.truncf %55 : vector<8x8xf32> to vector<8x8xbf16>
    %57 = vector.extract_strided_slice %38 {offsets = [0, 0], sizes = [8, 8], strides = [1, 1]} : vector<8x128xbf16> to vector<8x8xbf16>
    %cst_23 = arith.constant dense<0.000000e+00> : vector<8x8xf32>
    %58 = tpu.matmul %56, %57, %cst_23 {dimension_numbers = #tpu.dot_dimension_numbers<[1], [0], [0], [1], [0, 0, 1, 1], [], []>} : vector<8x8xbf16>, vector<8x8xbf16>, vector<8x8xf32> -> vector<8x8xf32>
    %59 = vector.extract_strided_slice %36 {offsets = [0, 8], sizes = [8, 8], strides = [1, 1]} : vector<8x128xbf16> to vector<8x8xbf16>
    %60 = vector.extract_strided_slice %37 {offsets = [0, 8], sizes = [8, 8], strides = [1, 1]} : vector<8x128xbf16> to vector<8x8xbf16>
    %cst_24 = arith.constant dense<0.000000e+00> : vector<8x8xf32>
    %61 = tpu.matmul %59, %60, %cst_24 {dimension_numbers = #tpu.dot_dimension_numbers<[1], [1], [0], [0], [0, 0, 1, 0], [], []>} : vector<8x8xbf16>, vector<8x8xbf16>, vector<8x8xf32> -> vector<8x8xf32>
    %cst_25 = arith.constant 0.353553385 : f32
    %62 = vector.broadcast %cst_25 : f32 to vector<8x8xf32>
    %63 = arith.mulf %61, %62 : vector<8x8xf32>
    %cst_26 = arith.constant -1.000000e+09 : f32
    %64 = vector.broadcast %cst_26 : f32 to vector<8x8xf32>
    %65 = arith.select %16, %63, %64 : vector<8x8xi1>, vector<8x8xf32>
    %cst_27 = arith.constant dense<0xFF800000> : vector<8xf32>
    %66 = vector.multi_reduction <maximumf>, %65, %cst_27 [1] : vector<8x8xf32> to vector<8xf32>
    %67 = vector.shape_cast %66 : vector<8xf32> to vector<8x1xf32>
    %68 = vector.broadcast %67 : vector<8x1xf32> to vector<8x8xf32>
    %69 = arith.subf %65, %68 : vector<8x8xf32>
    %70 = math.exp %69 : vector<8x8xf32>
    %cst_28 = arith.constant dense<0.000000e+00> : vector<8xf32>
    %71 = vector.multi_reduction <add>, %70, %cst_28 [1] : vector<8x8xf32> to vector<8xf32>
    %72 = vector.shape_cast %71 : vector<8xf32> to vector<8x1xf32>
    %73 = tpu.reciprocal %72 {approx = true} : vector<8x1xf32> -> vector<8x1xf32>
    %74 = vector.broadcast %73 : vector<8x1xf32> to vector<8x8xf32>
    %75 = arith.mulf %70, %74 : vector<8x8xf32>
    %76 = arith.truncf %75 : vector<8x8xf32> to vector<8x8xbf16>
    %77 = vector.extract_strided_slice %38 {offsets = [0, 8], sizes = [8, 8], strides = [1, 1]} : vector<8x128xbf16> to vector<8x8xbf16>
    %cst_29 = arith.constant dense<0.000000e+00> : vector<8x8xf32>
    %78 = tpu.matmul %76, %77, %cst_29 {dimension_numbers = #tpu.dot_dimension_numbers<[1], [0], [0], [1], [0, 0, 1, 1], [], []>} : vector<8x8xbf16>, vector<8x8xbf16>, vector<8x8xf32> -> vector<8x8xf32>
    %79 = vector.extract_strided_slice %36 {offsets = [0, 16], sizes = [8, 8], strides = [1, 1]} : vector<8x128xbf16> to vector<8x8xbf16>
    %80 = vector.extract_strided_slice %37 {offsets = [0, 16], sizes = [8, 8], strides = [1, 1]} : vector<8x128xbf16> to vector<8x8xbf16>
    %cst_30 = arith.constant dense<0.000000e+00> : vector<8x8xf32>
    %81 = tpu.matmul %79, %80, %cst_30 {dimension_numbers = #tpu.dot_dimension_numbers<[1], [1], [0], [0], [0, 0, 1, 0], [], []>} : vector<8x8xbf16>, vector<8x8xbf16>, vector<8x8xf32> -> vector<8x8xf32>
    %cst_31 = arith.constant 0.353553385 : f32
    %82 = vector.broadcast %cst_31 : f32 to vector<8x8xf32>
    %83 = arith.mulf %81, %82 : vector<8x8xf32>
    %cst_32 = arith.constant -1.000000e+09 : f32
    %84 = vector.broadcast %cst_32 : f32 to vector<8x8xf32>
    %85 = arith.select %16, %83, %84 : vector<8x8xi1>, vector<8x8xf32>
    %cst_33 = arith.constant dense<0xFF800000> : vector<8xf32>
    %86 = vector.multi_reduction <maximumf>, %85, %cst_33 [1] : vector<8x8xf32> to vector<8xf32>
    %87 = vector.shape_cast %86 : vector<8xf32> to vector<8x1xf32>
    %88 = vector.broadcast %87 : vector<8x1xf32> to vector<8x8xf32>
    %89 = arith.subf %85, %88 : vector<8x8xf32>
    %90 = math.exp %89 : vector<8x8xf32>
    %cst_34 = arith.constant dense<0.000000e+00> : vector<8xf32>
    %91 = vector.multi_reduction <add>, %90, %cst_34 [1] : vector<8x8xf32> to vector<8xf32>
    %92 = vector.shape_cast %91 : vector<8xf32> to vector<8x1xf32>
    %93 = tpu.reciprocal %92 {approx = true} : vector<8x1xf32> -> vector<8x1xf32>
    %94 = vector.broadcast %93 : vector<8x1xf32> to vector<8x8xf32>
    %95 = arith.mulf %90, %94 : vector<8x8xf32>
    %96 = arith.truncf %95 : vector<8x8xf32> to vector<8x8xbf16>
    %97 = vector.extract_strided_slice %38 {offsets = [0, 16], sizes = [8, 8], strides = [1, 1]} : vector<8x128xbf16> to vector<8x8xbf16>
    %cst_35 = arith.constant dense<0.000000e+00> : vector<8x8xf32>
    %98 = tpu.matmul %96, %97, %cst_35 {dimension_numbers = #tpu.dot_dimension_numbers<[1], [0], [0], [1], [0, 0, 1, 1], [], []>} : vector<8x8xbf16>, vector<8x8xbf16>, vector<8x8xf32> -> vector<8x8xf32>
    %99 = vector.extract_strided_slice %36 {offsets = [0, 24], sizes = [8, 8], strides = [1, 1]} : vector<8x128xbf16> to vector<8x8xbf16>
    %100 = vector.extract_strided_slice %37 {offsets = [0, 24], sizes = [8, 8], strides = [1, 1]} : vector<8x128xbf16> to vector<8x8xbf16>
    %cst_36 = arith.constant dense<0.000000e+00> : vector<8x8xf32>
    %101 = tpu.matmul %99, %100, %cst_36 {dimension_numbers = #tpu.dot_dimension_numbers<[1], [1], [0], [0], [0, 0, 1, 0], [], []>} : vector<8x8xbf16>, vector<8x8xbf16>, vector<8x8xf32> -> vector<8x8xf32>
    %cst_37 = arith.constant 0.353553385 : f32
    %102 = vector.broadcast %cst_37 : f32 to vector<8x8xf32>
    %103 = arith.mulf %101, %102 : vector<8x8xf32>
    %cst_38 = arith.constant -1.000000e+09 : f32
    %104 = vector.broadcast %cst_38 : f32 to vector<8x8xf32>
    %105 = arith.select %16, %103, %104 : vector<8x8xi1>, vector<8x8xf32>
    %cst_39 = arith.constant dense<0xFF800000> : vector<8xf32>
    %106 = vector.multi_reduction <maximumf>, %105, %cst_39 [1] : vector<8x8xf32> to vector<8xf32>
    %107 = vector.shape_cast %106 : vector<8xf32> to vector<8x1xf32>
    %108 = vector.broadcast %107 : vector<8x1xf32> to vector<8x8xf32>
    %109 = arith.subf %105, %108 : vector<8x8xf32>
    %110 = math.exp %109 : vector<8x8xf32>
    %cst_40 = arith.constant dense<0.000000e+00> : vector<8xf32>
    %111 = vector.multi_reduction <add>, %110, %cst_40 [1] : vector<8x8xf32> to vector<8xf32>
    %112 = vector.shape_cast %111 : vector<8xf32> to vector<8x1xf32>
    %113 = tpu.reciprocal %112 {approx = true} : vector<8x1xf32> -> vector<8x1xf32>
    %114 = vector.broadcast %113 : vector<8x1xf32> to vector<8x8xf32>
    %115 = arith.mulf %110, %114 : vector<8x8xf32>
    %116 = arith.truncf %115 : vector<8x8xf32> to vector<8x8xbf16>
    %117 = vector.extract_strided_slice %38 {offsets = [0, 24], sizes = [8, 8], strides = [1, 1]} : vector<8x128xbf16> to vector<8x8xbf16>
    %cst_41 = arith.constant dense<0.000000e+00> : vector<8x8xf32>
    %118 = tpu.matmul %116, %117, %cst_41 {dimension_numbers = #tpu.dot_dimension_numbers<[1], [0], [0], [1], [0, 0, 1, 1], [], []>} : vector<8x8xbf16>, vector<8x8xbf16>, vector<8x8xf32> -> vector<8x8xf32>
    %cst_42 = arith.constant 0.000000e+00 : f32
    %119 = vector.broadcast %cst_42 : f32 to vector<8x96xf32>
    %120 = tpu.concatenate %58, %78, %98, %118, %119 in 1 : vector<8x8xf32>, vector<8x8xf32>, vector<8x8xf32>, vector<8x8xf32>, vector<8x96xf32> -> vector<8x128xf32>
    %121 = arith.truncf %120 : vector<8x128xf32> to vector<8x128xbf16>
    %cst_43 = arith.constant dense<0.000000e+00> : vector<8x128xf32>
    %122 = tpu.matmul %121, %34, %cst_43 {dimension_numbers = #tpu.dot_dimension_numbers<[1], [0], [0], [1], [0, 0, 1, 1], [], []>} : vector<8x128xbf16>, vector<128x128xbf16>, vector<8x128xf32> -> vector<8x128xf32>
    %123 = vector.broadcast %35 : vector<1x128xf32> to vector<8x128xf32>
    %124 = arith.addf %122, %123 : vector<8x128xf32>
    %125 = arith.addf %3, %124 : vector<8x128xf32>
    %126 = vector.extract_strided_slice %7 {offsets = [4, 0], sizes = [1, 128], strides = [1, 1]} : vector<16x128xf32> to vector<1x128xf32>
    %127 = vector.extract_strided_slice %7 {offsets = [5, 0], sizes = [1, 128], strides = [1, 1]} : vector<16x128xf32> to vector<1x128xf32>
    %128 = tpu.iota {dimensions = array<i32: 1>} : vector<8x128xi32>
    %c32_i32 = arith.constant 32 : i32
    %129 = vector.broadcast %c32_i32 : i32 to vector<8x128xi32>
    %130 = arith.cmpi slt, %128, %129 : vector<8x128xi32>
    %cst_44 = arith.constant 0.000000e+00 : f32
    %131 = vector.broadcast %cst_44 : f32 to vector<8x128xf32>
    %132 = arith.select %130, %125, %131 : vector<8x128xi1>, vector<8x128xf32>
    %cst_45 = arith.constant dense<0.000000e+00> : vector<8xf32>
    %133 = vector.multi_reduction <add>, %132, %cst_45 [1] : vector<8x128xf32> to vector<8xf32>
    %134 = vector.shape_cast %133 : vector<8xf32> to vector<8x1xf32>
    %cst_46 = arith.constant 3.125000e-02 : f32
    %135 = vector.broadcast %cst_46 : f32 to vector<8x1xf32>
    %136 = arith.mulf %134, %135 : vector<8x1xf32>
    %137 = vector.broadcast %136 : vector<8x1xf32> to vector<8x128xf32>
    %138 = arith.subf %125, %137 : vector<8x128xf32>
    %cst_47 = arith.constant 0.000000e+00 : f32
    %139 = vector.broadcast %cst_47 : f32 to vector<8x128xf32>
    %140 = arith.select %130, %138, %139 : vector<8x128xi1>, vector<8x128xf32>
    %141 = arith.mulf %140, %140 : vector<8x128xf32>
    %cst_48 = arith.constant dense<0.000000e+00> : vector<8xf32>
    %142 = vector.multi_reduction <add>, %141, %cst_48 [1] : vector<8x128xf32> to vector<8xf32>
    %143 = vector.shape_cast %142 : vector<8xf32> to vector<8x1xf32>
    %cst_49 = arith.constant 3.125000e-02 : f32
    %144 = vector.broadcast %cst_49 : f32 to vector<8x1xf32>
    %145 = arith.mulf %143, %144 : vector<8x1xf32>
    %cst_50 = arith.constant 9.99999974E-6 : f32
    %146 = vector.broadcast %cst_50 : f32 to vector<8x1xf32>
    %147 = arith.addf %145, %146 : vector<8x1xf32>
    %148 = math.rsqrt %147 : vector<8x1xf32>
    %149 = vector.broadcast %148 : vector<8x1xf32> to vector<8x128xf32>
    %150 = arith.mulf %140, %149 : vector<8x128xf32>
    %151 = vector.broadcast %126 : vector<1x128xf32> to vector<8x128xf32>
    %152 = arith.mulf %150, %151 : vector<8x128xf32>
    %153 = vector.broadcast %127 : vector<1x128xf32> to vector<8x128xf32>
    %154 = arith.addf %152, %153 : vector<8x128xf32>
    %c0_51 = arith.constant 0 : index
    %c0_52 = arith.constant 0 : index
    %c0_53 = arith.constant 0 : index
    %155 = vector.load %arg4[%c0_51, %c0_52, %c0_53] : memref<1x1x8xf32, #tpu.memory_space<vmem>>, vector<1x1x8xf32>
    %156 = vector.shape_cast %155 : vector<1x1x8xf32> to vector<1x8xf32>
    %cst_54 = arith.constant 5.000000e-01 : f32
    %157 = vector.broadcast %cst_54 : f32 to vector<1x8xf32>
    %158 = arith.cmpf ogt, %156, %157 : vector<1x8xf32>
    %159 = arith.truncf %154 : vector<8x128xf32> to vector<8x128xbf16>
    %c0_55 = arith.constant 0 : index
    %c0_56 = arith.constant 0 : index
    %c0_57 = arith.constant 0 : index
    %160 = vector.load %arg8[%c0_55, %c0_56, %c0_57] : memref<1x128x128xbf16, #tpu.memory_space<vmem>>, vector<1x128x128xbf16>
    %161 = vector.shape_cast %160 : vector<1x128x128xbf16> to vector<128x128xbf16>
    %cst_58 = arith.constant dense<0.000000e+00> : vector<8x128xf32>
    %162 = tpu.matmul %159, %161, %cst_58 {dimension_numbers = #tpu.dot_dimension_numbers<[1], [0], [0], [1], [0, 0, 1, 1], [], []>} : vector<8x128xbf16>, vector<128x128xbf16>, vector<8x128xf32> -> vector<8x128xf32>
    %163 = vector.extract_strided_slice %7 {offsets = [6, 0], sizes = [1, 128], strides = [1, 1]} : vector<16x128xf32> to vector<1x128xf32>
    %164 = vector.broadcast %163 : vector<1x128xf32> to vector<8x128xf32>
    %165 = arith.addf %162, %164 : vector<8x128xf32>
    %166 = arith.truncf %5 : vector<8x128xf32> to vector<8x128xbf16>
    %c0_59 = arith.constant 0 : index
    %c0_60 = arith.constant 0 : index
    %c0_61 = arith.constant 0 : index
    %167 = vector.load %arg9[%c0_59, %c0_60, %c0_61] : memref<1x128x256xbf16, #tpu.memory_space<vmem>>, vector<1x128x256xbf16>
    %168 = vector.shape_cast %167 : vector<1x128x256xbf16> to vector<128x256xbf16>
    %cst_62 = arith.constant dense<0.000000e+00> : vector<8x256xf32>
    %169 = tpu.matmul %166, %168, %cst_62 {dimension_numbers = #tpu.dot_dimension_numbers<[1], [0], [0], [1], [0, 0, 1, 1], [], []>} : vector<8x128xbf16>, vector<128x256xbf16>, vector<8x256xf32> -> vector<8x256xf32>
    %170 = vector.extract_strided_slice %169 {offsets = [0, 0], sizes = [8, 128], strides = [1, 1]} : vector<8x256xf32> to vector<8x128xf32>
    %171 = vector.extract_strided_slice %7 {offsets = [7, 0], sizes = [1, 128], strides = [1, 1]} : vector<16x128xf32> to vector<1x128xf32>
    %172 = vector.broadcast %171 : vector<1x128xf32> to vector<8x128xf32>
    %173 = arith.addf %170, %172 : vector<8x128xf32>
    %174 = vector.extract_strided_slice %169 {offsets = [0, 128], sizes = [8, 128], strides = [1, 1]} : vector<8x256xf32> to vector<8x128xf32>
    %175 = vector.extract_strided_slice %7 {offsets = [8, 0], sizes = [1, 128], strides = [1, 1]} : vector<16x128xf32> to vector<1x128xf32>
    %176 = vector.broadcast %175 : vector<1x128xf32> to vector<8x128xf32>
    %177 = arith.addf %174, %176 : vector<8x128xf32>
    %c0_63 = arith.constant 0 : index
    %c0_64 = arith.constant 0 : index
    %c0_65 = arith.constant 0 : index
    %178 = vector.load %arg10[%c0_63, %c0_64, %c0_65] : memref<1x128x128xbf16, #tpu.memory_space<vmem>>, vector<1x128x128xbf16>
    %179 = vector.shape_cast %178 : vector<1x128x128xbf16> to vector<128x128xbf16>
    %180 = vector.extract_strided_slice %7 {offsets = [9, 0], sizes = [1, 128], strides = [1, 1]} : vector<16x128xf32> to vector<1x128xf32>
    %181 = arith.truncf %165 : vector<8x128xf32> to vector<8x128xbf16>
    %182 = arith.truncf %173 : vector<8x128xf32> to vector<8x128xbf16>
    %183 = arith.truncf %177 : vector<8x128xf32> to vector<8x128xbf16>
    %184 = vector.extract_strided_slice %181 {offsets = [0, 0], sizes = [8, 8], strides = [1, 1]} : vector<8x128xbf16> to vector<8x8xbf16>
    %185 = vector.extract_strided_slice %182 {offsets = [0, 0], sizes = [8, 8], strides = [1, 1]} : vector<8x128xbf16> to vector<8x8xbf16>
    %cst_66 = arith.constant dense<0.000000e+00> : vector<8x8xf32>
    %186 = tpu.matmul %184, %185, %cst_66 {dimension_numbers = #tpu.dot_dimension_numbers<[1], [1], [0], [0], [0, 0, 1, 0], [], []>} : vector<8x8xbf16>, vector<8x8xbf16>, vector<8x8xf32> -> vector<8x8xf32>
    %cst_67 = arith.constant 0.353553385 : f32
    %187 = vector.broadcast %cst_67 : f32 to vector<8x8xf32>
    %188 = arith.mulf %186, %187 : vector<8x8xf32>
    %cst_68 = arith.constant -1.000000e+09 : f32
    %189 = vector.shape_cast %158 : vector<1x8xi1> to vector<1x8xi1>
    %190 = vector.broadcast %189 : vector<1x8xi1> to vector<8x8xi1>
    %191 = vector.broadcast %cst_68 : f32 to vector<8x8xf32>
    %192 = arith.select %190, %188, %191 : vector<8x8xi1>, vector<8x8xf32>
    %cst_69 = arith.constant dense<0xFF800000> : vector<8xf32>
    %193 = vector.multi_reduction <maximumf>, %192, %cst_69 [1] : vector<8x8xf32> to vector<8xf32>
    %194 = vector.shape_cast %193 : vector<8xf32> to vector<8x1xf32>
    %195 = vector.broadcast %194 : vector<8x1xf32> to vector<8x8xf32>
    %196 = arith.subf %192, %195 : vector<8x8xf32>
    %197 = math.exp %196 : vector<8x8xf32>
    %cst_70 = arith.constant dense<0.000000e+00> : vector<8xf32>
    %198 = vector.multi_reduction <add>, %197, %cst_70 [1] : vector<8x8xf32> to vector<8xf32>
    %199 = vector.shape_cast %198 : vector<8xf32> to vector<8x1xf32>
    %200 = tpu.reciprocal %199 {approx = true} : vector<8x1xf32> -> vector<8x1xf32>
    %201 = vector.broadcast %200 : vector<8x1xf32> to vector<8x8xf32>
    %202 = arith.mulf %197, %201 : vector<8x8xf32>
    %203 = arith.truncf %202 : vector<8x8xf32> to vector<8x8xbf16>
    %204 = vector.extract_strided_slice %183 {offsets = [0, 0], sizes = [8, 8], strides = [1, 1]} : vector<8x128xbf16> to vector<8x8xbf16>
    %cst_71 = arith.constant dense<0.000000e+00> : vector<8x8xf32>
    %205 = tpu.matmul %203, %204, %cst_71 {dimension_numbers = #tpu.dot_dimension_numbers<[1], [0], [0], [1], [0, 0, 1, 1], [], []>} : vector<8x8xbf16>, vector<8x8xbf16>, vector<8x8xf32> -> vector<8x8xf32>
    %206 = vector.extract_strided_slice %181 {offsets = [0, 8], sizes = [8, 8], strides = [1, 1]} : vector<8x128xbf16> to vector<8x8xbf16>
    %207 = vector.extract_strided_slice %182 {offsets = [0, 8], sizes = [8, 8], strides = [1, 1]} : vector<8x128xbf16> to vector<8x8xbf16>
    %cst_72 = arith.constant dense<0.000000e+00> : vector<8x8xf32>
    %208 = tpu.matmul %206, %207, %cst_72 {dimension_numbers = #tpu.dot_dimension_numbers<[1], [1], [0], [0], [0, 0, 1, 0], [], []>} : vector<8x8xbf16>, vector<8x8xbf16>, vector<8x8xf32> -> vector<8x8xf32>
    %cst_73 = arith.constant 0.353553385 : f32
    %209 = vector.broadcast %cst_73 : f32 to vector<8x8xf32>
    %210 = arith.mulf %208, %209 : vector<8x8xf32>
    %cst_74 = arith.constant -1.000000e+09 : f32
    %211 = vector.shape_cast %158 : vector<1x8xi1> to vector<1x8xi1>
    %212 = vector.broadcast %211 : vector<1x8xi1> to vector<8x8xi1>
    %213 = vector.broadcast %cst_74 : f32 to vector<8x8xf32>
    %214 = arith.select %212, %210, %213 : vector<8x8xi1>, vector<8x8xf32>
    %cst_75 = arith.constant dense<0xFF800000> : vector<8xf32>
    %215 = vector.multi_reduction <maximumf>, %214, %cst_75 [1] : vector<8x8xf32> to vector<8xf32>
    %216 = vector.shape_cast %215 : vector<8xf32> to vector<8x1xf32>
    %217 = vector.broadcast %216 : vector<8x1xf32> to vector<8x8xf32>
    %218 = arith.subf %214, %217 : vector<8x8xf32>
    %219 = math.exp %218 : vector<8x8xf32>
    %cst_76 = arith.constant dense<0.000000e+00> : vector<8xf32>
    %220 = vector.multi_reduction <add>, %219, %cst_76 [1] : vector<8x8xf32> to vector<8xf32>
    %221 = vector.shape_cast %220 : vector<8xf32> to vector<8x1xf32>
    %222 = tpu.reciprocal %221 {approx = true} : vector<8x1xf32> -> vector<8x1xf32>
    %223 = vector.broadcast %222 : vector<8x1xf32> to vector<8x8xf32>
    %224 = arith.mulf %219, %223 : vector<8x8xf32>
    %225 = arith.truncf %224 : vector<8x8xf32> to vector<8x8xbf16>
    %226 = vector.extract_strided_slice %183 {offsets = [0, 8], sizes = [8, 8], strides = [1, 1]} : vector<8x128xbf16> to vector<8x8xbf16>
    %cst_77 = arith.constant dense<0.000000e+00> : vector<8x8xf32>
    %227 = tpu.matmul %225, %226, %cst_77 {dimension_numbers = #tpu.dot_dimension_numbers<[1], [0], [0], [1], [0, 0, 1, 1], [], []>} : vector<8x8xbf16>, vector<8x8xbf16>, vector<8x8xf32> -> vector<8x8xf32>
    %228 = vector.extract_strided_slice %181 {offsets = [0, 16], sizes = [8, 8], strides = [1, 1]} : vector<8x128xbf16> to vector<8x8xbf16>
    %229 = vector.extract_strided_slice %182 {offsets = [0, 16], sizes = [8, 8], strides = [1, 1]} : vector<8x128xbf16> to vector<8x8xbf16>
    %cst_78 = arith.constant dense<0.000000e+00> : vector<8x8xf32>
    %230 = tpu.matmul %228, %229, %cst_78 {dimension_numbers = #tpu.dot_dimension_numbers<[1], [1], [0], [0], [0, 0, 1, 0], [], []>} : vector<8x8xbf16>, vector<8x8xbf16>, vector<8x8xf32> -> vector<8x8xf32>
    %cst_79 = arith.constant 0.353553385 : f32
    %231 = vector.broadcast %cst_79 : f32 to vector<8x8xf32>
    %232 = arith.mulf %230, %231 : vector<8x8xf32>
    %cst_80 = arith.constant -1.000000e+09 : f32
    %233 = vector.shape_cast %158 : vector<1x8xi1> to vector<1x8xi1>
    %234 = vector.broadcast %233 : vector<1x8xi1> to vector<8x8xi1>
    %235 = vector.broadcast %cst_80 : f32 to vector<8x8xf32>
    %236 = arith.select %234, %232, %235 : vector<8x8xi1>, vector<8x8xf32>
    %cst_81 = arith.constant dense<0xFF800000> : vector<8xf32>
    %237 = vector.multi_reduction <maximumf>, %236, %cst_81 [1] : vector<8x8xf32> to vector<8xf32>
    %238 = vector.shape_cast %237 : vector<8xf32> to vector<8x1xf32>
    %239 = vector.broadcast %238 : vector<8x1xf32> to vector<8x8xf32>
    %240 = arith.subf %236, %239 : vector<8x8xf32>
    %241 = math.exp %240 : vector<8x8xf32>
    %cst_82 = arith.constant dense<0.000000e+00> : vector<8xf32>
    %242 = vector.multi_reduction <add>, %241, %cst_82 [1] : vector<8x8xf32> to vector<8xf32>
    %243 = vector.shape_cast %242 : vector<8xf32> to vector<8x1xf32>
    %244 = tpu.reciprocal %243 {approx = true} : vector<8x1xf32> -> vector<8x1xf32>
    %245 = vector.broadcast %244 : vector<8x1xf32> to vector<8x8xf32>
    %246 = arith.mulf %241, %245 : vector<8x8xf32>
    %247 = arith.truncf %246 : vector<8x8xf32> to vector<8x8xbf16>
    %248 = vector.extract_strided_slice %183 {offsets = [0, 16], sizes = [8, 8], strides = [1, 1]} : vector<8x128xbf16> to vector<8x8xbf16>
    %cst_83 = arith.constant dense<0.000000e+00> : vector<8x8xf32>
    %249 = tpu.matmul %247, %248, %cst_83 {dimension_numbers = #tpu.dot_dimension_numbers<[1], [0], [0], [1], [0, 0, 1, 1], [], []>} : vector<8x8xbf16>, vector<8x8xbf16>, vector<8x8xf32> -> vector<8x8xf32>
    %250 = vector.extract_strided_slice %181 {offsets = [0, 24], sizes = [8, 8], strides = [1, 1]} : vector<8x128xbf16> to vector<8x8xbf16>
    %251 = vector.extract_strided_slice %182 {offsets = [0, 24], sizes = [8, 8], strides = [1, 1]} : vector<8x128xbf16> to vector<8x8xbf16>
    %cst_84 = arith.constant dense<0.000000e+00> : vector<8x8xf32>
    %252 = tpu.matmul %250, %251, %cst_84 {dimension_numbers = #tpu.dot_dimension_numbers<[1], [1], [0], [0], [0, 0, 1, 0], [], []>} : vector<8x8xbf16>, vector<8x8xbf16>, vector<8x8xf32> -> vector<8x8xf32>
    %cst_85 = arith.constant 0.353553385 : f32
    %253 = vector.broadcast %cst_85 : f32 to vector<8x8xf32>
    %254 = arith.mulf %252, %253 : vector<8x8xf32>
    %cst_86 = arith.constant -1.000000e+09 : f32
    %255 = vector.shape_cast %158 : vector<1x8xi1> to vector<1x8xi1>
    %256 = vector.broadcast %255 : vector<1x8xi1> to vector<8x8xi1>
    %257 = vector.broadcast %cst_86 : f32 to vector<8x8xf32>
    %258 = arith.select %256, %254, %257 : vector<8x8xi1>, vector<8x8xf32>
    %cst_87 = arith.constant dense<0xFF800000> : vector<8xf32>
    %259 = vector.multi_reduction <maximumf>, %258, %cst_87 [1] : vector<8x8xf32> to vector<8xf32>
    %260 = vector.shape_cast %259 : vector<8xf32> to vector<8x1xf32>
    %261 = vector.broadcast %260 : vector<8x1xf32> to vector<8x8xf32>
    %262 = arith.subf %258, %261 : vector<8x8xf32>
    %263 = math.exp %262 : vector<8x8xf32>
    %cst_88 = arith.constant dense<0.000000e+00> : vector<8xf32>
    %264 = vector.multi_reduction <add>, %263, %cst_88 [1] : vector<8x8xf32> to vector<8xf32>
    %265 = vector.shape_cast %264 : vector<8xf32> to vector<8x1xf32>
    %266 = tpu.reciprocal %265 {approx = true} : vector<8x1xf32> -> vector<8x1xf32>
    %267 = vector.broadcast %266 : vector<8x1xf32> to vector<8x8xf32>
    %268 = arith.mulf %263, %267 : vector<8x8xf32>
    %269 = arith.truncf %268 : vector<8x8xf32> to vector<8x8xbf16>
    %270 = vector.extract_strided_slice %183 {offsets = [0, 24], sizes = [8, 8], strides = [1, 1]} : vector<8x128xbf16> to vector<8x8xbf16>
    %cst_89 = arith.constant dense<0.000000e+00> : vector<8x8xf32>
    %271 = tpu.matmul %269, %270, %cst_89 {dimension_numbers = #tpu.dot_dimension_numbers<[1], [0], [0], [1], [0, 0, 1, 1], [], []>} : vector<8x8xbf16>, vector<8x8xbf16>, vector<8x8xf32> -> vector<8x8xf32>
    %cst_90 = arith.constant 0.000000e+00 : f32
    %272 = vector.broadcast %cst_90 : f32 to vector<8x96xf32>
    %273 = tpu.concatenate %205, %227, %249, %271, %272 in 1 : vector<8x8xf32>, vector<8x8xf32>, vector<8x8xf32>, vector<8x8xf32>, vector<8x96xf32> -> vector<8x128xf32>
    %274 = arith.truncf %273 : vector<8x128xf32> to vector<8x128xbf16>
    %cst_91 = arith.constant dense<0.000000e+00> : vector<8x128xf32>
    %275 = tpu.matmul %274, %179, %cst_91 {dimension_numbers = #tpu.dot_dimension_numbers<[1], [0], [0], [1], [0, 0, 1, 1], [], []>} : vector<8x128xbf16>, vector<128x128xbf16>, vector<8x128xf32> -> vector<8x128xf32>
    %276 = vector.broadcast %180 : vector<1x128xf32> to vector<8x128xf32>
    %277 = arith.addf %275, %276 : vector<8x128xf32>
    %278 = arith.addf %154, %277 : vector<8x128xf32>
    %279 = vector.extract_strided_slice %7 {offsets = [10, 0], sizes = [1, 128], strides = [1, 1]} : vector<16x128xf32> to vector<1x128xf32>
    %280 = vector.extract_strided_slice %7 {offsets = [11, 0], sizes = [1, 128], strides = [1, 1]} : vector<16x128xf32> to vector<1x128xf32>
    %281 = tpu.iota {dimensions = array<i32: 1>} : vector<8x128xi32>
    %c32_i32_92 = arith.constant 32 : i32
    %282 = vector.broadcast %c32_i32_92 : i32 to vector<8x128xi32>
    %283 = arith.cmpi slt, %281, %282 : vector<8x128xi32>
    %cst_93 = arith.constant 0.000000e+00 : f32
    %284 = vector.broadcast %cst_93 : f32 to vector<8x128xf32>
    %285 = arith.select %283, %278, %284 : vector<8x128xi1>, vector<8x128xf32>
    %cst_94 = arith.constant dense<0.000000e+00> : vector<8xf32>
    %286 = vector.multi_reduction <add>, %285, %cst_94 [1] : vector<8x128xf32> to vector<8xf32>
    %287 = vector.shape_cast %286 : vector<8xf32> to vector<8x1xf32>
    %cst_95 = arith.constant 3.125000e-02 : f32
    %288 = vector.broadcast %cst_95 : f32 to vector<8x1xf32>
    %289 = arith.mulf %287, %288 : vector<8x1xf32>
    %290 = vector.broadcast %289 : vector<8x1xf32> to vector<8x128xf32>
    %291 = arith.subf %278, %290 : vector<8x128xf32>
    %cst_96 = arith.constant 0.000000e+00 : f32
    %292 = vector.broadcast %cst_96 : f32 to vector<8x128xf32>
    %293 = arith.select %283, %291, %292 : vector<8x128xi1>, vector<8x128xf32>
    %294 = arith.mulf %293, %293 : vector<8x128xf32>
    %cst_97 = arith.constant dense<0.000000e+00> : vector<8xf32>
    %295 = vector.multi_reduction <add>, %294, %cst_97 [1] : vector<8x128xf32> to vector<8xf32>
    %296 = vector.shape_cast %295 : vector<8xf32> to vector<8x1xf32>
    %cst_98 = arith.constant 3.125000e-02 : f32
    %297 = vector.broadcast %cst_98 : f32 to vector<8x1xf32>
    %298 = arith.mulf %296, %297 : vector<8x1xf32>
    %cst_99 = arith.constant 9.99999974E-6 : f32
    %299 = vector.broadcast %cst_99 : f32 to vector<8x1xf32>
    %300 = arith.addf %298, %299 : vector<8x1xf32>
    %301 = math.rsqrt %300 : vector<8x1xf32>
    %302 = vector.broadcast %301 : vector<8x1xf32> to vector<8x128xf32>
    %303 = arith.mulf %293, %302 : vector<8x128xf32>
    %304 = vector.broadcast %279 : vector<1x128xf32> to vector<8x128xf32>
    %305 = arith.mulf %303, %304 : vector<8x128xf32>
    %306 = vector.broadcast %280 : vector<1x128xf32> to vector<8x128xf32>
    %307 = arith.addf %305, %306 : vector<8x128xf32>
    %308 = arith.truncf %307 : vector<8x128xf32> to vector<8x128xbf16>
    %c0_100 = arith.constant 0 : index
    %c0_101 = arith.constant 0 : index
    %c0_102 = arith.constant 0 : index
    %309 = vector.load %arg11[%c0_100, %c0_101, %c0_102] : memref<1x128x128xbf16, #tpu.memory_space<vmem>>, vector<1x128x128xbf16>
    %310 = vector.shape_cast %309 : vector<1x128x128xbf16> to vector<128x128xbf16>
    %cst_103 = arith.constant dense<0.000000e+00> : vector<8x128xf32>
    %311 = tpu.matmul %308, %310, %cst_103 {dimension_numbers = #tpu.dot_dimension_numbers<[1], [0], [0], [1], [0, 0, 1, 1], [], []>} : vector<8x128xbf16>, vector<128x128xbf16>, vector<8x128xf32> -> vector<8x128xf32>
    %312 = vector.extract_strided_slice %7 {offsets = [12, 0], sizes = [1, 128], strides = [1, 1]} : vector<16x128xf32> to vector<1x128xf32>
    %313 = vector.broadcast %312 : vector<1x128xf32> to vector<8x128xf32>
    %314 = arith.addf %311, %313 : vector<8x128xf32>
    %cst_104 = arith.constant 0.000000e+00 : f32
    %315 = vector.broadcast %cst_104 : f32 to vector<8x128xf32>
    %316 = arith.maximumf %314, %315 : vector<8x128xf32>
    %317 = arith.truncf %316 : vector<8x128xf32> to vector<8x128xbf16>
    %c0_105 = arith.constant 0 : index
    %c0_106 = arith.constant 0 : index
    %c0_107 = arith.constant 0 : index
    %318 = vector.load %arg12[%c0_105, %c0_106, %c0_107] : memref<1x128x128xbf16, #tpu.memory_space<vmem>>, vector<1x128x128xbf16>
    %319 = vector.shape_cast %318 : vector<1x128x128xbf16> to vector<128x128xbf16>
    %cst_108 = arith.constant dense<0.000000e+00> : vector<8x128xf32>
    %320 = tpu.matmul %317, %319, %cst_108 {dimension_numbers = #tpu.dot_dimension_numbers<[1], [0], [0], [1], [0, 0, 1, 1], [], []>} : vector<8x128xbf16>, vector<128x128xbf16>, vector<8x128xf32> -> vector<8x128xf32>
    %321 = vector.extract_strided_slice %7 {offsets = [13, 0], sizes = [1, 128], strides = [1, 1]} : vector<16x128xf32> to vector<1x128xf32>
    %322 = vector.broadcast %321 : vector<1x128xf32> to vector<8x128xf32>
    %323 = arith.addf %320, %322 : vector<8x128xf32>
    %324 = arith.addf %307, %323 : vector<8x128xf32>
    %325 = vector.extract_strided_slice %7 {offsets = [14, 0], sizes = [1, 128], strides = [1, 1]} : vector<16x128xf32> to vector<1x128xf32>
    %326 = vector.extract_strided_slice %7 {offsets = [15, 0], sizes = [1, 128], strides = [1, 1]} : vector<16x128xf32> to vector<1x128xf32>
    %327 = tpu.iota {dimensions = array<i32: 1>} : vector<8x128xi32>
    %c32_i32_109 = arith.constant 32 : i32
    %328 = vector.broadcast %c32_i32_109 : i32 to vector<8x128xi32>
    %329 = arith.cmpi slt, %327, %328 : vector<8x128xi32>
    %cst_110 = arith.constant 0.000000e+00 : f32
    %330 = vector.broadcast %cst_110 : f32 to vector<8x128xf32>
    %331 = arith.select %329, %324, %330 : vector<8x128xi1>, vector<8x128xf32>
    %cst_111 = arith.constant dense<0.000000e+00> : vector<8xf32>
    %332 = vector.multi_reduction <add>, %331, %cst_111 [1] : vector<8x128xf32> to vector<8xf32>
    %333 = vector.shape_cast %332 : vector<8xf32> to vector<8x1xf32>
    %cst_112 = arith.constant 3.125000e-02 : f32
    %334 = vector.broadcast %cst_112 : f32 to vector<8x1xf32>
    %335 = arith.mulf %333, %334 : vector<8x1xf32>
    %336 = vector.broadcast %335 : vector<8x1xf32> to vector<8x128xf32>
    %337 = arith.subf %324, %336 : vector<8x128xf32>
    %cst_113 = arith.constant 0.000000e+00 : f32
    %338 = vector.broadcast %cst_113 : f32 to vector<8x128xf32>
    %339 = arith.select %329, %337, %338 : vector<8x128xi1>, vector<8x128xf32>
    %340 = arith.mulf %339, %339 : vector<8x128xf32>
    %cst_114 = arith.constant dense<0.000000e+00> : vector<8xf32>
    %341 = vector.multi_reduction <add>, %340, %cst_114 [1] : vector<8x128xf32> to vector<8xf32>
    %342 = vector.shape_cast %341 : vector<8xf32> to vector<8x1xf32>
    %cst_115 = arith.constant 3.125000e-02 : f32
    %343 = vector.broadcast %cst_115 : f32 to vector<8x1xf32>
    %344 = arith.mulf %342, %343 : vector<8x1xf32>
    %cst_116 = arith.constant 9.99999974E-6 : f32
    %345 = vector.broadcast %cst_116 : f32 to vector<8x1xf32>
    %346 = arith.addf %344, %345 : vector<8x1xf32>
    %347 = math.rsqrt %346 : vector<8x1xf32>
    %348 = vector.broadcast %347 : vector<8x1xf32> to vector<8x128xf32>
    %349 = arith.mulf %339, %348 : vector<8x128xf32>
    %350 = vector.broadcast %325 : vector<1x128xf32> to vector<8x128xf32>
    %351 = arith.mulf %349, %350 : vector<8x128xf32>
    %352 = vector.broadcast %326 : vector<1x128xf32> to vector<8x128xf32>
    %353 = arith.addf %351, %352 : vector<8x128xf32>
    %c0_117 = arith.constant 0 : index
    %c0_118 = arith.constant 0 : index
    %354 = vector.load %arg17[%c0_117, %c0_118] : memref<8x128xf32, #tpu.memory_space<vmem>>, vector<8x128xf32>
    tpu.vector_store %arg17[%c0_117, %c0_118], %353 {strides = array<i32>} : memref<8x128xf32, #tpu.memory_space<vmem>>, vector<8x128xf32>,
    %c1_i32 = arith.constant 1 : i32
    %355 = arith.cmpi eq, %arg1, %c1_i32 : i32
    %356 = arith.extui %355 : i1 to i32
    %c0_i32_119 = arith.constant 0 : i32
    %357 = arith.cmpi ne, %356, %c0_i32_119 : i32
    scf.if %357 {
      %358 = arith.truncf %353 : vector<8x128xf32> to vector<8x128xbf16>
      %c0_120 = arith.constant 0 : index
      %c0_121 = arith.constant 0 : index
      %359 = vector.load %arg14[%c0_120, %c0_121] : memref<128x128xbf16, #tpu.memory_space<vmem>>, vector<128x128xbf16>
      %cst_122 = arith.constant dense<0.000000e+00> : vector<8x128xf32>
      %360 = tpu.matmul %358, %359, %cst_122 {dimension_numbers = #tpu.dot_dimension_numbers<[1], [0], [0], [1], [0, 0, 1, 1], [], []>} : vector<8x128xbf16>, vector<128x128xbf16>, vector<8x128xf32> -> vector<8x128xf32>
      %c0_123 = arith.constant 0 : index
      %c0_124 = arith.constant 0 : index
      %361 = vector.load %arg15[%c0_123, %c0_124] : memref<1x128xf32, #tpu.memory_space<vmem>>, vector<1x128xf32>
      %362 = vector.broadcast %361 : vector<1x128xf32> to vector<8x128xf32>
      %363 = arith.addf %360, %362 : vector<8x128xf32>
      %c0_125 = arith.constant 0 : index
      %c0_126 = arith.constant 0 : index
      %c0_127 = arith.constant 0 : index
      %364 = vector.load %arg16[%c0_125, %c0_126, %c0_127] : memref<1x8x128xf32, #tpu.memory_space<vmem>>, vector<1x8x128xf32>
      %365 = vector.shape_cast %364 : vector<1x8x128xf32> to vector<8x128xf32>
      %366 = vector.shape_cast %363 : vector<8x128xf32> to vector<1x8x128xf32>
      tpu.vector_store %arg16[%c0_125, %c0_126, %c0_127], %366 {strides = array<i32>} : memref<1x8x128xf32, #tpu.memory_space<vmem>>, vector<1x8x128xf32>,
    } else {
    }
    return
  }
  func.func @transform_0(%arg0: i32, %arg1: i32) -> (i32, i32, i32) {
    %c0_i32 = arith.constant 0 : i32
    %c0_i32_0 = arith.constant 0 : i32
    %c0_i32_1 = arith.constant 0 : i32
    return %arg0, %c0_i32, %c0_i32_0 : i32, i32, i32
  }
  func.func @transform_1(%arg0: i32, %arg1: i32) -> (i32, i32, i32) {
    %c0_i32 = arith.constant 0 : i32
    %c0_i32_0 = arith.constant 0 : i32
    %c0_i32_1 = arith.constant 0 : i32
    return %arg0, %c0_i32, %c0_i32_0 : i32, i32, i32
  }
  func.func @transform_2(%arg0: i32, %arg1: i32) -> (i32, i32, i32) {
    %c0_i32 = arith.constant 0 : i32
    %c0_i32_0 = arith.constant 0 : i32
    %c0_i32_1 = arith.constant 0 : i32
    return %arg0, %c0_i32, %c0_i32_0 : i32, i32, i32
  }
  func.func @transform_3(%arg0: i32, %arg1: i32) -> (i32, i32, i32) {
    %c0_i32 = arith.constant 0 : i32
    %c0_i32_0 = arith.constant 0 : i32
    %c0_i32_1 = arith.constant 0 : i32
    return %arg0, %c0_i32, %c0_i32_0 : i32, i32, i32
  }
  func.func @transform_4(%arg0: i32, %arg1: i32) -> (i32, i32, i32) {
    %c0_i32 = arith.constant 0 : i32
    %c0_i32_0 = arith.constant 0 : i32
    %c0_i32_1 = arith.constant 0 : i32
    return %arg1, %c0_i32, %c0_i32_0 : i32, i32, i32
  }
  func.func @transform_5(%arg0: i32, %arg1: i32) -> (i32, i32, i32) {
    %c0_i32 = arith.constant 0 : i32
    %c0_i32_0 = arith.constant 0 : i32
    %c0_i32_1 = arith.constant 0 : i32
    return %arg1, %c0_i32, %c0_i32_0 : i32, i32, i32
  }
  func.func @transform_6(%arg0: i32, %arg1: i32) -> (i32, i32, i32) {
    %c0_i32 = arith.constant 0 : i32
    %c0_i32_0 = arith.constant 0 : i32
    %c0_i32_1 = arith.constant 0 : i32
    return %arg1, %c0_i32, %c0_i32_0 : i32, i32, i32
  }
  func.func @transform_7(%arg0: i32, %arg1: i32) -> (i32, i32, i32) {
    %c0_i32 = arith.constant 0 : i32
    %c0_i32_0 = arith.constant 0 : i32
    %c0_i32_1 = arith.constant 0 : i32
    return %arg1, %c0_i32, %c0_i32_0 : i32, i32, i32
  }
  func.func @transform_8(%arg0: i32, %arg1: i32) -> (i32, i32, i32) {
    %c0_i32 = arith.constant 0 : i32
    %c0_i32_0 = arith.constant 0 : i32
    %c0_i32_1 = arith.constant 0 : i32
    return %arg1, %c0_i32, %c0_i32_0 : i32, i32, i32
  }
  func.func @transform_9(%arg0: i32, %arg1: i32) -> (i32, i32, i32) {
    %c0_i32 = arith.constant 0 : i32
    %c0_i32_0 = arith.constant 0 : i32
    %c0_i32_1 = arith.constant 0 : i32
    return %arg1, %c0_i32, %c0_i32_0 : i32, i32, i32
  }
  func.func @transform_10(%arg0: i32, %arg1: i32) -> (i32, i32, i32) {
    %c0_i32 = arith.constant 0 : i32
    %c0_i32_0 = arith.constant 0 : i32
    %c0_i32_1 = arith.constant 0 : i32
    return %arg1, %c0_i32, %c0_i32_0 : i32, i32, i32
  }
  func.func @transform_11(%arg0: i32, %arg1: i32) -> (i32, i32, i32) {
    %c0_i32 = arith.constant 0 : i32
    %c0_i32_0 = arith.constant 0 : i32
    %c0_i32_1 = arith.constant 0 : i32
    return %arg1, %c0_i32, %c0_i32_0 : i32, i32, i32
  }
  func.func @transform_12(%arg0: i32, %arg1: i32) -> (i32, i32) {
    %c0_i32 = arith.constant 0 : i32
    %c0_i32_0 = arith.constant 0 : i32
    %c0_i32_1 = arith.constant 0 : i32
    return %c0_i32, %c0_i32_0 : i32, i32
  }
  func.func @transform_13(%arg0: i32, %arg1: i32) -> (i32, i32) {
    %c0_i32 = arith.constant 0 : i32
    %c0_i32_0 = arith.constant 0 : i32
    %c0_i32_1 = arith.constant 0 : i32
    return %c0_i32, %c0_i32_0 : i32, i32
  }
  func.func @transform_14(%arg0: i32, %arg1: i32) -> (i32, i32, i32) {
    %c0_i32 = arith.constant 0 : i32
    %c0_i32_0 = arith.constant 0 : i32
    %c0_i32_1 = arith.constant 0 : i32
    return %arg0, %c0_i32, %c0_i32_0 : i32, i32, i32
  }
}

</mosaic_0001>

<llo_original>
// kernel: transformer_forward.2
$region0: #{transformer_forward.2}
  #allocation0 [shape = 'u32[]', space=smem, size = 0x4, offset = 0x4, fixed_abs, tag = 'smem constant byte address 0x4 - core index']
  #allocation1 [shape = 'u32[144,128]{1,0:T(1,128)}', space=vmem, size = 0x12000, scoped, tag = 'internal scratch']
  #allocation2 [shape = 'f32[8,128]{1,0:T(8,128)}', space=vmem, size = 0x1000, scoped, tag = 'scratch operand']
  %s0 = inlined_call_operand.vmem [shape: f32[2,8,128], index: 0, kind: input, shape index: {}]
  %s1 = inlined_call_operand.vmem [shape: f32[2,1,8], index: 1, kind: input, shape index: {}]
  %s2 = inlined_call_operand.vmem [shape: bf16[2,128,384], index: 2, kind: input, shape index: {}]
  %s3 = inlined_call_operand.hbm [shape: bf16[2,128,128], index: 3, kind: input, shape index: {}]
  %s4 = inlined_call_operand.hbm [shape: bf16[2,128,128], index: 4, kind: input, shape index: {}]
  %s5 = inlined_call_operand.hbm [shape: bf16[2,128,128], index: 5, kind: input, shape index: {}]
  %s6 = inlined_call_operand.vmem [shape: f32[2,16,128], index: 6, kind: input, shape index: {}]
  %s7 = inlined_call_operand.vmem [shape: f32[2,8,128], index: 7, kind: output, shape index: {}]
  %s8 = sld [smem:[#allocation0]]
  $region81: #{transformer_forward.2} parent=0
    _
  %s10 = ssub.s32 1, %s8
  %s11 = scalar_select 0, %s10, %s8
  $region1: #{transformer_forward.2} parent=0
    #allocation3 [shape = 'u8[65536]{0}', space=vmem, size = 0x10000, scoped, tag = 'input window, operand 3']
    #allocation4 [shape = 's32[2]{0}', space=sflag, size = 0x8, scoped, tag = 'scoped memory for transformer_forward.2']
    #allocation5 [shape = 'u8[65536]{0}', space=vmem, size = 0x10000, scoped, tag = 'input window, operand 4']
    #allocation6 [shape = 's32[2]{0}', space=sflag, size = 0x8, scoped, tag = 'scoped memory for transformer_forward.2']
    #allocation7 [shape = 'u8[65536]{0}', space=vmem, size = 0x10000, scoped, tag = 'input window, operand 5']
    %12 = vsyncpa [#allocation4], 0
    %s13 = scalar_lea.sflag [#allocation4], 1
    %14 = vsyncpa %s13, 0
    %15 = vsyncpa [#allocation6], 0
    %s16 = scalar_lea.sflag [#allocation6], 1
    %17 = vsyncpa %s16, 0
    loop: start=0, step=1, limit=6
    $region2: #{transformer_forward.2} parent=1 // loop_pre_header
      _
    $region3: #{transformer_forward.2} parent=1 // loop_header
      %s19 = sphi 0, %s23
      %p20 = scmp.ge.s32.totalorder %s19, 6
      %s26 = sphi 0, %s38
      %s27 = sphi 0, %s34
      %s28 = sphi 0, %s26
      %s29 = sphi 0, %s27
      %s30 = sphi 0, %s28
      %s31 = sphi 0, %s29
      %s41 = sphi 0, %s43
      %s44 = sphi 0, %s41
      %s45 = sphi 0, %s44
      %s61 = sphi 0, %s45
      %s67 = sphi 0, %s69
      %s70 = sphi 0, %s67
      %s71 = sphi 0, %s70
      %s87 = sphi 0, %s71
      %s93 = sphi 0, %s95
      %s96 = sphi 0, %s93
      %s97 = sphi 0, %s96
      %s113 = sphi 0, %s97
      %s119 = sphi 0, %s121
      %s122 = sphi 0, %s119
      %s123 = sphi 0, %s122
      %s139 = sphi 0, %s123
      %s145 = sphi 0, %s147
      %s148 = sphi 0, %s145
      %s149 = sphi 0, %s148
      %s165 = sphi 0, %s149
      %s171 = sphi 0, %s173
      %s174 = sphi 0, %s171
      %s175 = sphi 0, %s174
      %s191 = sphi 0, %s175
      %s197 = sphi 0, %s199
      %s200 = sphi 0, %s197
      %s201 = sphi 0, %s200
      %s217 = sphi 0, %s201
      %s223 = sphi 0, %s225
      %s226 = sphi 0, %s223
      %s227 = sphi 0, %s226
      %s243 = sphi 0, %s227
    $region4: #{transformer_forward.2} parent=1 // loop_header_branch
      %22 = sbr.rel (%p20) target = $region8
    $region5: #{transformer_forward.2} parent=1 // loop_body
      %s24 = ssub.s32 %s19, 1
      %s25 = ssub.s32 %s19, 2
      %s32 = sadd.s32 1, %s27
      %p33 = scmp.ge.s32.totalorder %s32, 2
      %s34 = scalar_select %p33, 0, %s32
      %s35 = sadd.s32 1, %s26
      %s36 = scalar_select %p33, %s35, %s26
      %p37 = scmp.ge.s32.totalorder %s36, 2
      %s38 = scalar_select %p37, 0, %s36
      %s39 = ssub.s32 %s26, %s38
      %p40 = scmp.eq.s32.totalorder %s39, 0
      %s42 = sadd.s32 %s41, 1
      %s43 = scalar_select %p40, %s41, %s42
      %p46 = pneg %p40
      %p47 = scmp.eq.s32.totalorder %s19, 3
      %p48 = por %p46, %p47
      %p49 = scmp.ne.s32.totalorder %s41, %s44
      %p50 = scmp.eq.s32.totalorder %s19, 0
      %p51 = por %p49, %p50
      %p52 = scmp.ne.s32.totalorder %s41, %s44
      %p53 = scmp.eq.s32.totalorder %s24, 3
      %p54 = por %p52, %p53
      %p55 = scmp.ne.s32.totalorder %s44, %s45
      %p56 = scmp.eq.s32.totalorder %s24, 0
      %p57 = por %p55, %p56
      %p58 = scmp.ne.s32.totalorder %s44, %s45
      %p59 = scmp.eq.s32.totalorder %s25, 3
      %p60 = por %p58, %p59
      %p62 = scmp.ne.s32.totalorder %s45, %s61
      %p63 = scmp.eq.s32.totalorder %s25, 0
      %p64 = por %p62, %p63
      %s65 = ssub.s32 %s26, %s38
      %p66 = scmp.eq.s32.totalorder %s65, 0
      %s68 = sadd.s32 %s67, 1
      %s69 = scalar_select %p66, %s67, %s68
      %p72 = pneg %p66
      %p73 = scmp.eq.s32.totalorder %s19, 3
      %p74 = por %p72, %p73
      %p75 = scmp.ne.s32.totalorder %s67, %s70
      %p76 = scmp.eq.s32.totalorder %s19, 0
      %p77 = por %p75, %p76
      %p78 = scmp.ne.s32.totalorder %s67, %s70
      %p79 = scmp.eq.s32.totalorder %s24, 3
      %p80 = por %p78, %p79
      %p81 = scmp.ne.s32.totalorder %s70, %s71
      %p82 = scmp.eq.s32.totalorder %s24, 0
      %p83 = por %p81, %p82
      %p84 = scmp.ne.s32.totalorder %s70, %s71
      %p85 = scmp.eq.s32.totalorder %s25, 3
      %p86 = por %p84, %p85
      %p88 = scmp.ne.s32.totalorder %s71, %s87
      %p89 = scmp.eq.s32.totalorder %s25, 0
      %p90 = por %p88, %p89
      %s91 = ssub.s32 %s27, %s34
      %p92 = scmp.eq.s32.totalorder %s91, 0
      %s94 = sadd.s32 %s93, 1
      %s95 = scalar_select %p92, %s93, %s94
      %p98 = pneg %p92
      %p99 = scmp.eq.s32.totalorder %s19, 3
      %p100 = por %p98, %p99
      %p101 = scmp.ne.s32.totalorder %s93, %s96
      %p102 = scmp.eq.s32.totalorder %s19, 0
      %p103 = por %p101, %p102
      %p104 = scmp.ne.s32.totalorder %s93, %s96
      %p105 = scmp.eq.s32.totalorder %s24, 3
      %p106 = por %p104, %p105
      %p107 = scmp.ne.s32.totalorder %s96, %s97
      %p108 = scmp.eq.s32.totalorder %s24, 0
      %p109 = por %p107, %p108
      %p110 = scmp.ne.s32.totalorder %s96, %s97
      %p111 = scmp.eq.s32.totalorder %s25, 3
      %p112 = por %p110, %p111
      %p114 = scmp.ne.s32.totalorder %s97, %s113
      %p115 = scmp.eq.s32.totalorder %s25, 0
      %p116 = por %p114, %p115
      %s117 = ssub.s32 %s27, %s34
      %p118 = scmp.eq.s32.totalorder %s117, 0
      %s120 = sadd.s32 %s119, 1
      %s121 = scalar_select %p118, %s119, %s120
      %p124 = pneg %p118
      %p125 = scmp.eq.s32.totalorder %s19, 3
      %p126 = por %p124, %p125
      %p127 = scmp.ne.s32.totalorder %s119, %s122
      %p128 = scmp.eq.s32.totalorder %s19, 0
      %p129 = por %p127, %p128
      %p130 = scmp.ne.s32.totalorder %s119, %s122
      %p131 = scmp.eq.s32.totalorder %s24, 3
      %p132 = por %p130, %p131
      %p133 = scmp.ne.s32.totalorder %s122, %s123
      %p134 = scmp.eq.s32.totalorder %s24, 0
      %p135 = por %p133, %p134
      %p136 = scmp.ne.s32.totalorder %s122, %s123
      %p137 = scmp.eq.s32.totalorder %s25, 3
      %p138 = por %p136, %p137
      %p140 = scmp.ne.s32.totalorder %s123, %s139
      %p141 = scmp.eq.s32.totalorder %s25, 0
      %p142 = por %p140, %p141
      %s143 = ssub.s32 %s27, %s34
      %p144 = scmp.eq.s32.totalorder %s143, 0
      %s146 = sadd.s32 %s145, 1
      %s147 = scalar_select %p144, %s145, %s146
      %p150 = pneg %p144
      %p151 = scmp.eq.s32.totalorder %s19, 3
      %p152 = por %p150, %p151
      %p153 = scmp.ne.s32.totalorder %s145, %s148
      %p154 = scmp.eq.s32.totalorder %s19, 0
      %p155 = por %p153, %p154
      %p156 = scmp.ne.s32.totalorder %s145, %s148
      %p157 = scmp.eq.s32.totalorder %s24, 3
      %p158 = por %p156, %p157
      %p159 = scmp.ne.s32.totalorder %s148, %s149
      %p160 = scmp.eq.s32.totalorder %s24, 0
      %p161 = por %p159, %p160
      %p162 = scmp.ne.s32.totalorder %s148, %s149
      %p163 = scmp.eq.s32.totalorder %s25, 3
      %p164 = por %p162, %p163
      %p166 = scmp.ne.s32.totalorder %s149, %s165
      %p167 = scmp.eq.s32.totalorder %s25, 0
      %p168 = por %p166, %p167
      %s169 = ssub.s32 %s27, %s34
      %p170 = scmp.eq.s32.totalorder %s169, 0
      %s172 = sadd.s32 %s171, 1
      %s173 = scalar_select %p170, %s171, %s172
      %p176 = pneg %p170
      %p177 = scmp.eq.s32.totalorder %s19, 3
      %p178 = por %p176, %p177
      %p179 = scmp.ne.s32.totalorder %s171, %s174
      %p180 = scmp.eq.s32.totalorder %s19, 0
      %p181 = por %p179, %p180
      %p182 = scmp.ne.s32.totalorder %s171, %s174
      %p183 = scmp.eq.s32.totalorder %s24, 3
      %p184 = por %p182, %p183
      %p185 = scmp.ne.s32.totalorder %s174, %s175
      %p186 = scmp.eq.s32.totalorder %s24, 0
      %p187 = por %p185, %p186
      %p188 = scmp.ne.s32.totalorder %s174, %s175
      %p189 = scmp.eq.s32.totalorder %s25, 3
      %p190 = por %p188, %p189
      %p192 = scmp.ne.s32.totalorder %s175, %s191
      %p193 = scmp.eq.s32.totalorder %s25, 0
      %p194 = por %p192, %p193
      %s195 = ssub.s32 %s27, %s34
      %p196 = scmp.eq.s32.totalorder %s195, 0
      %s198 = sadd.s32 %s197, 1
      %s199 = scalar_select %p196, %s197, %s198
      %p202 = pneg %p196
      %p203 = scmp.eq.s32.totalorder %s19, 3
      %p204 = por %p202, %p203
      %p205 = scmp.ne.s32.totalorder %s197, %s200
      %p206 = scmp.eq.s32.totalorder %s19, 0
      %p207 = por %p205, %p206
      %p208 = scmp.ne.s32.totalorder %s197, %s200
      %p209 = scmp.eq.s32.totalorder %s24, 3
      %p210 = por %p208, %p209
      %p211 = scmp.ne.s32.totalorder %s200, %s201
      %p212 = scmp.eq.s32.totalorder %s24, 0
      %p213 = por %p211, %p212
      %p214 = scmp.ne.s32.totalorder %s200, %s201
      %p215 = scmp.eq.s32.totalorder %s25, 3
      %p216 = por %p214, %p215
      %p218 = scmp.ne.s32.totalorder %s201, %s217
      %p219 = scmp.eq.s32.totalorder %s25, 0
      %p220 = por %p218, %p219
      %s221 = ssub.s32 %s26, %s38
      %p222 = scmp.eq.s32.totalorder %s221, 0
      %s224 = sadd.s32 %s223, 1
      %s225 = scalar_select %p222, %s223, %s224
      %p228 = pneg %p222
      %p229 = scmp.eq.s32.totalorder %s19, 3
      %p230 = por %p228, %p229
      %p231 = scmp.ne.s32.totalorder %s223, %s226
      %p232 = scmp.eq.s32.totalorder %s19, 0
      %p233 = por %p231, %p232
      %p234 = scmp.ne.s32.totalorder %s223, %s226
      %p235 = scmp.eq.s32.totalorder %s24, 3
      %p236 = por %p234, %p235
      %p237 = scmp.ne.s32.totalorder %s226, %s227
      %p238 = scmp.eq.s32.totalorder %s24, 0
      %p239 = por %p237, %p238
      %p240 = scmp.ne.s32.totalorder %s226, %s227
      %p241 = scmp.eq.s32.totalorder %s25, 3
      %p242 = por %p240, %p241
      %p244 = scmp.ne.s32.totalorder %s227, %s243
      %p245 = scmp.eq.s32.totalorder %s25, 0
      %p246 = por %p244, %p245
      %p247 = scmp.le.s32.totalorder 1, %s19
      %p248 = scmp.lt.s32.totalorder %s19, 5
      %p249 = pnand %p247, %p248
      %p250 = pneg %p249
      // Predicated region
      $region9: #{transformer_forward.2} parent=5 // pred_check
        _
      $region10: #{transformer_forward.2} parent=5 // pred_check_branch
        %252 = sbr.rel (%p249) target = $region12
      $region11: #{transformer_forward.2} parent=5 // pred_region
        %s253 = ssub.s32 %s19, 1
      $region12: #{transformer_forward.2} parent=5 // pred_fallthru
        _
      %p254 = scmp.lt.s32.totalorder %s19, 4
      // Predicated region
      $region13: #{transformer_forward.2} parent=5 // pred_check
        %p255 = pneg %p254
      $region14: #{transformer_forward.2} parent=5 // pred_check_branch
        %257 = sbr.rel (%p255) target = $region16
      $region15: #{transformer_forward.2} parent=5 // pred_region
        // Predicated region
        $region17: #{transformer_forward.2} parent=15 // pred_check
          %p258 = pneg %p51
        $region18: #{transformer_forward.2} parent=15 // pred_check_branch
          %260 = sbr.rel (%p258) target = $region20
        $region19: #{transformer_forward.2} parent=15 // pred_region
          %p261 = scmp.lt.s32.totalorder %s26, 1
          %s262 = scalar_select %p261, %s26, 1
          %s263 = smul.addr %s262, 8
          %s264 = scalar_lea.vmem %s0, %s263
        $region20: #{transformer_forward.2} parent=15 // pred_fallthru
          _
        // Predicated region
        $region21: #{transformer_forward.2} parent=15 // pred_check
          %p265 = pneg %p77
        $region22: #{transformer_forward.2} parent=15 // pred_check_branch
          %267 = sbr.rel (%p265) target = $region24
        $region23: #{transformer_forward.2} parent=15 // pred_region
          %p268 = scmp.lt.s32.totalorder %s26, 1
          %s269 = scalar_select %p268, %s26, 1
          %s270 = scalar_lea.vmem %s1, %s269
        $region24: #{transformer_forward.2} parent=15 // pred_fallthru
          _
        // Predicated region
        $region25: #{transformer_forward.2} parent=15 // pred_check
          %p271 = pneg %p103
        $region26: #{transformer_forward.2} parent=15 // pred_check_branch
          %273 = sbr.rel (%p271) target = $region28
        $region27: #{transformer_forward.2} parent=15 // pred_region
          %p274 = scmp.lt.s32.totalorder %s27, 1
          %s275 = scalar_select %p274, %s27, 1
          %s276 = smul.addr %s275, 48
          %s277 = smul.addr %s276, 4
          %s278 = scalar_lea.vmem %s2, %s277
        $region28: #{transformer_forward.2} parent=15 // pred_fallthru
          _
        // Predicated region
        $region29: #{transformer_forward.2} parent=15 // pred_check
          %p279 = pneg %p129
        $region30: #{transformer_forward.2} parent=15 // pred_check_branch
          %281 = sbr.rel (%p279) target = $region32
        $region31: #{transformer_forward.2} parent=15 // pred_region
          %s282 = sand.u32 %s119, 1
          %s283 = scalar_lea.sflag [#allocation4], %s282
          %s284 = sand.u32 %s119, 1
          %s285 = smul.addr %s284, 64
          %s286 = scalar_lea.vmem [#allocation3], %s285
          %s288 = ssub.s32 1024, 1024
          %289 = vsyncadd %s283, %s288
          %s290 = smul.addr %s27, 16
          %s291 = smul.addr %s290, 64
          %s292 = scalar_lea.hbm %s3, %s291
          %s293 = sshll.u32 %s286, 4
          %s294 = int_to_ptr.vmem [resolvable:$true] %s293
          %299 = dma.hbm_to_vmem [thread:$0]  %s292, 1024, %s294, %s283, 64, 64, 4
        $region32: #{transformer_forward.2} parent=15 // pred_fallthru
          _
        // Predicated region
        $region33: #{transformer_forward.2} parent=15 // pred_check
          %p300 = pneg %p155
        $region34: #{transformer_forward.2} parent=15 // pred_check_branch
          %302 = sbr.rel (%p300) target = $region36
        $region35: #{transformer_forward.2} parent=15 // pred_region
          %s303 = sand.u32 %s19, 1
          %s304 = scalar_lea.sflag [#allocation6], %s303
          %s305 = sand.u32 %s145, 1
          %s306 = smul.addr %s305, 64
          %s307 = scalar_lea.vmem [#allocation5], %s306
          %s309 = ssub.s32 1024, 1024
          %310 = vsyncadd %s304, %s309
          %s311 = smul.addr %s27, 16
          %s312 = smul.addr %s311, 64
          %s313 = scalar_lea.hbm %s4, %s312
          %s314 = sshll.u32 %s307, 4
          %s315 = int_to_ptr.vmem [resolvable:$true] %s314
          %320 = dma.hbm_to_vmem [thread:$0]  %s313, 1024, %s315, %s304, 64, 64, 4
        $region36: #{transformer_forward.2} parent=15 // pred_fallthru
          _
        // Predicated region
        $region37: #{transformer_forward.2} parent=15 // pred_check
          %p321 = pneg %p181
        $region38: #{transformer_forward.2} parent=15 // pred_check_branch
          %323 = sbr.rel (%p321) target = $region40
        $region39: #{transformer_forward.2} parent=15 // pred_region
          %s324 = sand.u32 %s19, 1
          %s325 = scalar_lea.sflag [#allocation6], %s324
          %s326 = sand.u32 %s171, 1
          %s327 = smul.addr %s326, 64
          %s328 = scalar_lea.vmem [#allocation7], %s327
          %s330 = ssub.s32 1024, 1024
          %331 = vsyncadd %s325, %s330
          %s332 = smul.addr %s27, 16
          %s333 = smul.addr %s332, 64
          %s334 = scalar_lea.hbm %s5, %s333
          %s335 = sshll.u32 %s328, 4
          %s336 = int_to_ptr.vmem [resolvable:$true] %s335
          %341 = dma.hbm_to_vmem [thread:$0]  %s334, 1024, %s336, %s325, 64, 64, 4
        $region40: #{transformer_forward.2} parent=15 // pred_fallthru
          _
        // Predicated region
        $region41: #{transformer_forward.2} parent=15 // pred_check
          %p342 = pneg %p207
        $region42: #{transformer_forward.2} parent=15 // pred_check_branch
          %344 = sbr.rel (%p342) target = $region44
        $region43: #{transformer_forward.2} parent=15 // pred_region
          %p345 = scmp.lt.s32.totalorder %s27, 1
          %s346 = scalar_select %p345, %s27, 1
          %s347 = smul.addr %s346, 2
          %s348 = smul.addr %s347, 8
          %s349 = scalar_lea.vmem %s6, %s348
        $region44: #{transformer_forward.2} parent=15 // pred_fallthru
          _
      $region16: #{transformer_forward.2} parent=5 // pred_fallthru
        _
      %p350 = scmp.le.s32.totalorder 1, %s19
      %p351 = scmp.lt.s32.totalorder %s19, 5
      %p352 = pnand %p350, %p351
      %p353 = pneg %p352
      // Predicated region
      $region45: #{transformer_forward.2} parent=5 // pred_check
        _
      $region46: #{transformer_forward.2} parent=5 // pred_check_branch
        %355 = sbr.rel (%p352) target = $region48
      $region47: #{transformer_forward.2} parent=5 // pred_region
        %s356 = ssub.s32 %s19, 1
        %s357 = sand.u32 %s122, 1
        %s358 = scalar_lea.sflag [#allocation4], %s357
        %s359 = sand.u32 %s122, 1
        %s360 = smul.addr %s359, 64
        %s361 = scalar_lea.vmem [#allocation3], %s360
        // Predicated region
        $region49: #{transformer_forward.2} parent=47 // pred_check
          %p362 = pneg %p135
        $region50: #{transformer_forward.2} parent=47 // pred_check_branch
          %364 = sbr.rel (%p362) target = $region52
        $region51: #{transformer_forward.2} parent=47 // pred_region
          %365 = dma.done %s358, 1024
        $region52: #{transformer_forward.2} parent=47 // pred_fallthru
          _
        %s366 = sand.u32 %s24, 1
        %s367 = scalar_lea.sflag [#allocation6], %s366
        %s368 = sand.u32 %s148, 1
        %s369 = smul.addr %s368, 64
        %s370 = scalar_lea.vmem [#allocation5], %s369
        // Predicated region
        $region53: #{transformer_forward.2} parent=47 // pred_check
          %p371 = pneg %p161
        $region54: #{transformer_forward.2} parent=47 // pred_check_branch
          %373 = sbr.rel (%p371) target = $region56
        $region55: #{transformer_forward.2} parent=47 // pred_region
          %374 = dma.done %s367, 1024
        $region56: #{transformer_forward.2} parent=47 // pred_fallthru
          _
        %s375 = sand.u32 %s24, 1
        %s376 = scalar_lea.sflag [#allocation6], %s375
        %s377 = sand.u32 %s174, 1
        %s378 = smul.addr %s377, 64
        %s379 = scalar_lea.vmem [#allocation7], %s378
        // Predicated region
        $region57: #{transformer_forward.2} parent=47 // pred_check
          %p380 = pneg %p187
        $region58: #{transformer_forward.2} parent=47 // pred_check_branch
          %382 = sbr.rel (%p380) target = $region60
        $region59: #{transformer_forward.2} parent=47 // pred_region
          %383 = dma.done %s376, 1024
        $region60: #{transformer_forward.2} parent=47 // pred_fallthru
          _
        %p384 = scmp.lt.s32.totalorder %s28, 1
        %s385 = scalar_select %p384, %s28, 1
        %s386 = smul.addr %s385, 8
        %s387 = scalar_lea.vmem %s0, %s386
        %p388 = pneg %p57
        %p389 = pneg %p54
        %p390 = scmp.lt.s32.totalorder %s28, 1
        %s391 = scalar_select %p390, %s28, 1
        %s392 = scalar_lea.vmem %s1, %s391
        %p393 = pneg %p83
        %p394 = pneg %p80
        %p395 = scmp.lt.s32.totalorder %s29, 1
        %s396 = scalar_select %p395, %s29, 1
        %s397 = smul.addr %s396, 48
        %s398 = smul.addr %s397, 4
        %s399 = scalar_lea.vmem %s2, %s398
        %p400 = pneg %p109
        %p401 = pneg %p106
        %s402 = sand.u32 %s122, 1
        %s403 = scalar_lea.sflag [#allocation4], %s402
        %s404 = sand.u32 %s122, 1
        %s405 = smul.addr %s404, 64
        %s406 = scalar_lea.vmem [#allocation3], %s405
        %p407 = pneg %p135
        %p408 = pneg %p132
        %s409 = sand.u32 %s24, 1
        %s410 = scalar_lea.sflag [#allocation6], %s409
        %s411 = sand.u32 %s148, 1
        %s412 = smul.addr %s411, 64
        %s413 = scalar_lea.vmem [#allocation5], %s412
        %p414 = pneg %p161
        %p415 = pneg %p158
        %s416 = sand.u32 %s24, 1
        %s417 = scalar_lea.sflag [#allocation6], %s416
        %s418 = sand.u32 %s174, 1
        %s419 = smul.addr %s418, 64
        %s420 = scalar_lea.vmem [#allocation7], %s419
        %p421 = pneg %p187
        %p422 = pneg %p184
        %p423 = scmp.lt.s32.totalorder %s29, 1
        %s424 = scalar_select %p423, %s29, 1
        %s425 = smul.addr %s424, 2
        %s426 = smul.addr %s425, 8
        %s427 = scalar_lea.vmem %s6, %s426
        %p428 = pneg %p213
        %p429 = pneg %p210
        %p430 = pneg %p239
        %p431 = pneg %p236
        %p432 = scmp.lt.s32.totalorder %s28, 1
        %s433 = scalar_select %p432, %s28, 1
        %s434 = smul.addr %s433, 8
        %s435 = scalar_lea.vmem %s7, %s434
        %p436 = scmp.lt.s32.totalorder %s28, 1
        %s437 = scalar_select %p436, %s28, 1
        %s438 = smul.addr %s437, 8
        %s439 = scalar_lea.vmem %s0, %s438
        %p440 = scmp.lt.s32.totalorder %s28, 1
        %s441 = scalar_select %p440, %s28, 1
        %s442 = scalar_lea.vmem %s1, %s441
        %p443 = scmp.lt.s32.totalorder %s29, 1
        %s444 = scalar_select %p443, %s29, 1
        %s445 = smul.addr %s444, 48
        %s446 = smul.addr %s445, 4
        %s447 = scalar_lea.vmem %s2, %s446
        %p448 = scmp.lt.s32.totalorder %s29, 1
        %s449 = scalar_select %p448, %s29, 1
        %s450 = smul.addr %s449, 2
        %s451 = smul.addr %s450, 8
        %s452 = scalar_lea.vmem %s6, %s451
        %p453 = scmp.lt.s32.totalorder %s28, 1
        %s454 = scalar_select %p453, %s28, 1
        %s455 = smul.addr %s454, 8
        %s456 = scalar_lea.vmem %s7, %s455
        %p458 = scmp.eq.s32.totalorder %s29, 0
        // Predicated region
        $region61: #{transformer_forward.2} parent=47 // pred_check
          %p459 = pneg %p458
        $region62: #{transformer_forward.2} parent=47 // pred_check_branch
          %461 = sbr.rel (%p459) target = $region64
        $region63: #{transformer_forward.2} parent=47 // pred_region
          %v462 = vld [vmem:[%s439] sm:$0xff]
          %463 = vst [vmem:[#allocation2] sm:$0xff] %v462
        $region64: #{transformer_forward.2} parent=47 // pred_fallthru
          _
        %v464 = vld [vmem:[#allocation2] sm:$0xff]
        %v465 = vld [vmem:[%s452] sm:$0xff]
        %v466 = vld [vmem:[%s452 + $0x8] sm:$0xff]
        %v467 = vld [vmem:[%s442] sm:$0x1]
        %vm468 = vcmp.gt.f32.partialorder %v467, 0.5
        %v469 = vpack.c.bf16 %v464, %v464
        %v470 = vld [vmem:[%s447] sm:$0xff]
        %v471 = vld [vmem:[%s447 + $0x8] sm:$0xf]
        %v472 = vld [vmem:[%s447 + $0xc] sm:$0xff]
        %v473 = vld [vmem:[%s447 + $0x14] sm:$0xf]
        %v474 = vld [vmem:[%s447 + $0x18] sm:$0xff]
        %v475 = vld [vmem:[%s447 + $0x20] sm:$0xf]
        %v476 = vld [vmem:[%s447 + $0x24] sm:$0xff]
        %v477 = vld [vmem:[%s447 + $0x2c] sm:$0xf]
        %v478 = vld [vmem:[%s447 + $0x30] sm:$0xff]
        %v479 = vld [vmem:[%s447 + $0x38] sm:$0xf]
        %v480 = vld [vmem:[%s447 + $0x3c] sm:$0xff]
        %v481 = vld [vmem:[%s447 + $0x44] sm:$0xf]
        %v482 = vld [vmem:[%s447 + $0x48] sm:$0xff]
        %v483 = vld [vmem:[%s447 + $0x50] sm:$0xf]
        %v484 = vld [vmem:[%s447 + $0x54] sm:$0xff]
        %v485 = vld [vmem:[%s447 + $0x5c] sm:$0xf]
        %v486 = vld [vmem:[%s447 + $0x60] sm:$0xff]
        %v487 = vld [vmem:[%s447 + $0x68] sm:$0xf]
        %v488 = vld [vmem:[%s447 + $0x6c] sm:$0xff]
        %v489 = vld [vmem:[%s447 + $0x74] sm:$0xf]
        %v490 = vld [vmem:[%s447 + $0x78] sm:$0xff]
        %v491 = vld [vmem:[%s447 + $0x80] sm:$0xf]
        %v492 = vld [vmem:[%s447 + $0x84] sm:$0xff]
        %v493 = vld [vmem:[%s447 + $0x8c] sm:$0xf]
        %v494 = vld [vmem:[%s447 + $0x90] sm:$0xff]
        %v495 = vld [vmem:[%s447 + $0x98] sm:$0xf]
        %v496 = vld [vmem:[%s447 + $0x9c] sm:$0xff]
        %v497 = vld [vmem:[%s447 + $0xa4] sm:$0xf]
        %v498 = vld [vmem:[%s447 + $0xa8] sm:$0xff]
        %v499 = vld [vmem:[%s447 + $0xb0] sm:$0xf]
        %v500 = vld [vmem:[%s447 + $0xb4] sm:$0xff]
        %v501 = vld [vmem:[%s447 + $0xbc] sm:$0xf]
        %v534 = vunpack.c.l.b16 %v470
        %v535 = vunpack.c.h.b16 %v470
        %v536 = vunpack.c.l.b16 %v471
        %v537 = vunpack.c.l.b16 %v472
        %v538 = vunpack.c.h.b16 %v472
        %v539 = vunpack.c.l.b16 %v473
        %v540 = vunpack.c.l.b16 %v474
        %v541 = vunpack.c.h.b16 %v474
        %v542 = vunpack.c.l.b16 %v475
        %v543 = vunpack.c.l.b16 %v476
        %v544 = vunpack.c.h.b16 %v476
        %v545 = vunpack.c.l.b16 %v477
        %v546 = vunpack.c.l.b16 %v478
        %v547 = vunpack.c.h.b16 %v478
        %v548 = vunpack.c.l.b16 %v479
        %v549 = vunpack.c.l.b16 %v480
        %v550 = vunpack.c.h.b16 %v480
        %v551 = vunpack.c.l.b16 %v481
        %v552 = vunpack.c.l.b16 %v482
        %v553 = vunpack.c.h.b16 %v482
        %v554 = vunpack.c.l.b16 %v483
        %v555 = vunpack.c.l.b16 %v484
        %v556 = vunpack.c.h.b16 %v484
        %v557 = vunpack.c.l.b16 %v485
        %v558 = vunpack.c.l.b16 %v486
        %v559 = vunpack.c.h.b16 %v486
        %v560 = vunpack.c.l.b16 %v487
        %v561 = vunpack.c.l.b16 %v488
        %v562 = vunpack.c.h.b16 %v488
        %v563 = vunpack.c.l.b16 %v489
        %v564 = vunpack.c.l.b16 %v490
        %v565 = vunpack.c.h.b16 %v490
        %v566 = vunpack.c.l.b16 %v491
        %v567 = vunpack.c.l.b16 %v492
        %v568 = vunpack.c.h.b16 %v492
        %v569 = vunpack.c.l.b16 %v493
        %v570 = vunpack.c.l.b16 %v494
        %v571 = vunpack.c.h.b16 %v494
        %v572 = vunpack.c.l.b16 %v495
        %v573 = vunpack.c.l.b16 %v496
        %v574 = vunpack.c.h.b16 %v496
        %v575 = vunpack.c.l.b16 %v497
        %v576 = vunpack.c.l.b16 %v498
        %v577 = vunpack.c.h.b16 %v498
        %v578 = vunpack.c.l.b16 %v499
        %v579 = vunpack.c.l.b16 %v500
        %v580 = vunpack.c.h.b16 %v500
        %v581 = vunpack.c.l.b16 %v501
        %v582 = vpack.c.b16 %v537, %v534
        %v583 = vpack.c.b16 %v538, %v535
        %v584 = vpack.c.b16 %v539, %v536
        %v585 = vpack.c.b16 %v543, %v540
        %v586 = vpack.c.b16 %v544, %v541
        %v587 = vpack.c.b16 %v545, %v542
        %v588 = vpack.c.b16 %v549, %v546
        %v589 = vpack.c.b16 %v550, %v547
        %v590 = vpack.c.b16 %v551, %v548
        %v591 = vpack.c.b16 %v555, %v552
        %v592 = vpack.c.b16 %v556, %v553
        %v593 = vpack.c.b16 %v557, %v554
        %v594 = vpack.c.b16 %v561, %v558
        %v595 = vpack.c.b16 %v562, %v559
        %v596 = vpack.c.b16 %v563, %v560
        %v597 = vpack.c.b16 %v567, %v564
        %v598 = vpack.c.b16 %v568, %v565
        %v599 = vpack.c.b16 %v569, %v566
        %v600 = vpack.c.b16 %v573, %v570
        %v601 = vpack.c.b16 %v574, %v571
        %v602 = vpack.c.b16 %v575, %v572
        %v603 = vpack.c.b16 %v579, %v576
        %v604 = vpack.c.b16 %v580, %v577
        %v605 = vpack.c.b16 %v581, %v578
        %630 = vmatprep.subr.bf16.mxu0 %v583
        %631 = vmatpush1.bf16.msra.mxu0 %v582
        %632 = vmatprep.subr.bf16.mxu0 %v586
        %633 = vmatpush1.bf16.msra.mxu0 %v585
        %634 = vmatprep.subr.bf16.mxu0 %v589
        %635 = vmatpush1.bf16.msra.mxu0 %v588
        %636 = vmatprep.subr.bf16.mxu0 %v592
        %637 = vmatpush1.bf16.msra.mxu0 %v591
        %638 = vmatprep.subr.bf16.mxu0 %v595
        %639 = vmatpush1.bf16.msra.mxu0 %v594
        %640 = vmatprep.subr.bf16.mxu0 %v598
        %641 = vmatpush1.bf16.msra.mxu0 %v597
        %642 = vmatprep.subr.bf16.mxu0 %v601
        %643 = vmatpush1.bf16.msra.mxu0 %v600
        %644 = vmatprep.subr.bf16.mxu0 %v604
        %645 = vmatpush1.bf16.msra.mxu0 %v603
        %646 = vmatprep.subr.bf16.mxu0 0
        %647 = vmatpush1.bf16.msra.mxu0 0
        %648 = vmatprep.subr.bf16.mxu0 0
        %649 = vmatpush1.bf16.msra.mxu0 0
        %650 = vmatprep.subr.bf16.mxu0 0
        %651 = vmatpush1.bf16.msra.mxu0 0
        %652 = vmatprep.subr.bf16.mxu0 0
        %653 = vmatpush1.bf16.msra.mxu0 0
        %654 = vmatprep.subr.bf16.mxu0 0
        %655 = vmatpush1.bf16.msra.mxu0 0
        %656 = vmatprep.subr.bf16.mxu0 0
        %657 = vmatpush1.bf16.msra.mxu0 0
        %658 = vmatprep.subr.bf16.mxu0 0
        %659 = vmatpush1.bf16.msra.mxu0 0
        %660 = vmatprep.subr.bf16.mxu0 0
        %661 = vmatpush1.bf16.msra.mxu0 0
        %662 = vmatprep.mubr.bf16.mxu0 0
        %663 = vmatmul.mubr.bf16.gmra.mrb[0].mxu0 %v469
        %v664 = vpop.f32.mrb[0].mxu0
        %v665 = vadd.f32 0.0, %v664
        %v666 = vpop.f32.mrb[0].mxu0
        %v667 = vadd.f32 0.0, %v666
        %v668 = vpop.f32.mrb[0].mxu0
        %v669 = vpop.f32.mrb[0].mxu0
        %670 = vdwg.mxu0
        %671 = vmatprep.subr.bf16.mxu0 0
        %672 = vmatpush1.bf16.msra.mxu0 %v584
        %673 = vmatprep.subr.bf16.mxu0 0
        %674 = vmatpush1.bf16.msra.mxu0 %v587
        %675 = vmatprep.subr.bf16.mxu0 0
        %676 = vmatpush1.bf16.msra.mxu0 %v590
        %677 = vmatprep.subr.bf16.mxu0 0
        %678 = vmatpush1.bf16.msra.mxu0 %v593
        %679 = vmatprep.subr.bf16.mxu0 0
        %680 = vmatpush1.bf16.msra.mxu0 %v596
        %681 = vmatprep.subr.bf16.mxu0 0
        %682 = vmatpush1.bf16.msra.mxu0 %v599
        %683 = vmatprep.subr.bf16.mxu0 0
        %684 = vmatpush1.bf16.msra.mxu0 %v602
        %685 = vmatprep.subr.bf16.mxu0 0
        %686 = vmatpush1.bf16.msra.mxu0 %v605
        %687 = vmatprep.subr.bf16.mxu0 0
        %688 = vmatpush1.bf16.msra.mxu0 0
        %689 = vmatprep.subr.bf16.mxu0 0
        %690 = vmatpush1.bf16.msra.mxu0 0
        %691 = vmatprep.subr.bf16.mxu0 0
        %692 = vmatpush1.bf16.msra.mxu0 0
        %693 = vmatprep.subr.bf16.mxu0 0
        %694 = vmatpush1.bf16.msra.mxu0 0
        %695 = vmatprep.subr.bf16.mxu0 0
        %696 = vmatpush1.bf16.msra.mxu0 0
        %697 = vmatprep.subr.bf16.mxu0 0
        %698 = vmatpush1.bf16.msra.mxu0 0
        %699 = vmatprep.subr.bf16.mxu0 0
        %700 = vmatpush1.bf16.msra.mxu0 0
        %701 = vmatprep.subr.bf16.mxu0 0
        %702 = vmatpush1.bf16.msra.mxu0 0
        %703 = vmatprep.mubr.bf16.mxu0 0
        %704 = vmatmul.mubr.bf16.gmra.mrb[0].mxu0 %v469
        %v705 = vpop.f32.mrb[0].mxu0
        %v706 = vadd.f32 0.0, %v705
        %v707 = vpop.f32.mrb[0].mxu0
        %v708 = vpop.f32.mrb[0].mxu0
        %v709 = vpop.f32.mrb[0].mxu0
        %710 = vdwg.mxu0
        %v711 = vlaneseq
        %v712 = vshrl.u32 %v711, 7
        %v713 = vsub.s32 0, %v712
        %v714 = vrot.slane %v465, %v713
        %v715 = vadd.f32 %v665, %v714
        %v716 = vlaneseq
        %v717 = vshrl.u32 %v716, 7
        %v718 = vsub.s32 1, %v717
        %v719 = vrot.slane %v465, %v718
        %v720 = vadd.f32 %v667, %v719
        %v721 = vlaneseq
        %v722 = vshrl.u32 %v721, 7
        %v723 = vsub.s32 2, %v722
        %v724 = vrot.slane %v465, %v723
        %v725 = vadd.f32 %v706, %v724
        %v726 = vld [vmem:[%s361] sm:$0xf]
        %v727 = vld [vmem:[%s361 + $0x4] sm:$0xf]
        %v728 = vld [vmem:[%s361 + $0x8] sm:$0xf]
        %v729 = vld [vmem:[%s361 + $0xc] sm:$0xf]
        %v730 = vld [vmem:[%s361 + $0x10] sm:$0xf]
        %v731 = vld [vmem:[%s361 + $0x14] sm:$0xf]
        %v732 = vld [vmem:[%s361 + $0x18] sm:$0xf]
        %v733 = vld [vmem:[%s361 + $0x1c] sm:$0xf]
        %v734 = vld [vmem:[%s361 + $0x20] sm:$0xf]
        %v735 = vld [vmem:[%s361 + $0x24] sm:$0xf]
        %v736 = vld [vmem:[%s361 + $0x28] sm:$0xf]
        %v737 = vld [vmem:[%s361 + $0x2c] sm:$0xf]
        %v738 = vld [vmem:[%s361 + $0x30] sm:$0xf]
        %v739 = vld [vmem:[%s361 + $0x34] sm:$0xf]
        %v740 = vld [vmem:[%s361 + $0x38] sm:$0xf]
        %v741 = vld [vmem:[%s361 + $0x3c] sm:$0xf]
        %v742 = vpack.c.bf16 %v715, %v715
        %v743 = vpack.c.bf16 %v720, %v720
        %v744 = vpack.c.bf16 %v725, %v725
        %vm745 = vcmask 64512
        %v747 = vsel %vm745, %v742, 0
        %v750 = vsel %vm745, %v743, 0
        %752 = vmatprep.subr.bf16.mxu0 0
        %753 = vmatpush1.bf16.xpose.msra.mxu0 %v750
        %754 = vmatprep.subr.bf16.mxu0 0
        %755 = vmatpush1.bf16.xpose.msra.mxu0 0
        %756 = vmatprep.subr.bf16.mxu0 0
        %757 = vmatpush1.bf16.xpose.msra.mxu0 0
        %758 = vmatprep.subr.bf16.mxu0 0
        %759 = vmatpush1.bf16.xpose.msra.mxu0 0
        %760 = vmatprep.subr.bf16.mxu0 0
        %761 = vmatpush1.bf16.xpose.msra.mxu0 0
        %762 = vmatprep.subr.bf16.mxu0 0
        %763 = vmatpush1.bf16.xpose.msra.mxu0 0
        %764 = vmatprep.subr.bf16.mxu0 0
        %765 = vmatpush1.bf16.xpose.msra.mxu0 0
        %766 = vmatprep.subr.bf16.mxu0 0
        %767 = vmatpush1.bf16.xpose.msra.mxu0 0
        %768 = vmatprep.subr.bf16.mxu0 0
        %769 = vmatpush1.bf16.xpose.msra.mxu0 0
        %770 = vmatprep.subr.bf16.mxu0 0
        %771 = vmatpush1.bf16.xpose.msra.mxu0 0
        %772 = vmatprep.subr.bf16.mxu0 0
        %773 = vmatpush1.bf16.xpose.msra.mxu0 0
        %774 = vmatprep.subr.bf16.mxu0 0
        %775 = vmatpush1.bf16.xpose.msra.mxu0 0
        %776 = vmatprep.subr.bf16.mxu0 0
        %777 = vmatpush1.bf16.xpose.msra.mxu0 0
        %778 = vmatprep.subr.bf16.mxu0 0
        %779 = vmatpush1.bf16.xpose.msra.mxu0 0
        %780 = vmatprep.subr.bf16.mxu0 0
        %781 = vmatpush1.bf16.xpose.msra.mxu0 0
        %782 = vmatprep.subr.bf16.mxu0 0
        %783 = vmatpush1.bf16.xpose.msra.mxu0 0
        %784 = vmatprep.mubr.bf16.mxu0 0
        %785 = vmatmul.mubr.bf16.gmra.mrb[0].mxu0 %v747
        %v786 = vpop.f32.mrb[0].mxu0
        %v787 = vadd.f32 0.0, %v786
        %v788 = vpop.f32.mrb[0].mxu0
        %v789 = vpop.f32.mrb[0].mxu0
        %v790 = vpop.f32.mrb[0].mxu0
        %791 = vdwg.mxu0
        %v792 = vmul.f32 %v787, 0.35355338
        %v793 = vsel %vm468, 1, 0
        %v794 = vlaneseq
        %v795 = vshrl.u32 %v794, 7
        %v796 = vsub.s32 0, %v795
        %v797 = vrot.slane %v793, %v796
        %vm798 = vcmp.eq.s32.totalorder %v797, 1
        %v799 = vsel %vm798, %v792, -1e+09
        %v800 = vsel %vm745, %v799, -inf
        %801 = vmax.xlane.f32.xlu0 %v800
        %v802 = vpop.xlane.xlu0 %801
        %v803 = vsub.f32 %v799, %v802
        %v804 = vmul.f32 %v803, 1.442695
        %v805 = vpow.pop %v804
        %v806 = vsel %vm745, %v805, 0.0
        %807 = vadd.xlane.f32.xlu0 %v806
        %v808 = vpop.xlane.xlu0 %807
        %v809 = vrcp.pop %v808
        %v810 = vmul.f32 %v805, %v809
        %v811 = vpack.c.bf16 %v810, %v810
        %v813 = vsel %vm745, %v811, 0
        %vm815 = vcmask 1043456
        %v817 = vsel %vm815, %v744, 0
        %819 = vmatprep.subr.bf16.mxu0 0
        %820 = vmatpush1.bf16.msra.mxu0 %v817
        %821 = vmatprep.subr.bf16.mxu0 0
        %822 = vmatpush1.bf16.msra.mxu0 0
        %823 = vmatprep.subr.bf16.mxu0 0
        %824 = vmatpush1.bf16.msra.mxu0 0
        %825 = vmatprep.subr.bf16.mxu0 0
        %826 = vmatpush1.bf16.msra.mxu0 0
        %827 = vmatprep.subr.bf16.mxu0 0
        %828 = vmatpush1.bf16.msra.mxu0 0
        %829 = vmatprep.subr.bf16.mxu0 0
        %830 = vmatpush1.bf16.msra.mxu0 0
        %831 = vmatprep.subr.bf16.mxu0 0
        %832 = vmatpush1.bf16.msra.mxu0 0
        %833 = vmatprep.subr.bf16.mxu0 0
        %834 = vmatpush1.bf16.msra.mxu0 0
        %835 = vmatprep.subr.bf16.mxu0 0
        %836 = vmatpush1.bf16.msra.mxu0 0
        %837 = vmatprep.subr.bf16.mxu0 0
        %838 = vmatpush1.bf16.msra.mxu0 0
        %839 = vmatprep.subr.bf16.mxu0 0
        %840 = vmatpush1.bf16.msra.mxu0 0
        %841 = vmatprep.subr.bf16.mxu0 0
        %842 = vmatpush1.bf16.msra.mxu0 0
        %843 = vmatprep.subr.bf16.mxu0 0
        %844 = vmatpush1.bf16.msra.mxu0 0
        %845 = vmatprep.subr.bf16.mxu0 0
        %846 = vmatpush1.bf16.msra.mxu0 0
        %847 = vmatprep.subr.bf16.mxu0 0
        %848 = vmatpush1.bf16.msra.mxu0 0
        %849 = vmatprep.subr.bf16.mxu0 0
        %850 = vmatpush1.bf16.msra.mxu0 0
        %851 = vmatprep.mubr.bf16.mxu0 0
        %852 = vmatmul.mubr.bf16.gmra.mrb[0].mxu0 %v813
        %v853 = vpop.f32.mrb[0].mxu0
        %v854 = vadd.f32 0.0, %v853
        %v855 = vpop.f32.mrb[0].mxu0
        %v856 = vpop.f32.mrb[0].mxu0
        %v857 = vpop.f32.mrb[0].mxu0
        %858 = vdwg.mxu0
        %860 = vrot.lane.b32.xlu0 %v742, 120
        %v861 = vpop.permute.xlu0 %860
        %863 = vrot.lane.b32.xlu0 %v743, 120
        %v864 = vpop.permute.xlu0 %863
        %v866 = vsel %vm745, %v861, 0
        %v869 = vsel %vm745, %v864, 0
        %871 = vmatprep.subr.bf16.mxu0 0
        %872 = vmatpush1.bf16.xpose.msra.mxu0 %v869
        %873 = vmatprep.subr.bf16.mxu0 0
        %874 = vmatpush1.bf16.xpose.msra.mxu0 0
        %875 = vmatprep.subr.bf16.mxu0 0
        %876 = vmatpush1.bf16.xpose.msra.mxu0 0
        %877 = vmatprep.subr.bf16.mxu0 0
        %878 = vmatpush1.bf16.xpose.msra.mxu0 0
        %879 = vmatprep.subr.bf16.mxu0 0
        %880 = vmatpush1.bf16.xpose.msra.mxu0 0
        %881 = vmatprep.subr.bf16.mxu0 0
        %882 = vmatpush1.bf16.xpose.msra.mxu0 0
        %883 = vmatprep.subr.bf16.mxu0 0
        %884 = vmatpush1.bf16.xpose.msra.mxu0 0
        %885 = vmatprep.subr.bf16.mxu0 0
        %886 = vmatpush1.bf16.xpose.msra.mxu0 0
        %887 = vmatprep.subr.bf16.mxu0 0
        %888 = vmatpush1.bf16.xpose.msra.mxu0 0
        %889 = vmatprep.subr.bf16.mxu0 0
        %890 = vmatpush1.bf16.xpose.msra.mxu0 0
        %891 = vmatprep.subr.bf16.mxu0 0
        %892 = vmatpush1.bf16.xpose.msra.mxu0 0
        %893 = vmatprep.subr.bf16.mxu0 0
        %894 = vmatpush1.bf16.xpose.msra.mxu0 0
        %895 = vmatprep.subr.bf16.mxu0 0
        %896 = vmatpush1.bf16.xpose.msra.mxu0 0
        %897 = vmatprep.subr.bf16.mxu0 0
        %898 = vmatpush1.bf16.xpose.msra.mxu0 0
        %899 = vmatprep.subr.bf16.mxu0 0
        %900 = vmatpush1.bf16.xpose.msra.mxu0 0
        %901 = vmatprep.subr.bf16.mxu0 0
        %902 = vmatpush1.bf16.xpose.msra.mxu0 0
        %903 = vmatprep.mubr.bf16.mxu0 0
        %904 = vmatmul.mubr.bf16.gmra.mrb[0].mxu0 %v866
        %v905 = vpop.f32.mrb[0].mxu0
        %v906 = vadd.f32 0.0, %v905
        %v907 = vpop.f32.mrb[0].mxu0
        %v908 = vpop.f32.mrb[0].mxu0
        %v909 = vpop.f32.mrb[0].mxu0
        %910 = vdwg.mxu0
        %v911 = vmul.f32 %v906, 0.35355338
        %v912 = vsel %vm798, %v911, -1e+09
        %v913 = vsel %vm745, %v912, -inf
        %914 = vmax.xlane.f32.xlu0 %v913
        %v915 = vpop.xlane.xlu0 %914
        %v916 = vsub.f32 %v912, %v915
        %v917 = vmul.f32 %v916, 1.442695
        %v918 = vpow.pop %v917
        %v919 = vsel %vm745, %v918, 0.0
        %920 = vadd.xlane.f32.xlu0 %v919
        %v921 = vpop.xlane.xlu0 %920
        %v922 = vrcp.pop %v921
        %v923 = vmul.f32 %v918, %v922
        %v924 = vpack.c.bf16 %v923, %v923
        %926 = vrot.lane.b32.xlu0 %v744, 120
        %v927 = vpop.permute.xlu0 %926
        %v929 = vsel %vm745, %v924, 0
        %v932 = vsel %vm815, %v927, 0
        %934 = vmatprep.subr.bf16.mxu0 0
        %935 = vmatpush1.bf16.msra.mxu0 %v932
        %936 = vmatprep.subr.bf16.mxu0 0
        %937 = vmatpush1.bf16.msra.mxu0 0
        %938 = vmatprep.subr.bf16.mxu0 0
        %939 = vmatpush1.bf16.msra.mxu0 0
        %940 = vmatprep.subr.bf16.mxu0 0
        %941 = vmatpush1.bf16.msra.mxu0 0
        %942 = vmatprep.subr.bf16.mxu0 0
        %943 = vmatpush1.bf16.msra.mxu0 0
        %944 = vmatprep.subr.bf16.mxu0 0
        %945 = vmatpush1.bf16.msra.mxu0 0
        %946 = vmatprep.subr.bf16.mxu0 0
        %947 = vmatpush1.bf16.msra.mxu0 0
        %948 = vmatprep.subr.bf16.mxu0 0
        %949 = vmatpush1.bf16.msra.mxu0 0
        %950 = vmatprep.subr.bf16.mxu0 0
        %951 = vmatpush1.bf16.msra.mxu0 0
        %952 = vmatprep.subr.bf16.mxu0 0
        %953 = vmatpush1.bf16.msra.mxu0 0
        %954 = vmatprep.subr.bf16.mxu0 0
        %955 = vmatpush1.bf16.msra.mxu0 0
        %956 = vmatprep.subr.bf16.mxu0 0
        %957 = vmatpush1.bf16.msra.mxu0 0
        %958 = vmatprep.subr.bf16.mxu0 0
        %959 = vmatpush1.bf16.msra.mxu0 0
        %960 = vmatprep.subr.bf16.mxu0 0
        %961 = vmatpush1.bf16.msra.mxu0 0
        %962 = vmatprep.subr.bf16.mxu0 0
        %963 = vmatpush1.bf16.msra.mxu0 0
        %964 = vmatprep.subr.bf16.mxu0 0
        %965 = vmatpush1.bf16.msra.mxu0 0
        %966 = vmatprep.mubr.bf16.mxu0 0
        %967 = vmatmul.mubr.bf16.gmra.mrb[0].mxu0 %v929
        %v968 = vpop.f32.mrb[0].mxu0
        %v969 = vadd.f32 0.0, %v968
        %v970 = vpop.f32.mrb[0].mxu0
        %v971 = vpop.f32.mrb[0].mxu0
        %v972 = vpop.f32.mrb[0].mxu0
        %973 = vdwg.mxu0
        %974 = vrot.lane.b32.xlu0 %v742, 112
        %v975 = vpop.permute.xlu0 %974
        %976 = vrot.lane.b32.xlu0 %v743, 112
        %v977 = vpop.permute.xlu0 %976
        %v979 = vsel %vm745, %v975, 0
        %v982 = vsel %vm745, %v977, 0
        %984 = vmatprep.subr.bf16.mxu0 0
        %985 = vmatpush1.bf16.xpose.msra.mxu0 %v982
        %986 = vmatprep.subr.bf16.mxu0 0
        %987 = vmatpush1.bf16.xpose.msra.mxu0 0
        %988 = vmatprep.subr.bf16.mxu0 0
        %989 = vmatpush1.bf16.xpose.msra.mxu0 0
        %990 = vmatprep.subr.bf16.mxu0 0
        %991 = vmatpush1.bf16.xpose.msra.mxu0 0
        %992 = vmatprep.subr.bf16.mxu0 0
        %993 = vmatpush1.bf16.xpose.msra.mxu0 0
        %994 = vmatprep.subr.bf16.mxu0 0
        %995 = vmatpush1.bf16.xpose.msra.mxu0 0
        %996 = vmatprep.subr.bf16.mxu0 0
        %997 = vmatpush1.bf16.xpose.msra.mxu0 0
        %998 = vmatprep.subr.bf16.mxu0 0
        %999 = vmatpush1.bf16.xpose.msra.mxu0 0
        %1000 = vmatprep.subr.bf16.mxu0 0
        %1001 = vmatpush1.bf16.xpose.msra.mxu0 0
        %1002 = vmatprep.subr.bf16.mxu0 0
        %1003 = vmatpush1.bf16.xpose.msra.mxu0 0
        %1004 = vmatprep.subr.bf16.mxu0 0
        %1005 = vmatpush1.bf16.xpose.msra.mxu0 0
        %1006 = vmatprep.subr.bf16.mxu0 0
        %1007 = vmatpush1.bf16.xpose.msra.mxu0 0
        %1008 = vmatprep.subr.bf16.mxu0 0
        %1009 = vmatpush1.bf16.xpose.msra.mxu0 0
        %1010 = vmatprep.subr.bf16.mxu0 0
        %1011 = vmatpush1.bf16.xpose.msra.mxu0 0
        %1012 = vmatprep.subr.bf16.mxu0 0
        %1013 = vmatpush1.bf16.xpose.msra.mxu0 0
        %1014 = vmatprep.subr.bf16.mxu0 0
        %1015 = vmatpush1.bf16.xpose.msra.mxu0 0
        %1016 = vmatprep.mubr.bf16.mxu0 0
        %1017 = vmatmul.mubr.bf16.gmra.mrb[0].mxu0 %v979
        %v1018 = vpop.f32.mrb[0].mxu0
        %v1019 = vadd.f32 0.0, %v1018
        %v1020 = vpop.f32.mrb[0].mxu0
        %v1021 = vpop.f32.mrb[0].mxu0
        %v1022 = vpop.f32.mrb[0].mxu0
        %1023 = vdwg.mxu0
        %v1024 = vmul.f32 %v1019, 0.35355338
        %v1025 = vsel %vm798, %v1024, -1e+09
        %v1026 = vsel %vm745, %v1025, -inf
        %1027 = vmax.xlane.f32.xlu0 %v1026
        %v1028 = vpop.xlane.xlu0 %1027
        %v1029 = vsub.f32 %v1025, %v1028
        %v1030 = vmul.f32 %v1029, 1.442695
        %v1031 = vpow.pop %v1030
        %v1032 = vsel %vm745, %v1031, 0.0
        %1033 = vadd.xlane.f32.xlu0 %v1032
        %v1034 = vpop.xlane.xlu0 %1033
        %v1035 = vrcp.pop %v1034
        %v1036 = vmul.f32 %v1031, %v1035
        %v1037 = vpack.c.bf16 %v1036, %v1036
        %1038 = vrot.lane.b32.xlu0 %v744, 112
        %v1039 = vpop.permute.xlu0 %1038
        %v1041 = vsel %vm745, %v1037, 0
        %v1044 = vsel %vm815, %v1039, 0
        %1046 = vmatprep.subr.bf16.mxu0 0
        %1047 = vmatpush1.bf16.msra.mxu0 %v1044
        %1048 = vmatprep.subr.bf16.mxu0 0
        %1049 = vmatpush1.bf16.msra.mxu0 0
        %1050 = vmatprep.subr.bf16.mxu0 0
        %1051 = vmatpush1.bf16.msra.mxu0 0
        %1052 = vmatprep.subr.bf16.mxu0 0
        %1053 = vmatpush1.bf16.msra.mxu0 0
        %1054 = vmatprep.subr.bf16.mxu0 0
        %1055 = vmatpush1.bf16.msra.mxu0 0
        %1056 = vmatprep.subr.bf16.mxu0 0
        %1057 = vmatpush1.bf16.msra.mxu0 0
        %1058 = vmatprep.subr.bf16.mxu0 0
        %1059 = vmatpush1.bf16.msra.mxu0 0
        %1060 = vmatprep.subr.bf16.mxu0 0
        %1061 = vmatpush1.bf16.msra.mxu0 0
        %1062 = vmatprep.subr.bf16.mxu0 0
        %1063 = vmatpush1.bf16.msra.mxu0 0
        %1064 = vmatprep.subr.bf16.mxu0 0
        %1065 = vmatpush1.bf16.msra.mxu0 0
        %1066 = vmatprep.subr.bf16.mxu0 0
        %1067 = vmatpush1.bf16.msra.mxu0 0
        %1068 = vmatprep.subr.bf16.mxu0 0
        %1069 = vmatpush1.bf16.msra.mxu0 0
        %1070 = vmatprep.subr.bf16.mxu0 0
        %1071 = vmatpush1.bf16.msra.mxu0 0
        %1072 = vmatprep.subr.bf16.mxu0 0
        %1073 = vmatpush1.bf16.msra.mxu0 0
        %1074 = vmatprep.subr.bf16.mxu0 0
        %1075 = vmatpush1.bf16.msra.mxu0 0
        %1076 = vmatprep.subr.bf16.mxu0 0
        %1077 = vmatpush1.bf16.msra.mxu0 0
        %1078 = vmatprep.mubr.bf16.mxu0 0
        %1079 = vmatmul.mubr.bf16.gmra.mrb[0].mxu0 %v1041
        %v1080 = vpop.f32.mrb[0].mxu0
        %v1081 = vadd.f32 0.0, %v1080
        %v1082 = vpop.f32.mrb[0].mxu0
        %v1083 = vpop.f32.mrb[0].mxu0
        %v1084 = vpop.f32.mrb[0].mxu0
        %1085 = vdwg.mxu0
        %1086 = vrot.lane.b32.xlu0 %v742, 104
        %v1087 = vpop.permute.xlu0 %1086
        %1088 = vrot.lane.b32.xlu0 %v743, 104
        %v1089 = vpop.permute.xlu0 %1088
        %v1091 = vsel %vm745, %v1087, 0
        %v1094 = vsel %vm745, %v1089, 0
        %1096 = vmatprep.subr.bf16.mxu0 0
        %1097 = vmatpush1.bf16.xpose.msra.mxu0 %v1094
        %1098 = vmatprep.subr.bf16.mxu0 0
        %1099 = vmatpush1.bf16.xpose.msra.mxu0 0
        %1100 = vmatprep.subr.bf16.mxu0 0
        %1101 = vmatpush1.bf16.xpose.msra.mxu0 0
        %1102 = vmatprep.subr.bf16.mxu0 0
        %1103 = vmatpush1.bf16.xpose.msra.mxu0 0
        %1104 = vmatprep.subr.bf16.mxu0 0
        %1105 = vmatpush1.bf16.xpose.msra.mxu0 0
        %1106 = vmatprep.subr.bf16.mxu0 0
        %1107 = vmatpush1.bf16.xpose.msra.mxu0 0
        %1108 = vmatprep.subr.bf16.mxu0 0
        %1109 = vmatpush1.bf16.xpose.msra.mxu0 0
        %1110 = vmatprep.subr.bf16.mxu0 0
        %1111 = vmatpush1.bf16.xpose.msra.mxu0 0
        %1112 = vmatprep.subr.bf16.mxu0 0
        %1113 = vmatpush1.bf16.xpose.msra.mxu0 0
        %1114 = vmatprep.subr.bf16.mxu0 0
        %1115 = vmatpush1.bf16.xpose.msra.mxu0 0
        %1116 = vmatprep.subr.bf16.mxu0 0
        %1117 = vmatpush1.bf16.xpose.msra.mxu0 0
        %1118 = vmatprep.subr.bf16.mxu0 0
        %1119 = vmatpush1.bf16.xpose.msra.mxu0 0
        %1120 = vmatprep.subr.bf16.mxu0 0
        %1121 = vmatpush1.bf16.xpose.msra.mxu0 0
        %1122 = vmatprep.subr.bf16.mxu0 0
        %1123 = vmatpush1.bf16.xpose.msra.mxu0 0
        %1124 = vmatprep.subr.bf16.mxu0 0
        %1125 = vmatpush1.bf16.xpose.msra.mxu0 0
        %1126 = vmatprep.subr.bf16.mxu0 0
        %1127 = vmatpush1.bf16.xpose.msra.mxu0 0
        %1128 = vmatprep.mubr.bf16.mxu0 0
        %1129 = vmatmul.mubr.bf16.gmra.mrb[0].mxu0 %v1091
        %v1130 = vpop.f32.mrb[0].mxu0
        %v1131 = vadd.f32 0.0, %v1130
        %v1132 = vpop.f32.mrb[0].mxu0
        %v1133 = vpop.f32.mrb[0].mxu0
        %v1134 = vpop.f32.mrb[0].mxu0
        %1135 = vdwg.mxu0
        %v1136 = vmul.f32 %v1131, 0.35355338
        %v1137 = vsel %vm798, %v1136, -1e+09
        %v1138 = vsel %vm745, %v1137, -inf
        %1139 = vmax.xlane.f32.xlu0 %v1138
        %v1140 = vpop.xlane.xlu0 %1139
        %v1141 = vsub.f32 %v1137, %v1140
        %v1142 = vmul.f32 %v1141, 1.442695
        %v1143 = vpow.pop %v1142
        %v1144 = vsel %vm745, %v1143, 0.0
        %1145 = vadd.xlane.f32.xlu0 %v1144
        %v1146 = vpop.xlane.xlu0 %1145
        %v1147 = vrcp.pop %v1146
        %v1148 = vmul.f32 %v1143, %v1147
        %v1149 = vpack.c.bf16 %v1148, %v1148
        %1150 = vrot.lane.b32.xlu0 %v744, 104
        %v1151 = vpop.permute.xlu0 %1150
        %v1153 = vsel %vm745, %v1149, 0
        %v1156 = vsel %vm815, %v1151, 0
        %1158 = vmatprep.subr.bf16.mxu0 0
        %1159 = vmatpush1.bf16.msra.mxu0 %v1156
        %1160 = vmatprep.subr.bf16.mxu0 0
        %1161 = vmatpush1.bf16.msra.mxu0 0
        %1162 = vmatprep.subr.bf16.mxu0 0
        %1163 = vmatpush1.bf16.msra.mxu0 0
        %1164 = vmatprep.subr.bf16.mxu0 0
        %1165 = vmatpush1.bf16.msra.mxu0 0
        %1166 = vmatprep.subr.bf16.mxu0 0
        %1167 = vmatpush1.bf16.msra.mxu0 0
        %1168 = vmatprep.subr.bf16.mxu0 0
        %1169 = vmatpush1.bf16.msra.mxu0 0
        %1170 = vmatprep.subr.bf16.mxu0 0
        %1171 = vmatpush1.bf16.msra.mxu0 0
        %1172 = vmatprep.subr.bf16.mxu0 0
        %1173 = vmatpush1.bf16.msra.mxu0 0
        %1174 = vmatprep.subr.bf16.mxu0 0
        %1175 = vmatpush1.bf16.msra.mxu0 0
        %1176 = vmatprep.subr.bf16.mxu0 0
        %1177 = vmatpush1.bf16.msra.mxu0 0
        %1178 = vmatprep.subr.bf16.mxu0 0
        %1179 = vmatpush1.bf16.msra.mxu0 0
        %1180 = vmatprep.subr.bf16.mxu0 0
        %1181 = vmatpush1.bf16.msra.mxu0 0
        %1182 = vmatprep.subr.bf16.mxu0 0
        %1183 = vmatpush1.bf16.msra.mxu0 0
        %1184 = vmatprep.subr.bf16.mxu0 0
        %1185 = vmatpush1.bf16.msra.mxu0 0
        %1186 = vmatprep.subr.bf16.mxu0 0
        %1187 = vmatpush1.bf16.msra.mxu0 0
        %1188 = vmatprep.subr.bf16.mxu0 0
        %1189 = vmatpush1.bf16.msra.mxu0 0
        %1190 = vmatprep.mubr.bf16.mxu0 0
        %1191 = vmatmul.mubr.bf16.gmra.mrb[0].mxu0 %v1153
        %v1192 = vpop.f32.mrb[0].mxu0
        %v1193 = vadd.f32 0.0, %v1192
        %v1194 = vpop.f32.mrb[0].mxu0
        %v1195 = vpop.f32.mrb[0].mxu0
        %v1196 = vpop.f32.mrb[0].mxu0
        %1197 = vdwg.mxu0
        %1199 = vrot.lane.b32.xlu0 %v969, 8
        %v1200 = vpop.permute.xlu0 %1199
        %1203 = vrot.lane.b32.xlu0 %v1081, 16
        %v1204 = vpop.permute.xlu0 %1203
        %1207 = vrot.lane.b32.xlu0 %v1193, 24
        %v1208 = vpop.permute.xlu0 %1207
        %v1210 = vsel %vm745, %v854, %v1200
        %vm1211 = vcmask 130048
        %v1212 = vsel %vm1211, %v1210, %v1204
        %vm1213 = vcmask 195584
        %v1214 = vsel %vm1213, %v1212, %v1208
        %vm1215 = vcmask 261120
        %v1216 = vsel %vm1215, %v1214, 0.0
        %v1217 = vpack.c.bf16 %v1216, %v1216
        %v1218 = vlaneseq
        %v1219 = vshrl.u32 %v1218, 7
        %v1220 = vsub.s32 3, %v1219
        %v1221 = vrot.slane %v465, %v1220
        %v1238 = vunpack.c.l.b16 %v726
        %v1239 = vunpack.c.l.b16 %v727
        %v1240 = vunpack.c.l.b16 %v728
        %v1241 = vunpack.c.l.b16 %v729
        %v1242 = vunpack.c.l.b16 %v730
        %v1243 = vunpack.c.l.b16 %v731
        %v1244 = vunpack.c.l.b16 %v732
        %v1245 = vunpack.c.l.b16 %v733
        %v1246 = vunpack.c.l.b16 %v734
        %v1247 = vunpack.c.l.b16 %v735
        %v1248 = vunpack.c.l.b16 %v736
        %v1249 = vunpack.c.l.b16 %v737
        %v1250 = vunpack.c.l.b16 %v738
        %v1251 = vunpack.c.l.b16 %v739
        %v1252 = vunpack.c.l.b16 %v740
        %v1253 = vunpack.c.l.b16 %v741
        %v1254 = vpack.c.b16 %v1239, %v1238
        %v1255 = vpack.c.b16 %v1241, %v1240
        %v1256 = vpack.c.b16 %v1243, %v1242
        %v1257 = vpack.c.b16 %v1245, %v1244
        %v1258 = vpack.c.b16 %v1247, %v1246
        %v1259 = vpack.c.b16 %v1249, %v1248
        %v1260 = vpack.c.b16 %v1251, %v1250
        %v1261 = vpack.c.b16 %v1253, %v1252
        %1270 = vmatprep.subr.bf16.mxu0 0
        %1271 = vmatpush1.bf16.msra.mxu0 %v1254
        %1272 = vmatprep.subr.bf16.mxu0 0
        %1273 = vmatpush1.bf16.msra.mxu0 %v1255
        %1274 = vmatprep.subr.bf16.mxu0 0
        %1275 = vmatpush1.bf16.msra.mxu0 %v1256
        %1276 = vmatprep.subr.bf16.mxu0 0
        %1277 = vmatpush1.bf16.msra.mxu0 %v1257
        %1278 = vmatprep.subr.bf16.mxu0 0
        %1279 = vmatpush1.bf16.msra.mxu0 %v1258
        %1280 = vmatprep.subr.bf16.mxu0 0
        %1281 = vmatpush1.bf16.msra.mxu0 %v1259
        %1282 = vmatprep.subr.bf16.mxu0 0
        %1283 = vmatpush1.bf16.msra.mxu0 %v1260
        %1284 = vmatprep.subr.bf16.mxu0 0
        %1285 = vmatpush1.bf16.msra.mxu0 %v1261
        %1286 = vmatprep.subr.bf16.mxu0 0
        %1287 = vmatpush1.bf16.msra.mxu0 0
        %1288 = vmatprep.subr.bf16.mxu0 0
        %1289 = vmatpush1.bf16.msra.mxu0 0
        %1290 = vmatprep.subr.bf16.mxu0 0
        %1291 = vmatpush1.bf16.msra.mxu0 0
        %1292 = vmatprep.subr.bf16.mxu0 0
        %1293 = vmatpush1.bf16.msra.mxu0 0
        %1294 = vmatprep.subr.bf16.mxu0 0
        %1295 = vmatpush1.bf16.msra.mxu0 0
        %1296 = vmatprep.subr.bf16.mxu0 0
        %1297 = vmatpush1.bf16.msra.mxu0 0
        %1298 = vmatprep.subr.bf16.mxu0 0
        %1299 = vmatpush1.bf16.msra.mxu0 0
        %1300 = vmatprep.subr.bf16.mxu0 0
        %1301 = vmatpush1.bf16.msra.mxu0 0
        %1302 = vmatprep.mubr.bf16.mxu0 0
        %1303 = vmatmul.mubr.bf16.gmra.mrb[0].mxu0 %v1217
        %v1304 = vpop.f32.mrb[0].mxu0
        %v1305 = vadd.f32 %v1221, %v1304
        %v1306 = vpop.f32.mrb[0].mxu0
        %v1307 = vpop.f32.mrb[0].mxu0
        %v1308 = vpop.f32.mrb[0].mxu0
        %1309 = vdwg.mxu0
        %v1310 = vadd.f32 %v464, %v1305
        %v1311 = vlaneseq
        %v1312 = vand.u32 %v1311, 127
        %vm1313 = vcmp.lt.s32.totalorder %v1312, 32
        %v1314 = vsel %vm1313, %v1310, 0.0
        %1315 = vadd.xlane.f32.xlu0 %v1314
        %v1316 = vpop.xlane.xlu0 %1315
        %v1317 = vmul.f32 %v1316, 0.03125
        %v1318 = vsub.f32 %v1310, %v1317
        %v1319 = vsel %vm1313, %v1318, 0.0
        %v1320 = vmul.f32 %v1319, %v1319
        %1321 = vadd.xlane.f32.xlu0 %v1320
        %v1322 = vpop.xlane.xlu0 %1321
        %v1323 = vmul.f32 %v1322, 0.03125
        %v1324 = vadd.f32 %v1323, 1e-05
        %v1325 = vrsqrt.pop %v1324
        %v1326 = vmul.f32 %v1319, %v1325
        %v1327 = vlaneseq
        %v1328 = vshrl.u32 %v1327, 7
        %v1329 = vsub.s32 4, %v1328
        %v1330 = vrot.slane %v465, %v1329
        %v1331 = vmul.f32 %v1326, %v1330
        %v1332 = vlaneseq
        %v1333 = vshrl.u32 %v1332, 7
        %v1334 = vsub.s32 5, %v1333
        %v1335 = vrot.slane %v465, %v1334
        %v1336 = vadd.f32 %v1331, %v1335
        %v1337 = vpack.c.bf16 %v1336, %v1336
        %v1338 = vld [vmem:[%s370] sm:$0xf]
        %v1339 = vld [vmem:[%s370 + $0x4] sm:$0xf]
        %v1340 = vld [vmem:[%s370 + $0x8] sm:$0xf]
        %v1341 = vld [vmem:[%s370 + $0xc] sm:$0xf]
        %v1342 = vld [vmem:[%s370 + $0x10] sm:$0xf]
        %v1343 = vld [vmem:[%s370 + $0x14] sm:$0xf]
        %v1344 = vld [vmem:[%s370 + $0x18] sm:$0xf]
        %v1345 = vld [vmem:[%s370 + $0x1c] sm:$0xf]
        %v1346 = vld [vmem:[%s370 + $0x20] sm:$0xf]
        %v1347 = vld [vmem:[%s370 + $0x24] sm:$0xf]
        %v1348 = vld [vmem:[%s370 + $0x28] sm:$0xf]
        %v1349 = vld [vmem:[%s370 + $0x2c] sm:$0xf]
        %v1350 = vld [vmem:[%s370 + $0x30] sm:$0xf]
        %v1351 = vld [vmem:[%s370 + $0x34] sm:$0xf]
        %v1352 = vld [vmem:[%s370 + $0x38] sm:$0xf]
        %v1353 = vld [vmem:[%s370 + $0x3c] sm:$0xf]
        %v1354 = vlaneseq
        %v1355 = vshrl.u32 %v1354, 7
        %v1356 = vsub.s32 6, %v1355
        %v1357 = vrot.slane %v465, %v1356
        %v1374 = vunpack.c.l.b16 %v1338
        %v1375 = vunpack.c.l.b16 %v1339
        %v1376 = vunpack.c.l.b16 %v1340
        %v1377 = vunpack.c.l.b16 %v1341
        %v1378 = vunpack.c.l.b16 %v1342
        %v1379 = vunpack.c.l.b16 %v1343
        %v1380 = vunpack.c.l.b16 %v1344
        %v1381 = vunpack.c.l.b16 %v1345
        %v1382 = vunpack.c.l.b16 %v1346
        %v1383 = vunpack.c.l.b16 %v1347
        %v1384 = vunpack.c.l.b16 %v1348
        %v1385 = vunpack.c.l.b16 %v1349
        %v1386 = vunpack.c.l.b16 %v1350
        %v1387 = vunpack.c.l.b16 %v1351
        %v1388 = vunpack.c.l.b16 %v1352
        %v1389 = vunpack.c.l.b16 %v1353
        %v1390 = vpack.c.b16 %v1375, %v1374
        %v1391 = vpack.c.b16 %v1377, %v1376
        %v1392 = vpack.c.b16 %v1379, %v1378
        %v1393 = vpack.c.b16 %v1381, %v1380
        %v1394 = vpack.c.b16 %v1383, %v1382
        %v1395 = vpack.c.b16 %v1385, %v1384
        %v1396 = vpack.c.b16 %v1387, %v1386
        %v1397 = vpack.c.b16 %v1389, %v1388
        %1406 = vmatprep.subr.bf16.mxu0 0
        %1407 = vmatpush1.bf16.msra.mxu0 %v1390
        %1408 = vmatprep.subr.bf16.mxu0 0
        %1409 = vmatpush1.bf16.msra.mxu0 %v1391
        %1410 = vmatprep.subr.bf16.mxu0 0
        %1411 = vmatpush1.bf16.msra.mxu0 %v1392
        %1412 = vmatprep.subr.bf16.mxu0 0
        %1413 = vmatpush1.bf16.msra.mxu0 %v1393
        %1414 = vmatprep.subr.bf16.mxu0 0
        %1415 = vmatpush1.bf16.msra.mxu0 %v1394
        %1416 = vmatprep.subr.bf16.mxu0 0
        %1417 = vmatpush1.bf16.msra.mxu0 %v1395
        %1418 = vmatprep.subr.bf16.mxu0 0
        %1419 = vmatpush1.bf16.msra.mxu0 %v1396
        %1420 = vmatprep.subr.bf16.mxu0 0
        %1421 = vmatpush1.bf16.msra.mxu0 %v1397
        %1422 = vmatprep.subr.bf16.mxu0 0
        %1423 = vmatpush1.bf16.msra.mxu0 0
        %1424 = vmatprep.subr.bf16.mxu0 0
        %1425 = vmatpush1.bf16.msra.mxu0 0
        %1426 = vmatprep.subr.bf16.mxu0 0
        %1427 = vmatpush1.bf16.msra.mxu0 0
        %1428 = vmatprep.subr.bf16.mxu0 0
        %1429 = vmatpush1.bf16.msra.mxu0 0
        %1430 = vmatprep.subr.bf16.mxu0 0
        %1431 = vmatpush1.bf16.msra.mxu0 0
        %1432 = vmatprep.subr.bf16.mxu0 0
        %1433 = vmatpush1.bf16.msra.mxu0 0
        %1434 = vmatprep.subr.bf16.mxu0 0
        %1435 = vmatpush1.bf16.msra.mxu0 0
        %1436 = vmatprep.subr.bf16.mxu0 0
        %1437 = vmatpush1.bf16.msra.mxu0 0
        %1438 = vmatprep.mubr.bf16.mxu0 0
        %1439 = vmatmul.mubr.bf16.gmra.mrb[0].mxu0 %v1337
        %v1440 = vpop.f32.mrb[0].mxu0
        %v1441 = vadd.f32 %v1357, %v1440
        %v1442 = vpop.f32.mrb[0].mxu0
        %v1443 = vpop.f32.mrb[0].mxu0
        %v1444 = vpop.f32.mrb[0].mxu0
        %1445 = vdwg.mxu0
        %v1446 = vmax.f32 %v1441, 0.0
        %v1447 = vpack.c.bf16 %v1446, %v1446
        %v1448 = vld [vmem:[%s379] sm:$0xf]
        %v1449 = vld [vmem:[%s379 + $0x4] sm:$0xf]
        %v1450 = vld [vmem:[%s379 + $0x8] sm:$0xf]
        %v1451 = vld [vmem:[%s379 + $0xc] sm:$0xf]
        %v1452 = vld [vmem:[%s379 + $0x10] sm:$0xf]
        %v1453 = vld [vmem:[%s379 + $0x14] sm:$0xf]
        %v1454 = vld [vmem:[%s379 + $0x18] sm:$0xf]
        %v1455 = vld [vmem:[%s379 + $0x1c] sm:$0xf]
        %v1456 = vld [vmem:[%s379 + $0x20] sm:$0xf]
        %v1457 = vld [vmem:[%s379 + $0x24] sm:$0xf]
        %v1458 = vld [vmem:[%s379 + $0x28] sm:$0xf]
        %v1459 = vld [vmem:[%s379 + $0x2c] sm:$0xf]
        %v1460 = vld [vmem:[%s379 + $0x30] sm:$0xf]
        %v1461 = vld [vmem:[%s379 + $0x34] sm:$0xf]
        %v1462 = vld [vmem:[%s379 + $0x38] sm:$0xf]
        %v1463 = vld [vmem:[%s379 + $0x3c] sm:$0xf]
        %v1464 = vlaneseq
        %v1465 = vshrl.u32 %v1464, 7
        %v1466 = vsub.s32 7, %v1465
        %v1467 = vrot.slane %v465, %v1466
        %v1484 = vunpack.c.l.b16 %v1448
        %v1485 = vunpack.c.l.b16 %v1449
        %v1486 = vunpack.c.l.b16 %v1450
        %v1487 = vunpack.c.l.b16 %v1451
        %v1488 = vunpack.c.l.b16 %v1452
        %v1489 = vunpack.c.l.b16 %v1453
        %v1490 = vunpack.c.l.b16 %v1454
        %v1491 = vunpack.c.l.b16 %v1455
        %v1492 = vunpack.c.l.b16 %v1456
        %v1493 = vunpack.c.l.b16 %v1457
        %v1494 = vunpack.c.l.b16 %v1458
        %v1495 = vunpack.c.l.b16 %v1459
        %v1496 = vunpack.c.l.b16 %v1460
        %v1497 = vunpack.c.l.b16 %v1461
        %v1498 = vunpack.c.l.b16 %v1462
        %v1499 = vunpack.c.l.b16 %v1463
        %v1500 = vpack.c.b16 %v1485, %v1484
        %v1501 = vpack.c.b16 %v1487, %v1486
        %v1502 = vpack.c.b16 %v1489, %v1488
        %v1503 = vpack.c.b16 %v1491, %v1490
        %v1504 = vpack.c.b16 %v1493, %v1492
        %v1505 = vpack.c.b16 %v1495, %v1494
        %v1506 = vpack.c.b16 %v1497, %v1496
        %v1507 = vpack.c.b16 %v1499, %v1498
        %1516 = vmatprep.subr.bf16.mxu0 0
        %1517 = vmatpush1.bf16.msra.mxu0 %v1500
        %1518 = vmatprep.subr.bf16.mxu0 0
        %1519 = vmatpush1.bf16.msra.mxu0 %v1501
        %1520 = vmatprep.subr.bf16.mxu0 0
        %1521 = vmatpush1.bf16.msra.mxu0 %v1502
        %1522 = vmatprep.subr.bf16.mxu0 0
        %1523 = vmatpush1.bf16.msra.mxu0 %v1503
        %1524 = vmatprep.subr.bf16.mxu0 0
        %1525 = vmatpush1.bf16.msra.mxu0 %v1504
        %1526 = vmatprep.subr.bf16.mxu0 0
        %1527 = vmatpush1.bf16.msra.mxu0 %v1505
        %1528 = vmatprep.subr.bf16.mxu0 0
        %1529 = vmatpush1.bf16.msra.mxu0 %v1506
        %1530 = vmatprep.subr.bf16.mxu0 0
        %1531 = vmatpush1.bf16.msra.mxu0 %v1507
        %1532 = vmatprep.subr.bf16.mxu0 0
        %1533 = vmatpush1.bf16.msra.mxu0 0
        %1534 = vmatprep.subr.bf16.mxu0 0
        %1535 = vmatpush1.bf16.msra.mxu0 0
        %1536 = vmatprep.subr.bf16.mxu0 0
        %1537 = vmatpush1.bf16.msra.mxu0 0
        %1538 = vmatprep.subr.bf16.mxu0 0
        %1539 = vmatpush1.bf16.msra.mxu0 0
        %1540 = vmatprep.subr.bf16.mxu0 0
        %1541 = vmatpush1.bf16.msra.mxu0 0
        %1542 = vmatprep.subr.bf16.mxu0 0
        %1543 = vmatpush1.bf16.msra.mxu0 0
        %1544 = vmatprep.subr.bf16.mxu0 0
        %1545 = vmatpush1.bf16.msra.mxu0 0
        %1546 = vmatprep.subr.bf16.mxu0 0
        %1547 = vmatpush1.bf16.msra.mxu0 0
        %1548 = vmatprep.mubr.bf16.mxu0 0
        %1549 = vmatmul.mubr.bf16.gmra.mrb[0].mxu0 %v1447
        %v1550 = vpop.f32.mrb[0].mxu0
        %v1551 = vadd.f32 %v1467, %v1550
        %v1552 = vpop.f32.mrb[0].mxu0
        %v1553 = vpop.f32.mrb[0].mxu0
        %v1554 = vpop.f32.mrb[0].mxu0
        %1555 = vdwg.mxu0
        %v1556 = vadd.f32 %v1336, %v1551
        %v1557 = vsel %vm1313, %v1556, 0.0
        %1558 = vadd.xlane.f32.xlu0 %v1557
        %v1559 = vpop.xlane.xlu0 %1558
        %v1560 = vmul.f32 %v1559, 0.03125
        %v1561 = vsub.f32 %v1556, %v1560
        %v1562 = vsel %vm1313, %v1561, 0.0
        %v1563 = vmul.f32 %v1562, %v1562
        %1564 = vadd.xlane.f32.xlu0 %v1563
        %v1565 = vpop.xlane.xlu0 %1564
        %v1566 = vmul.f32 %v1565, 0.03125
        %v1567 = vadd.f32 %v1566, 1e-05
        %v1568 = vrsqrt.pop %v1567
        %v1569 = vmul.f32 %v1562, %v1568
        %v1570 = vlaneseq
        %v1571 = vshrl.u32 %v1570, 7
        %v1572 = vsub.s32 0, %v1571
        %v1573 = vrot.slane %v466, %v1572
        %v1574 = vmul.f32 %v1569, %v1573
        %v1575 = vlaneseq
        %v1576 = vshrl.u32 %v1575, 7
        %v1577 = vsub.s32 1, %v1576
        %v1578 = vrot.slane %v466, %v1577
        %v1579 = vadd.f32 %v1574, %v1578
        %1580 = vst [vmem:[#allocation2] sm:$0xff] %v1579
        %p1581 = scmp.eq.s32.totalorder %s29, 1
        // Predicated region
        $region65: #{transformer_forward.2} parent=47 // pred_check
          %p1582 = pneg %p1581
        $region66: #{transformer_forward.2} parent=47 // pred_check_branch
          %1584 = sbr.rel (%p1582) target = $region68
        $region67: #{transformer_forward.2} parent=47 // pred_region
          %1585 = vst [vmem:[%s456] sm:$0xff] %v1579
        $region68: #{transformer_forward.2} parent=47 // pred_fallthru
          _
        %p1586 = scmp.lt.s32.totalorder %s28, 1
        %s1587 = scalar_select %p1586, %s28, 1
        %s1588 = smul.addr %s1587, 8
        %s1589 = scalar_lea.vmem %s7, %s1588
        // Predicated region
        $region69: #{transformer_forward.2} parent=47 // pred_check
          %p1590 = pneg %p236
        $region70: #{transformer_forward.2} parent=47 // pred_check_branch
          %1592 = sbr.rel (%p1590) target = $region72
        $region71: #{transformer_forward.2} parent=47 // pred_region
          _
        $region72: #{transformer_forward.2} parent=47 // pred_fallthru
          _
      $region48: #{transformer_forward.2} parent=5 // pred_fallthru
        _
      %p1593 = scmp.le.s32.totalorder 2, %s19
      // Predicated region
      $region73: #{transformer_forward.2} parent=5 // pred_check
        %p1594 = pneg %p1593
      $region74: #{transformer_forward.2} parent=5 // pred_check_branch
        %1596 = sbr.rel (%p1594) target = $region76
      $region75: #{transformer_forward.2} parent=5 // pred_region
        %s1597 = ssub.s32 %s19, 2
        // Predicated region
        $region77: #{transformer_forward.2} parent=75 // pred_check
          %p1598 = pneg %p242
        $region78: #{transformer_forward.2} parent=75 // pred_check_branch
          %1600 = sbr.rel (%p1598) target = $region80
        $region79: #{transformer_forward.2} parent=75 // pred_region
          %p1601 = scmp.lt.s32.totalorder %s30, 1
          %s1602 = scalar_select %p1601, %s30, 1
          %s1603 = smul.addr %s1602, 8
          %s1604 = scalar_lea.vmem %s7, %s1603
        $region80: #{transformer_forward.2} parent=75 // pred_fallthru
          _
      $region76: #{transformer_forward.2} parent=5 // pred_fallthru
        _
    $region6: #{transformer_forward.2} parent=1 // loop_footer
      %s23 = sadd.s32 1, %s19
    $region7: #{transformer_forward.2} parent=1 // loop_footer_branch
      %18 = sbr.rel target = $region3
    $region8: #{transformer_forward.2} parent=1 // loop_exit
      _
    %1605 = vsyncpa [#allocation4], 1
    %s1606 = scalar_lea.sflag [#allocation4], 1
    %1607 = vsyncpa %s1606, 1
    %1608 = vsyncpa [#allocation6], 1
    %s1609 = scalar_lea.sflag [#allocation6], 1
    %1610 = vsyncpa %s1609, 1

// kernel: transformer_forward.3
$region0: #{transformer_forward.3}
  #allocation0 [shape = 'u32[]', space=smem, size = 0x4, offset = 0x4, fixed_abs, tag = 'smem constant byte address 0x4 - core index']
  #allocation1 [shape = 'u32[144,128]{1,0:T(1,128)}', space=vmem, size = 0x12000, scoped, tag = 'internal scratch']
  #allocation2 [shape = 'f32[8,128]{1,0:T(8,128)}', space=vmem, size = 0x1000, scoped, tag = 'scratch operand']
  %s0 = inlined_call_operand.vmem [shape: f32[2,8,128], index: 0, kind: input, shape index: {}]
  %s1 = inlined_call_operand.vmem [shape: f32[2,8,128], index: 1, kind: input, shape index: {}]
  %s2 = inlined_call_operand.vmem [shape: f32[2,1,8], index: 2, kind: input, shape index: {}]
  %s3 = inlined_call_operand.vmem [shape: f32[2,8,1], index: 3, kind: input, shape index: {}]
  %s4 = inlined_call_operand.vmem [shape: bf16[2,128,384], index: 4, kind: input, shape index: {}]
  %s5 = inlined_call_operand.vmem [shape: bf16[2,128,128], index: 5, kind: input, shape index: {}]
  %s6 = inlined_call_operand.vmem [shape: bf16[2,128,128], index: 6, kind: input, shape index: {}]
  %s7 = inlined_call_operand.vmem [shape: bf16[2,128,256], index: 7, kind: input, shape index: {}]
  %s8 = inlined_call_operand.hbm [shape: bf16[2,128,128], index: 8, kind: input, shape index: {}]
  %s9 = inlined_call_operand.hbm [shape: bf16[2,128,128], index: 9, kind: input, shape index: {}]
  %s10 = inlined_call_operand.hbm [shape: bf16[2,128,128], index: 10, kind: input, shape index: {}]
  %s11 = inlined_call_operand.hbm [shape: f32[2,16,128], index: 11, kind: input, shape index: {}]
  %s12 = inlined_call_operand.hbm [shape: bf16[128,128], index: 12, kind: input, shape index: {}]
  %s13 = inlined_call_operand.hbm [shape: f32[1,128], index: 13, kind: input, shape index: {}]
  %s14 = inlined_call_operand.hbm [shape: f32[2,8,128], index: 14, kind: output, shape index: {}]
  %s15 = sld [smem:[#allocation0]]
  $region121: #{transformer_forward.3} parent=0
    _
  %s17 = ssub.s32 1, %s15
  %s18 = scalar_select 0, %s17, %s15
  $region1: #{transformer_forward.3} parent=0
    #allocation3 [shape = 'u8[65536]{0}', space=vmem, size = 0x10000, scoped, tag = 'input window, operand 8']
    #allocation4 [shape = 's32[2]{0}', space=sflag, size = 0x8, scoped, tag = 'scoped memory for transformer_forward.3']
    #allocation5 [shape = 's32[2]{0}', space=sflag, size = 0x8, scoped, tag = 'scoped memory for transformer_forward.3']
    #allocation6 [shape = 'u8[65536]{0}', space=vmem, size = 0x10000, scoped, tag = 'input window, operand 9']
    #allocation7 [shape = 's32[2]{0}', space=sflag, size = 0x8, scoped, tag = 'scoped memory for transformer_forward.3']
    #allocation8 [shape = 'u8[65536]{0}', space=vmem, size = 0x10000, scoped, tag = 'input window, operand 10']
    #allocation9 [shape = 'u8[16384]{0}', space=vmem, size = 0x4000, scoped, tag = 'input window, operand 11']
    #allocation10 [shape = 's32[2]{0}', space=sflag, size = 0x8, scoped, tag = 'scoped memory for transformer_forward.3']
    #allocation11 [shape = 'u8[32768]{0}', space=vmem, size = 0x8000, scoped, tag = 'input window, operand 12, single buffered']
    #allocation12 [shape = 'u8[512]{0}', space=vmem, size = 0x400, scoped, tag = 'input window, operand 13, single buffered']
    #allocation13 [shape = 's32[1]{0}', space=sflag, size = 0x4, scoped, tag = 'scoped memory for transformer_forward.3']
    #allocation14 [shape = 'u8[8192]{0}', space=vmem, size = 0x2000, scoped, tag = 'output window, operand 0']
    %19 = vsyncpa [#allocation4], 0
    %s20 = scalar_lea.sflag [#allocation4], 1
    %21 = vsyncpa %s20, 0
    %22 = vsyncpa [#allocation7], 0
    %s23 = scalar_lea.sflag [#allocation7], 1
    %24 = vsyncpa %s23, 0
    %25 = vsyncpa [#allocation10], 0
    %s26 = scalar_lea.sflag [#allocation10], 1
    %27 = vsyncpa %s26, 0
    %28 = vsyncpa [#allocation13], 0
    %29 = vsyncpa [#allocation5], 0
    %s30 = scalar_lea.sflag [#allocation5], 1
    %31 = vsyncpa %s30, 0
    loop: start=0, step=1, limit=6
    $region2: #{transformer_forward.3} parent=1 // loop_pre_header
      _
    $region3: #{transformer_forward.3} parent=1 // loop_header
      %s33 = sphi 0, %s37
      %p34 = scmp.ge.s32.totalorder %s33, 6
      %s40 = sphi 0, %s52
      %s41 = sphi 0, %s48
      %s42 = sphi 0, %s40
      %s43 = sphi 0, %s41
      %s44 = sphi 0, %s42
      %s45 = sphi 0, %s43
      %s55 = sphi 0, %s57
      %s58 = sphi 0, %s55
      %s59 = sphi 0, %s58
      %s75 = sphi 0, %s59
      %s81 = sphi 0, %s83
      %s84 = sphi 0, %s81
      %s85 = sphi 0, %s84
      %s101 = sphi 0, %s85
      %s107 = sphi 0, %s109
      %s110 = sphi 0, %s107
      %s111 = sphi 0, %s110
      %s127 = sphi 0, %s111
      %s133 = sphi 0, %s135
      %s136 = sphi 0, %s133
      %s137 = sphi 0, %s136
      %s153 = sphi 0, %s137
      %s159 = sphi 0, %s161
      %s162 = sphi 0, %s159
      %s163 = sphi 0, %s162
      %s179 = sphi 0, %s163
      %s185 = sphi 0, %s187
      %s188 = sphi 0, %s185
      %s189 = sphi 0, %s188
      %s205 = sphi 0, %s189
      %s211 = sphi 0, %s213
      %s214 = sphi 0, %s211
      %s215 = sphi 0, %s214
      %s231 = sphi 0, %s215
      %s237 = sphi 0, %s239
      %s240 = sphi 0, %s237
      %s241 = sphi 0, %s240
      %s257 = sphi 0, %s241
      %s263 = sphi 0, %s265
      %s266 = sphi 0, %s263
      %s267 = sphi 0, %s266
      %s283 = sphi 0, %s267
      %s289 = sphi 0, %s291
      %s292 = sphi 0, %s289
      %s293 = sphi 0, %s292
      %s309 = sphi 0, %s293
      %s315 = sphi 0, %s317
      %s318 = sphi 0, %s315
      %s319 = sphi 0, %s318
      %s335 = sphi 0, %s319
      %s341 = sphi 0, %s343
      %s344 = sphi 0, %s341
      %s345 = sphi 0, %s344
      %s361 = sphi 0, %s345
      %s365 = sphi 0, %s365
      %s367 = sphi 0, %s365
      %s368 = sphi 0, %s367
      %s382 = sphi 0, %s368
      %s386 = sphi 0, %s386
      %s388 = sphi 0, %s386
      %s389 = sphi 0, %s388
      %s403 = sphi 0, %s389
      %s409 = sphi 0, %s411
      %s412 = sphi 0, %s409
      %s413 = sphi 0, %s412
      %s429 = sphi 0, %s413
    $region4: #{transformer_forward.3} parent=1 // loop_header_branch
      %36 = sbr.rel (%p34) target = $region8
    $region5: #{transformer_forward.3} parent=1 // loop_body
      %s38 = ssub.s32 %s33, 1
      %s39 = ssub.s32 %s33, 2
      %s46 = sadd.s32 1, %s41
      %p47 = scmp.ge.s32.totalorder %s46, 2
      %s48 = scalar_select %p47, 0, %s46
      %s49 = sadd.s32 1, %s40
      %s50 = scalar_select %p47, %s49, %s40
      %p51 = scmp.ge.s32.totalorder %s50, 2
      %s52 = scalar_select %p51, 0, %s50
      %s53 = ssub.s32 %s40, %s52
      %p54 = scmp.eq.s32.totalorder %s53, 0
      %s56 = sadd.s32 %s55, 1
      %s57 = scalar_select %p54, %s55, %s56
      %p60 = pneg %p54
      %p61 = scmp.eq.s32.totalorder %s33, 3
      %p62 = por %p60, %p61
      %p63 = scmp.ne.s32.totalorder %s55, %s58
      %p64 = scmp.eq.s32.totalorder %s33, 0
      %p65 = por %p63, %p64
      %p66 = scmp.ne.s32.totalorder %s55, %s58
      %p67 = scmp.eq.s32.totalorder %s38, 3
      %p68 = por %p66, %p67
      %p69 = scmp.ne.s32.totalorder %s58, %s59
      %p70 = scmp.eq.s32.totalorder %s38, 0
      %p71 = por %p69, %p70
      %p72 = scmp.ne.s32.totalorder %s58, %s59
      %p73 = scmp.eq.s32.totalorder %s39, 3
      %p74 = por %p72, %p73
      %p76 = scmp.ne.s32.totalorder %s59, %s75
      %p77 = scmp.eq.s32.totalorder %s39, 0
      %p78 = por %p76, %p77
      %s79 = ssub.s32 %s40, %s52
      %p80 = scmp.eq.s32.totalorder %s79, 0
      %s82 = sadd.s32 %s81, 1
      %s83 = scalar_select %p80, %s81, %s82
      %p86 = pneg %p80
      %p87 = scmp.eq.s32.totalorder %s33, 3
      %p88 = por %p86, %p87
      %p89 = scmp.ne.s32.totalorder %s81, %s84
      %p90 = scmp.eq.s32.totalorder %s33, 0
      %p91 = por %p89, %p90
      %p92 = scmp.ne.s32.totalorder %s81, %s84
      %p93 = scmp.eq.s32.totalorder %s38, 3
      %p94 = por %p92, %p93
      %p95 = scmp.ne.s32.totalorder %s84, %s85
      %p96 = scmp.eq.s32.totalorder %s38, 0
      %p97 = por %p95, %p96
      %p98 = scmp.ne.s32.totalorder %s84, %s85
      %p99 = scmp.eq.s32.totalorder %s39, 3
      %p100 = por %p98, %p99
      %p102 = scmp.ne.s32.totalorder %s85, %s101
      %p103 = scmp.eq.s32.totalorder %s39, 0
      %p104 = por %p102, %p103
      %s105 = ssub.s32 %s40, %s52
      %p106 = scmp.eq.s32.totalorder %s105, 0
      %s108 = sadd.s32 %s107, 1
      %s109 = scalar_select %p106, %s107, %s108
      %p112 = pneg %p106
      %p113 = scmp.eq.s32.totalorder %s33, 3
      %p114 = por %p112, %p113
      %p115 = scmp.ne.s32.totalorder %s107, %s110
      %p116 = scmp.eq.s32.totalorder %s33, 0
      %p117 = por %p115, %p116
      %p118 = scmp.ne.s32.totalorder %s107, %s110
      %p119 = scmp.eq.s32.totalorder %s38, 3
      %p120 = por %p118, %p119
      %p121 = scmp.ne.s32.totalorder %s110, %s111
      %p122 = scmp.eq.s32.totalorder %s38, 0
      %p123 = por %p121, %p122
      %p124 = scmp.ne.s32.totalorder %s110, %s111
      %p125 = scmp.eq.s32.totalorder %s39, 3
      %p126 = por %p124, %p125
      %p128 = scmp.ne.s32.totalorder %s111, %s127
      %p129 = scmp.eq.s32.totalorder %s39, 0
      %p130 = por %p128, %p129
      %s131 = ssub.s32 %s40, %s52
      %p132 = scmp.eq.s32.totalorder %s131, 0
      %s134 = sadd.s32 %s133, 1
      %s135 = scalar_select %p132, %s133, %s134
      %p138 = pneg %p132
      %p139 = scmp.eq.s32.totalorder %s33, 3
      %p140 = por %p138, %p139
      %p141 = scmp.ne.s32.totalorder %s133, %s136
      %p142 = scmp.eq.s32.totalorder %s33, 0
      %p143 = por %p141, %p142
      %p144 = scmp.ne.s32.totalorder %s133, %s136
      %p145 = scmp.eq.s32.totalorder %s38, 3
      %p146 = por %p144, %p145
      %p147 = scmp.ne.s32.totalorder %s136, %s137
      %p148 = scmp.eq.s32.totalorder %s38, 0
      %p149 = por %p147, %p148
      %p150 = scmp.ne.s32.totalorder %s136, %s137
      %p151 = scmp.eq.s32.totalorder %s39, 3
      %p152 = por %p150, %p151
      %p154 = scmp.ne.s32.totalorder %s137, %s153
      %p155 = scmp.eq.s32.totalorder %s39, 0
      %p156 = por %p154, %p155
      %s157 = ssub.s32 %s41, %s48
      %p158 = scmp.eq.s32.totalorder %s157, 0
      %s160 = sadd.s32 %s159, 1
      %s161 = scalar_select %p158, %s159, %s160
      %p164 = pneg %p158
      %p165 = scmp.eq.s32.totalorder %s33, 3
      %p166 = por %p164, %p165
      %p167 = scmp.ne.s32.totalorder %s159, %s162
      %p168 = scmp.eq.s32.totalorder %s33, 0
      %p169 = por %p167, %p168
      %p170 = scmp.ne.s32.totalorder %s159, %s162
      %p171 = scmp.eq.s32.totalorder %s38, 3
      %p172 = por %p170, %p171
      %p173 = scmp.ne.s32.totalorder %s162, %s163
      %p174 = scmp.eq.s32.totalorder %s38, 0
      %p175 = por %p173, %p174
      %p176 = scmp.ne.s32.totalorder %s162, %s163
      %p177 = scmp.eq.s32.totalorder %s39, 3
      %p178 = por %p176, %p177
      %p180 = scmp.ne.s32.totalorder %s163, %s179
      %p181 = scmp.eq.s32.totalorder %s39, 0
      %p182 = por %p180, %p181
      %s183 = ssub.s32 %s41, %s48
      %p184 = scmp.eq.s32.totalorder %s183, 0
      %s186 = sadd.s32 %s185, 1
      %s187 = scalar_select %p184, %s185, %s186
      %p190 = pneg %p184
      %p191 = scmp.eq.s32.totalorder %s33, 3
      %p192 = por %p190, %p191
      %p193 = scmp.ne.s32.totalorder %s185, %s188
      %p194 = scmp.eq.s32.totalorder %s33, 0
      %p195 = por %p193, %p194
      %p196 = scmp.ne.s32.totalorder %s185, %s188
      %p197 = scmp.eq.s32.totalorder %s38, 3
      %p198 = por %p196, %p197
      %p199 = scmp.ne.s32.totalorder %s188, %s189
      %p200 = scmp.eq.s32.totalorder %s38, 0
      %p201 = por %p199, %p200
      %p202 = scmp.ne.s32.totalorder %s188, %s189
      %p203 = scmp.eq.s32.totalorder %s39, 3
      %p204 = por %p202, %p203
      %p206 = scmp.ne.s32.totalorder %s189, %s205
      %p207 = scmp.eq.s32.totalorder %s39, 0
      %p208 = por %p206, %p207
      %s209 = ssub.s32 %s41, %s48
      %p210 = scmp.eq.s32.totalorder %s209, 0
      %s212 = sadd.s32 %s211, 1
      %s213 = scalar_select %p210, %s211, %s212
      %p216 = pneg %p210
      %p217 = scmp.eq.s32.totalorder %s33, 3
      %p218 = por %p216, %p217
      %p219 = scmp.ne.s32.totalorder %s211, %s214
      %p220 = scmp.eq.s32.totalorder %s33, 0
      %p221 = por %p219, %p220
      %p222 = scmp.ne.s32.totalorder %s211, %s214
      %p223 = scmp.eq.s32.totalorder %s38, 3
      %p224 = por %p222, %p223
      %p225 = scmp.ne.s32.totalorder %s214, %s215
      %p226 = scmp.eq.s32.totalorder %s38, 0
      %p227 = por %p225, %p226
      %p228 = scmp.ne.s32.totalorder %s214, %s215
      %p229 = scmp.eq.s32.totalorder %s39, 3
      %p230 = por %p228, %p229
      %p232 = scmp.ne.s32.totalorder %s215, %s231
      %p233 = scmp.eq.s32.totalorder %s39, 0
      %p234 = por %p232, %p233
      %s235 = ssub.s32 %s41, %s48
      %p236 = scmp.eq.s32.totalorder %s235, 0
      %s238 = sadd.s32 %s237, 1
      %s239 = scalar_select %p236, %s237, %s238
      %p242 = pneg %p236
      %p243 = scmp.eq.s32.totalorder %s33, 3
      %p244 = por %p242, %p243
      %p245 = scmp.ne.s32.totalorder %s237, %s240
      %p246 = scmp.eq.s32.totalorder %s33, 0
      %p247 = por %p245, %p246
      %p248 = scmp.ne.s32.totalorder %s237, %s240
      %p249 = scmp.eq.s32.totalorder %s38, 3
      %p250 = por %p248, %p249
      %p251 = scmp.ne.s32.totalorder %s240, %s241
      %p252 = scmp.eq.s32.totalorder %s38, 0
      %p253 = por %p251, %p252
      %p254 = scmp.ne.s32.totalorder %s240, %s241
      %p255 = scmp.eq.s32.totalorder %s39, 3
      %p256 = por %p254, %p255
      %p258 = scmp.ne.s32.totalorder %s241, %s257
      %p259 = scmp.eq.s32.totalorder %s39, 0
      %p260 = por %p258, %p259
      %s261 = ssub.s32 %s41, %s48
      %p262 = scmp.eq.s32.totalorder %s261, 0
      %s264 = sadd.s32 %s263, 1
      %s265 = scalar_select %p262, %s263, %s264
      %p268 = pneg %p262
      %p269 = scmp.eq.s32.totalorder %s33, 3
      %p270 = por %p268, %p269
      %p271 = scmp.ne.s32.totalorder %s263, %s266
      %p272 = scmp.eq.s32.totalorder %s33, 0
      %p273 = por %p271, %p272
      %p274 = scmp.ne.s32.totalorder %s263, %s266
      %p275 = scmp.eq.s32.totalorder %s38, 3
      %p276 = por %p274, %p275
      %p277 = scmp.ne.s32.totalorder %s266, %s267
      %p278 = scmp.eq.s32.totalorder %s38, 0
      %p279 = por %p277, %p278
      %p280 = scmp.ne.s32.totalorder %s266, %s267
      %p281 = scmp.eq.s32.totalorder %s39, 3
      %p282 = por %p280, %p281
      %p284 = scmp.ne.s32.totalorder %s267, %s283
      %p285 = scmp.eq.s32.totalorder %s39, 0
      %p286 = por %p284, %p285
      %s287 = ssub.s32 %s41, %s48
      %p288 = scmp.eq.s32.totalorder %s287, 0
      %s290 = sadd.s32 %s289, 1
      %s291 = scalar_select %p288, %s289, %s290
      %p294 = pneg %p288
      %p295 = scmp.eq.s32.totalorder %s33, 3
      %p296 = por %p294, %p295
      %p297 = scmp.ne.s32.totalorder %s289, %s292
      %p298 = scmp.eq.s32.totalorder %s33, 0
      %p299 = por %p297, %p298
      %p300 = scmp.ne.s32.totalorder %s289, %s292
      %p301 = scmp.eq.s32.totalorder %s38, 3
      %p302 = por %p300, %p301
      %p303 = scmp.ne.s32.totalorder %s292, %s293
      %p304 = scmp.eq.s32.totalorder %s38, 0
      %p305 = por %p303, %p304
      %p306 = scmp.ne.s32.totalorder %s292, %s293
      %p307 = scmp.eq.s32.totalorder %s39, 3
      %p308 = por %p306, %p307
      %p310 = scmp.ne.s32.totalorder %s293, %s309
      %p311 = scmp.eq.s32.totalorder %s39, 0
      %p312 = por %p310, %p311
      %s313 = ssub.s32 %s41, %s48
      %p314 = scmp.eq.s32.totalorder %s313, 0
      %s316 = sadd.s32 %s315, 1
      %s317 = scalar_select %p314, %s315, %s316
      %p320 = pneg %p314
      %p321 = scmp.eq.s32.totalorder %s33, 3
      %p322 = por %p320, %p321
      %p323 = scmp.ne.s32.totalorder %s315, %s318
      %p324 = scmp.eq.s32.totalorder %s33, 0
      %p325 = por %p323, %p324
      %p326 = scmp.ne.s32.totalorder %s315, %s318
      %p327 = scmp.eq.s32.totalorder %s38, 3
      %p328 = por %p326, %p327
      %p329 = scmp.ne.s32.totalorder %s318, %s319
      %p330 = scmp.eq.s32.totalorder %s38, 0
      %p331 = por %p329, %p330
      %p332 = scmp.ne.s32.totalorder %s318, %s319
      %p333 = scmp.eq.s32.totalorder %s39, 3
      %p334 = por %p332, %p333
      %p336 = scmp.ne.s32.totalorder %s319, %s335
      %p337 = scmp.eq.s32.totalorder %s39, 0
      %p338 = por %p336, %p337
      %s339 = ssub.s32 %s41, %s48
      %p340 = scmp.eq.s32.totalorder %s339, 0
      %s342 = sadd.s32 %s341, 1
      %s343 = scalar_select %p340, %s341, %s342
      %p346 = pneg %p340
      %p347 = scmp.eq.s32.totalorder %s33, 3
      %p348 = por %p346, %p347
      %p349 = scmp.ne.s32.totalorder %s341, %s344
      %p350 = scmp.eq.s32.totalorder %s33, 0
      %p351 = por %p349, %p350
      %p352 = scmp.ne.s32.totalorder %s341, %s344
      %p353 = scmp.eq.s32.totalorder %s38, 3
      %p354 = por %p352, %p353
      %p355 = scmp.ne.s32.totalorder %s344, %s345
      %p356 = scmp.eq.s32.totalorder %s38, 0
      %p357 = por %p355, %p356
      %p358 = scmp.ne.s32.totalorder %s344, %s345
      %p359 = scmp.eq.s32.totalorder %s39, 3
      %p360 = por %p358, %p359
      %p362 = scmp.ne.s32.totalorder %s345, %s361
      %p363 = scmp.eq.s32.totalorder %s39, 0
      %p364 = por %p362, %p363
      %s366 = sadd.s32 %s365, 1
      %p369 = scmp.eq.s32.totalorder %s33, 3
      %p370 = scmp.ne.s32.totalorder %s365, %s367
      %p371 = scmp.eq.s32.totalorder %s33, 0
      %p372 = por %p370, %p371
      %p373 = scmp.ne.s32.totalorder %s365, %s367
      %p374 = scmp.eq.s32.totalorder %s38, 3
      %p375 = por %p373, %p374
      %p376 = scmp.ne.s32.totalorder %s367, %s368
      %p377 = scmp.eq.s32.totalorder %s38, 0
      %p378 = por %p376, %p377
      %p379 = scmp.ne.s32.totalorder %s367, %s368
      %p380 = scmp.eq.s32.totalorder %s39, 3
      %p381 = por %p379, %p380
      %p383 = scmp.ne.s32.totalorder %s368, %s382
      %p384 = scmp.eq.s32.totalorder %s39, 0
      %p385 = por %p383, %p384
      %s387 = sadd.s32 %s386, 1
      %p390 = scmp.eq.s32.totalorder %s33, 3
      %p391 = scmp.ne.s32.totalorder %s386, %s388
      %p392 = scmp.eq.s32.totalorder %s33, 0
      %p393 = por %p391, %p392
      %p394 = scmp.ne.s32.totalorder %s386, %s388
      %p395 = scmp.eq.s32.totalorder %s38, 3
      %p396 = por %p394, %p395
      %p397 = scmp.ne.s32.totalorder %s388, %s389
      %p398 = scmp.eq.s32.totalorder %s38, 0
      %p399 = por %p397, %p398
      %p400 = scmp.ne.s32.totalorder %s388, %s389
      %p401 = scmp.eq.s32.totalorder %s39, 3
      %p402 = por %p400, %p401
      %p404 = scmp.ne.s32.totalorder %s389, %s403
      %p405 = scmp.eq.s32.totalorder %s39, 0
      %p406 = por %p404, %p405
      %s407 = ssub.s32 %s40, %s52
      %p408 = scmp.eq.s32.totalorder %s407, 0
      %s410 = sadd.s32 %s409, 1
      %s411 = scalar_select %p408, %s409, %s410
      %p414 = pneg %p408
      %p415 = scmp.eq.s32.totalorder %s33, 3
      %p416 = por %p414, %p415
      %p417 = scmp.ne.s32.totalorder %s409, %s412
      %p418 = scmp.eq.s32.totalorder %s33, 0
      %p419 = por %p417, %p418
      %p420 = scmp.ne.s32.totalorder %s409, %s412
      %p421 = scmp.eq.s32.totalorder %s38, 3
      %p422 = por %p420, %p421
      %p423 = scmp.ne.s32.totalorder %s412, %s413
      %p424 = scmp.eq.s32.totalorder %s38, 0
      %p425 = por %p423, %p424
      %p426 = scmp.ne.s32.totalorder %s412, %s413
      %p427 = scmp.eq.s32.totalorder %s39, 3
      %p428 = por %p426, %p427
      %p430 = scmp.ne.s32.totalorder %s413, %s429
      %p431 = scmp.eq.s32.totalorder %s39, 0
      %p432 = por %p430, %p431
      %p433 = scmp.le.s32.totalorder 1, %s33
      %p434 = scmp.lt.s32.totalorder %s33, 5
      %p435 = pnand %p433, %p434
      %p436 = pneg %p435
      // Predicated region
      $region9: #{transformer_forward.3} parent=5 // pred_check
        _
      $region10: #{transformer_forward.3} parent=5 // pred_check_branch
        %438 = sbr.rel (%p435) target = $region12
      $region11: #{transformer_forward.3} parent=5 // pred_region
        %s439 = ssub.s32 %s33, 1
        // Predicated region
        $region13: #{transformer_forward.3} parent=11 // pred_check
          %p440 = pneg %p378
        $region14: #{transformer_forward.3} parent=11 // pred_check_branch
          %442 = sbr.rel (%p440) target = $region16
        $region15: #{transformer_forward.3} parent=11 // pred_region
          %s444 = ssub.s32 1024, 1024
          %445 = vsyncadd [#allocation10], %s444
          %s446 = sshll.u32 [#allocation11], 4
          %s447 = int_to_ptr.vmem [resolvable:$true] %s446
          %452 = dma.hbm_to_vmem [thread:$0]  %s12, 1024, %s447, [#allocation10], 64, 64, 4
        $region16: #{transformer_forward.3} parent=11 // pred_fallthru
          _
        // Predicated region
        $region17: #{transformer_forward.3} parent=11 // pred_check
          %p453 = pneg %p399
        $region18: #{transformer_forward.3} parent=11 // pred_check_branch
          %455 = sbr.rel (%p453) target = $region20
        $region19: #{transformer_forward.3} parent=11 // pred_region
          %s457 = ssub.s32 16, 16
          %458 = vsyncadd [#allocation13], %s457
          %s460 = sshll.u32 [#allocation12], 4
          %s461 = int_to_ptr.vmem [resolvable:$true] %s460
          %463 = dma.hbm_to_vmem [thread:$0]  %s13, 16, %s461, [#allocation13]
        $region20: #{transformer_forward.3} parent=11 // pred_fallthru
          _
      $region12: #{transformer_forward.3} parent=5 // pred_fallthru
        _
      %p464 = scmp.lt.s32.totalorder %s33, 4
      // Predicated region
      $region21: #{transformer_forward.3} parent=5 // pred_check
        %p465 = pneg %p464
      $region22: #{transformer_forward.3} parent=5 // pred_check_branch
        %467 = sbr.rel (%p465) target = $region24
      $region23: #{transformer_forward.3} parent=5 // pred_region
        // Predicated region
        $region25: #{transformer_forward.3} parent=23 // pred_check
          %p468 = pneg %p65
        $region26: #{transformer_forward.3} parent=23 // pred_check_branch
          %470 = sbr.rel (%p468) target = $region28
        $region27: #{transformer_forward.3} parent=23 // pred_region
          %p471 = scmp.lt.s32.totalorder %s40, 1
          %s472 = scalar_select %p471, %s40, 1
          %s473 = smul.addr %s472, 8
          %s474 = scalar_lea.vmem %s0, %s473
        $region28: #{transformer_forward.3} parent=23 // pred_fallthru
          _
        // Predicated region
        $region29: #{transformer_forward.3} parent=23 // pred_check
          %p475 = pneg %p91
        $region30: #{transformer_forward.3} parent=23 // pred_check_branch
          %477 = sbr.rel (%p475) target = $region32
        $region31: #{transformer_forward.3} parent=23 // pred_region
          %p478 = scmp.lt.s32.totalorder %s40, 1
          %s479 = scalar_select %p478, %s40, 1
          %s480 = smul.addr %s479, 8
          %s481 = scalar_lea.vmem %s1, %s480
        $region32: #{transformer_forward.3} parent=23 // pred_fallthru
          _
        // Predicated region
        $region33: #{transformer_forward.3} parent=23 // pred_check
          %p482 = pneg %p117
        $region34: #{transformer_forward.3} parent=23 // pred_check_branch
          %484 = sbr.rel (%p482) target = $region36
        $region35: #{transformer_forward.3} parent=23 // pred_region
          %p485 = scmp.lt.s32.totalorder %s40, 1
          %s486 = scalar_select %p485, %s40, 1
          %s487 = scalar_lea.vmem %s2, %s486
        $region36: #{transformer_forward.3} parent=23 // pred_fallthru
          _
        // Predicated region
        $region37: #{transformer_forward.3} parent=23 // pred_check
          %p488 = pneg %p143
        $region38: #{transformer_forward.3} parent=23 // pred_check_branch
          %490 = sbr.rel (%p488) target = $region40
        $region39: #{transformer_forward.3} parent=23 // pred_region
          %p491 = scmp.lt.s32.totalorder %s40, 1
          %s492 = scalar_select %p491, %s40, 1
          %s493 = smul.addr %s492, 8
          %s494 = scalar_lea.vmem %s3, %s493
        $region40: #{transformer_forward.3} parent=23 // pred_fallthru
          _
        // Predicated region
        $region41: #{transformer_forward.3} parent=23 // pred_check
          %p495 = pneg %p169
        $region42: #{transformer_forward.3} parent=23 // pred_check_branch
          %497 = sbr.rel (%p495) target = $region44
        $region43: #{transformer_forward.3} parent=23 // pred_region
          %p498 = scmp.lt.s32.totalorder %s41, 1
          %s499 = scalar_select %p498, %s41, 1
          %s500 = smul.addr %s499, 48
          %s501 = smul.addr %s500, 4
          %s502 = scalar_lea.vmem %s4, %s501
        $region44: #{transformer_forward.3} parent=23 // pred_fallthru
          _
        // Predicated region
        $region45: #{transformer_forward.3} parent=23 // pred_check
          %p503 = pneg %p195
        $region46: #{transformer_forward.3} parent=23 // pred_check_branch
          %505 = sbr.rel (%p503) target = $region48
        $region47: #{transformer_forward.3} parent=23 // pred_region
          %p506 = scmp.lt.s32.totalorder %s41, 1
          %s507 = scalar_select %p506, %s41, 1
          %s508 = smul.addr %s507, 16
          %s509 = smul.addr %s508, 4
          %s510 = scalar_lea.vmem %s5, %s509
        $region48: #{transformer_forward.3} parent=23 // pred_fallthru
          _
        // Predicated region
        $region49: #{transformer_forward.3} parent=23 // pred_check
          %p511 = pneg %p221
        $region50: #{transformer_forward.3} parent=23 // pred_check_branch
          %513 = sbr.rel (%p511) target = $region52
        $region51: #{transformer_forward.3} parent=23 // pred_region
          %p514 = scmp.lt.s32.totalorder %s41, 1
          %s515 = scalar_select %p514, %s41, 1
          %s516 = smul.addr %s515, 16
          %s517 = smul.addr %s516, 4
          %s518 = scalar_lea.vmem %s6, %s517
        $region52: #{transformer_forward.3} parent=23 // pred_fallthru
          _
        // Predicated region
        $region53: #{transformer_forward.3} parent=23 // pred_check
          %p519 = pneg %p247
        $region54: #{transformer_forward.3} parent=23 // pred_check_branch
          %521 = sbr.rel (%p519) target = $region56
        $region55: #{transformer_forward.3} parent=23 // pred_region
          %p522 = scmp.lt.s32.totalorder %s41, 1
          %s523 = scalar_select %p522, %s41, 1
          %s524 = smul.addr %s523, 32
          %s525 = smul.addr %s524, 4
          %s526 = scalar_lea.vmem %s7, %s525
        $region56: #{transformer_forward.3} parent=23 // pred_fallthru
          _
        // Predicated region
        $region57: #{transformer_forward.3} parent=23 // pred_check
          %p527 = pneg %p273
        $region58: #{transformer_forward.3} parent=23 // pred_check_branch
          %529 = sbr.rel (%p527) target = $region60
        $region59: #{transformer_forward.3} parent=23 // pred_region
          %s530 = sand.u32 %s263, 1
          %s531 = scalar_lea.sflag [#allocation4], %s530
          %s532 = sand.u32 %s263, 1
          %s533 = smul.addr %s532, 64
          %s534 = scalar_lea.vmem [#allocation3], %s533
          %s536 = ssub.s32 1024, 1024
          %537 = vsyncadd %s531, %s536
          %s538 = smul.addr %s41, 16
          %s539 = smul.addr %s538, 64
          %s540 = scalar_lea.hbm %s8, %s539
          %s541 = sshll.u32 %s534, 4
          %s542 = int_to_ptr.vmem [resolvable:$true] %s541
          %547 = dma.hbm_to_vmem [thread:$0]  %s540, 1024, %s542, %s531, 64, 64, 4
        $region60: #{transformer_forward.3} parent=23 // pred_fallthru
          _
        // Predicated region
        $region61: #{transformer_forward.3} parent=23 // pred_check
          %p548 = pneg %p299
        $region62: #{transformer_forward.3} parent=23 // pred_check_branch
          %550 = sbr.rel (%p548) target = $region64
        $region63: #{transformer_forward.3} parent=23 // pred_region
          %s551 = sand.u32 %s33, 1
          %s552 = scalar_lea.sflag [#allocation7], %s551
          %s553 = sand.u32 %s289, 1
          %s554 = smul.addr %s553, 64
          %s555 = scalar_lea.vmem [#allocation6], %s554
          %s557 = ssub.s32 1024, 1024
          %558 = vsyncadd %s552, %s557
          %s559 = smul.addr %s41, 16
          %s560 = smul.addr %s559, 64
          %s561 = scalar_lea.hbm %s9, %s560
          %s562 = sshll.u32 %s555, 4
          %s563 = int_to_ptr.vmem [resolvable:$true] %s562
          %568 = dma.hbm_to_vmem [thread:$0]  %s561, 1024, %s563, %s552, 64, 64, 4
        $region64: #{transformer_forward.3} parent=23 // pred_fallthru
          _
        // Predicated region
        $region65: #{transformer_forward.3} parent=23 // pred_check
          %p569 = pneg %p325
        $region66: #{transformer_forward.3} parent=23 // pred_check_branch
          %571 = sbr.rel (%p569) target = $region68
        $region67: #{transformer_forward.3} parent=23 // pred_region
          %s572 = sand.u32 %s33, 1
          %s573 = scalar_lea.sflag [#allocation7], %s572
          %s574 = sand.u32 %s315, 1
          %s575 = smul.addr %s574, 64
          %s576 = scalar_lea.vmem [#allocation8], %s575
          %s578 = ssub.s32 1024, 1024
          %579 = vsyncadd %s573, %s578
          %s580 = smul.addr %s41, 16
          %s581 = smul.addr %s580, 64
          %s582 = scalar_lea.hbm %s10, %s581
          %s583 = sshll.u32 %s576, 4
          %s584 = int_to_ptr.vmem [resolvable:$true] %s583
          %589 = dma.hbm_to_vmem [thread:$0]  %s582, 1024, %s584, %s573, 64, 64, 4
        $region68: #{transformer_forward.3} parent=23 // pred_fallthru
          _
        // Predicated region
        $region69: #{transformer_forward.3} parent=23 // pred_check
          %p590 = pneg %p351
        $region70: #{transformer_forward.3} parent=23 // pred_check_branch
          %592 = sbr.rel (%p590) target = $region72
        $region71: #{transformer_forward.3} parent=23 // pred_region
          %s593 = sand.u32 %s33, 1
          %s594 = scalar_lea.sflag [#allocation10], %s593
          %s595 = sand.u32 %s341, 1
          %s596 = smul.addr %s595, 16
          %s597 = scalar_lea.vmem [#allocation9], %s596
          %s599 = ssub.s32 256, 256
          %600 = vsyncadd %s594, %s599
          %s601 = smul.addr %s41, 2
          %s602 = smul.addr %s601, 128
          %s603 = scalar_lea.hbm %s11, %s602
          %s604 = sshll.u32 %s597, 4
          %s605 = int_to_ptr.vmem [resolvable:$true] %s604
          %610 = dma.hbm_to_vmem [thread:$0]  %s603, 256, %s605, %s594, 128, 128, 8
        $region72: #{transformer_forward.3} parent=23 // pred_fallthru
          _
      $region24: #{transformer_forward.3} parent=5 // pred_fallthru
        _
      %p611 = scmp.le.s32.totalorder 1, %s33
      %p612 = scmp.lt.s32.totalorder %s33, 5
      %p613 = pnand %p611, %p612
      %p614 = pneg %p613
      // Predicated region
      $region73: #{transformer_forward.3} parent=5 // pred_check
        _
      $region74: #{transformer_forward.3} parent=5 // pred_check_branch
        %616 = sbr.rel (%p613) target = $region76
      $region75: #{transformer_forward.3} parent=5 // pred_region
        %s617 = ssub.s32 %s33, 1
        %s618 = sand.u32 %s266, 1
        %s619 = scalar_lea.sflag [#allocation4], %s618
        %s620 = sand.u32 %s266, 1
        %s621 = smul.addr %s620, 64
        %s622 = scalar_lea.vmem [#allocation3], %s621
        // Predicated region
        $region77: #{transformer_forward.3} parent=75 // pred_check
          %p623 = pneg %p279
        $region78: #{transformer_forward.3} parent=75 // pred_check_branch
          %625 = sbr.rel (%p623) target = $region80
        $region79: #{transformer_forward.3} parent=75 // pred_region
          %626 = dma.done %s619, 1024
        $region80: #{transformer_forward.3} parent=75 // pred_fallthru
          _
        %s627 = sand.u32 %s38, 1
        %s628 = scalar_lea.sflag [#allocation7], %s627
        %s629 = sand.u32 %s292, 1
        %s630 = smul.addr %s629, 64
        %s631 = scalar_lea.vmem [#allocation6], %s630
        // Predicated region
        $region81: #{transformer_forward.3} parent=75 // pred_check
          %p632 = pneg %p305
        $region82: #{transformer_forward.3} parent=75 // pred_check_branch
          %634 = sbr.rel (%p632) target = $region84
        $region83: #{transformer_forward.3} parent=75 // pred_region
          %635 = dma.done %s628, 1024
        $region84: #{transformer_forward.3} parent=75 // pred_fallthru
          _
        %s636 = sand.u32 %s38, 1
        %s637 = scalar_lea.sflag [#allocation7], %s636
        %s638 = sand.u32 %s318, 1
        %s639 = smul.addr %s638, 64
        %s640 = scalar_lea.vmem [#allocation8], %s639
        // Predicated region
        $region85: #{transformer_forward.3} parent=75 // pred_check
          %p641 = pneg %p331
        $region86: #{transformer_forward.3} parent=75 // pred_check_branch
          %643 = sbr.rel (%p641) target = $region88
        $region87: #{transformer_forward.3} parent=75 // pred_region
          %644 = dma.done %s637, 1024
        $region88: #{transformer_forward.3} parent=75 // pred_fallthru
          _
        %s645 = sand.u32 %s38, 1
        %s646 = scalar_lea.sflag [#allocation10], %s645
        %s647 = sand.u32 %s344, 1
        %s648 = smul.addr %s647, 16
        %s649 = scalar_lea.vmem [#allocation9], %s648
        // Predicated region
        $region89: #{transformer_forward.3} parent=75 // pred_check
          %p650 = pneg %p357
        $region90: #{transformer_forward.3} parent=75 // pred_check_branch
          %652 = sbr.rel (%p650) target = $region92
        $region91: #{transformer_forward.3} parent=75 // pred_region
          %653 = dma.done %s646, 256
        $region92: #{transformer_forward.3} parent=75 // pred_fallthru
          _
        // Predicated region
        $region93: #{transformer_forward.3} parent=75 // pred_check
          %p654 = pneg %p378
        $region94: #{transformer_forward.3} parent=75 // pred_check_branch
          %656 = sbr.rel (%p654) target = $region96
        $region95: #{transformer_forward.3} parent=75 // pred_region
          %657 = dma.done [#allocation10], 1024
        $region96: #{transformer_forward.3} parent=75 // pred_fallthru
          _
        // Predicated region
        $region97: #{transformer_forward.3} parent=75 // pred_check
          %p658 = pneg %p399
        $region98: #{transformer_forward.3} parent=75 // pred_check_branch
          %660 = sbr.rel (%p658) target = $region100
        $region99: #{transformer_forward.3} parent=75 // pred_region
          %661 = dma.done [#allocation13], 16
        $region100: #{transformer_forward.3} parent=75 // pred_fallthru
          _
        %p662 = scmp.lt.s32.totalorder %s42, 1
        %s663 = scalar_select %p662, %s42, 1
        %s664 = smul.addr %s663, 8
        %s665 = scalar_lea.vmem %s0, %s664
        %p666 = pneg %p71
        %p667 = pneg %p68
        %p668 = scmp.lt.s32.totalorder %s42, 1
        %s669 = scalar_select %p668, %s42, 1
        %s670 = smul.addr %s669, 8
        %s671 = scalar_lea.vmem %s1, %s670
        %p672 = pneg %p97
        %p673 = pneg %p94
        %p674 = scmp.lt.s32.totalorder %s42, 1
        %s675 = scalar_select %p674, %s42, 1
        %s676 = scalar_lea.vmem %s2, %s675
        %p677 = pneg %p123
        %p678 = pneg %p120
        %p679 = scmp.lt.s32.totalorder %s42, 1
        %s680 = scalar_select %p679, %s42, 1
        %s681 = smul.addr %s680, 8
        %s682 = scalar_lea.vmem %s3, %s681
        %p683 = pneg %p149
        %p684 = pneg %p146
        %p685 = scmp.lt.s32.totalorder %s43, 1
        %s686 = scalar_select %p685, %s43, 1
        %s687 = smul.addr %s686, 48
        %s688 = smul.addr %s687, 4
        %s689 = scalar_lea.vmem %s4, %s688
        %p690 = pneg %p175
        %p691 = pneg %p172
        %p692 = scmp.lt.s32.totalorder %s43, 1
        %s693 = scalar_select %p692, %s43, 1
        %s694 = smul.addr %s693, 16
        %s695 = smul.addr %s694, 4
        %s696 = scalar_lea.vmem %s5, %s695
        %p697 = pneg %p201
        %p698 = pneg %p198
        %p699 = scmp.lt.s32.totalorder %s43, 1
        %s700 = scalar_select %p699, %s43, 1
        %s701 = smul.addr %s700, 16
        %s702 = smul.addr %s701, 4
        %s703 = scalar_lea.vmem %s6, %s702
        %p704 = pneg %p227
        %p705 = pneg %p224
        %p706 = scmp.lt.s32.totalorder %s43, 1
        %s707 = scalar_select %p706, %s43, 1
        %s708 = smul.addr %s707, 32
        %s709 = smul.addr %s708, 4
        %s710 = scalar_lea.vmem %s7, %s709
        %p711 = pneg %p253
        %p712 = pneg %p250
        %s713 = sand.u32 %s266, 1
        %s714 = scalar_lea.sflag [#allocation4], %s713
        %s715 = sand.u32 %s266, 1
        %s716 = smul.addr %s715, 64
        %s717 = scalar_lea.vmem [#allocation3], %s716
        %p718 = pneg %p279
        %p719 = pneg %p276
        %s720 = sand.u32 %s38, 1
        %s721 = scalar_lea.sflag [#allocation7], %s720
        %s722 = sand.u32 %s292, 1
        %s723 = smul.addr %s722, 64
        %s724 = scalar_lea.vmem [#allocation6], %s723
        %p725 = pneg %p305
        %p726 = pneg %p302
        %s727 = sand.u32 %s38, 1
        %s728 = scalar_lea.sflag [#allocation7], %s727
        %s729 = sand.u32 %s318, 1
        %s730 = smul.addr %s729, 64
        %s731 = scalar_lea.vmem [#allocation8], %s730
        %p732 = pneg %p331
        %p733 = pneg %p328
        %s734 = sand.u32 %s38, 1
        %s735 = scalar_lea.sflag [#allocation10], %s734
        %s736 = sand.u32 %s344, 1
        %s737 = smul.addr %s736, 16
        %s738 = scalar_lea.vmem [#allocation9], %s737
        %p739 = pneg %p357
        %p740 = pneg %p354
        %p741 = pneg %p378
        %p742 = pneg %p375
        %p743 = pneg %p399
        %p744 = pneg %p396
        %p745 = pneg %p425
        %p746 = pneg %p422
        %s747 = sand.u32 %s412, 1
        %s748 = scalar_lea.sflag [#allocation5], %s747
        %s749 = sand.u32 %s412, 1
        %s750 = smul.addr %s749, 8
        %s751 = scalar_lea.vmem [#allocation14], %s750
        %p752 = scmp.lt.s32.totalorder %s42, 1
        %s753 = scalar_select %p752, %s42, 1
        %s754 = smul.addr %s753, 8
        %s755 = scalar_lea.vmem %s0, %s754
        %p756 = scmp.lt.s32.totalorder %s42, 1
        %s757 = scalar_select %p756, %s42, 1
        %s758 = smul.addr %s757, 8
        %s759 = scalar_lea.vmem %s1, %s758
        %p760 = scmp.lt.s32.totalorder %s42, 1
        %s761 = scalar_select %p760, %s42, 1
        %s762 = scalar_lea.vmem %s2, %s761
        %p763 = scmp.lt.s32.totalorder %s42, 1
        %s764 = scalar_select %p763, %s42, 1
        %s765 = smul.addr %s764, 8
        %s766 = scalar_lea.vmem %s3, %s765
        %p767 = scmp.lt.s32.totalorder %s43, 1
        %s768 = scalar_select %p767, %s43, 1
        %s769 = smul.addr %s768, 48
        %s770 = smul.addr %s769, 4
        %s771 = scalar_lea.vmem %s4, %s770
        %p772 = scmp.lt.s32.totalorder %s43, 1
        %s773 = scalar_select %p772, %s43, 1
        %s774 = smul.addr %s773, 16
        %s775 = smul.addr %s774, 4
        %s776 = scalar_lea.vmem %s5, %s775
        %p777 = scmp.lt.s32.totalorder %s43, 1
        %s778 = scalar_select %p777, %s43, 1
        %s779 = smul.addr %s778, 16
        %s780 = smul.addr %s779, 4
        %s781 = scalar_lea.vmem %s6, %s780
        %p782 = scmp.lt.s32.totalorder %s43, 1
        %s783 = scalar_select %p782, %s43, 1
        %s784 = smul.addr %s783, 32
        %s785 = smul.addr %s784, 4
        %s786 = scalar_lea.vmem %s7, %s785
        %p788 = scmp.eq.s32.totalorder %s43, 0
        // Predicated region
        $region101: #{transformer_forward.3} parent=75 // pred_check
          %p789 = pneg %p788
        $region102: #{transformer_forward.3} parent=75 // pred_check_branch
          %791 = sbr.rel (%p789) target = $region104
        $region103: #{transformer_forward.3} parent=75 // pred_region
          %v792 = vld [vmem:[%s755] sm:$0xff]
          %793 = vst [vmem:[#allocation2] sm:$0xff] %v792
        $region104: #{transformer_forward.3} parent=75 // pred_fallthru
          _
        %v794 = vld [vmem:[#allocation2] sm:$0xff]
        %v795 = vld [vmem:[%s759] sm:$0xff]
        %v796 = vld [vmem:[%s649] sm:$0xff]
        %v797 = vld [vmem:[%s649 + $0x8] sm:$0xff]
        %v798 = vlaneseq
        %v799 = vshrl.u32 %v798, 7
        %v800 = vlaneseq
        %v801 = vand.u32 %v800, 127
        %v802 = vld [vmem:[%s766] sm:$0xff]
        %vm803 = vcmp.gt.f32.partialorder %v802, 0.5
        %vm804 = vcmp.ge.s32.totalorder %v799, %v801
        %v805 = vsel %vm803, 1, 0
        %806 = vset.pattern.permute.xlu0 0
        %807 = vperm.xlu0 %806, %v805
        %v808 = vpop.permute.xlu0 %807
        %vm809 = vcmp.eq.s32.totalorder %v808, 1
        %vm810 = vmand %vm809, %vm804
        %v811 = vpack.c.bf16 %v794, %v794
        %v812 = vld [vmem:[%s771] sm:$0xff]
        %v813 = vld [vmem:[%s771 + $0x8] sm:$0xf]
        %v814 = vld [vmem:[%s771 + $0xc] sm:$0xff]
        %v815 = vld [vmem:[%s771 + $0x14] sm:$0xf]
        %v816 = vld [vmem:[%s771 + $0x18] sm:$0xff]
        %v817 = vld [vmem:[%s771 + $0x20] sm:$0xf]
        %v818 = vld [vmem:[%s771 + $0x24] sm:$0xff]
        %v819 = vld [vmem:[%s771 + $0x2c] sm:$0xf]
        %v820 = vld [vmem:[%s771 + $0x30] sm:$0xff]
        %v821 = vld [vmem:[%s771 + $0x38] sm:$0xf]
        %v822 = vld [vmem:[%s771 + $0x3c] sm:$0xff]
        %v823 = vld [vmem:[%s771 + $0x44] sm:$0xf]
        %v824 = vld [vmem:[%s771 + $0x48] sm:$0xff]
        %v825 = vld [vmem:[%s771 + $0x50] sm:$0xf]
        %v826 = vld [vmem:[%s771 + $0x54] sm:$0xff]
        %v827 = vld [vmem:[%s771 + $0x5c] sm:$0xf]
        %v828 = vld [vmem:[%s771 + $0x60] sm:$0xff]
        %v829 = vld [vmem:[%s771 + $0x68] sm:$0xf]
        %v830 = vld [vmem:[%s771 + $0x6c] sm:$0xff]
        %v831 = vld [vmem:[%s771 + $0x74] sm:$0xf]
        %v832 = vld [vmem:[%s771 + $0x78] sm:$0xff]
        %v833 = vld [vmem:[%s771 + $0x80] sm:$0xf]
        %v834 = vld [vmem:[%s771 + $0x84] sm:$0xff]
        %v835 = vld [vmem:[%s771 + $0x8c] sm:$0xf]
        %v836 = vld [vmem:[%s771 + $0x90] sm:$0xff]
        %v837 = vld [vmem:[%s771 + $0x98] sm:$0xf]
        %v838 = vld [vmem:[%s771 + $0x9c] sm:$0xff]
        %v839 = vld [vmem:[%s771 + $0xa4] sm:$0xf]
        %v840 = vld [vmem:[%s771 + $0xa8] sm:$0xff]
        %v841 = vld [vmem:[%s771 + $0xb0] sm:$0xf]
        %v842 = vld [vmem:[%s771 + $0xb4] sm:$0xff]
        %v843 = vld [vmem:[%s771 + $0xbc] sm:$0xf]
        %v876 = vunpack.c.l.b16 %v812
        %v877 = vunpack.c.h.b16 %v812
        %v878 = vunpack.c.l.b16 %v813
        %v879 = vunpack.c.l.b16 %v814
        %v880 = vunpack.c.h.b16 %v814
        %v881 = vunpack.c.l.b16 %v815
        %v882 = vunpack.c.l.b16 %v816
        %v883 = vunpack.c.h.b16 %v816
        %v884 = vunpack.c.l.b16 %v817
        %v885 = vunpack.c.l.b16 %v818
        %v886 = vunpack.c.h.b16 %v818
        %v887 = vunpack.c.l.b16 %v819
        %v888 = vunpack.c.l.b16 %v820
        %v889 = vunpack.c.h.b16 %v820
        %v890 = vunpack.c.l.b16 %v821
        %v891 = vunpack.c.l.b16 %v822
        %v892 = vunpack.c.h.b16 %v822
        %v893 = vunpack.c.l.b16 %v823
        %v894 = vunpack.c.l.b16 %v824
        %v895 = vunpack.c.h.b16 %v824
        %v896 = vunpack.c.l.b16 %v825
        %v897 = vunpack.c.l.b16 %v826
        %v898 = vunpack.c.h.b16 %v826
        %v899 = vunpack.c.l.b16 %v827
        %v900 = vunpack.c.l.b16 %v828
        %v901 = vunpack.c.h.b16 %v828
        %v902 = vunpack.c.l.b16 %v829
        %v903 = vunpack.c.l.b16 %v830
        %v904 = vunpack.c.h.b16 %v830
        %v905 = vunpack.c.l.b16 %v831
        %v906 = vunpack.c.l.b16 %v832
        %v907 = vunpack.c.h.b16 %v832
        %v908 = vunpack.c.l.b16 %v833
        %v909 = vunpack.c.l.b16 %v834
        %v910 = vunpack.c.h.b16 %v834
        %v911 = vunpack.c.l.b16 %v835
        %v912 = vunpack.c.l.b16 %v836
        %v913 = vunpack.c.h.b16 %v836
        %v914 = vunpack.c.l.b16 %v837
        %v915 = vunpack.c.l.b16 %v838
        %v916 = vunpack.c.h.b16 %v838
        %v917 = vunpack.c.l.b16 %v839
        %v918 = vunpack.c.l.b16 %v840
        %v919 = vunpack.c.h.b16 %v840
        %v920 = vunpack.c.l.b16 %v841
        %v921 = vunpack.c.l.b16 %v842
        %v922 = vunpack.c.h.b16 %v842
        %v923 = vunpack.c.l.b16 %v843
        %v924 = vpack.c.b16 %v879, %v876
        %v925 = vpack.c.b16 %v880, %v877
        %v926 = vpack.c.b16 %v881, %v878
        %v927 = vpack.c.b16 %v885, %v882
        %v928 = vpack.c.b16 %v886, %v883
        %v929 = vpack.c.b16 %v887, %v884
        %v930 = vpack.c.b16 %v891, %v888
        %v931 = vpack.c.b16 %v892, %v889
        %v932 = vpack.c.b16 %v893, %v890
        %v933 = vpack.c.b16 %v897, %v894
        %v934 = vpack.c.b16 %v898, %v895
        %v935 = vpack.c.b16 %v899, %v896
        %v936 = vpack.c.b16 %v903, %v900
        %v937 = vpack.c.b16 %v904, %v901
        %v938 = vpack.c.b16 %v905, %v902
        %v939 = vpack.c.b16 %v909, %v906
        %v940 = vpack.c.b16 %v910, %v907
        %v941 = vpack.c.b16 %v911, %v908
        %v942 = vpack.c.b16 %v915, %v912
        %v943 = vpack.c.b16 %v916, %v913
        %v944 = vpack.c.b16 %v917, %v914
        %v945 = vpack.c.b16 %v921, %v918
        %v946 = vpack.c.b16 %v922, %v919
        %v947 = vpack.c.b16 %v923, %v920
        %972 = vmatprep.subr.bf16.mxu0 %v925
        %973 = vmatpush1.bf16.msra.mxu0 %v924
        %974 = vmatprep.subr.bf16.mxu0 %v928
        %975 = vmatpush1.bf16.msra.mxu0 %v927
        %976 = vmatprep.subr.bf16.mxu0 %v931
        %977 = vmatpush1.bf16.msra.mxu0 %v930
        %978 = vmatprep.subr.bf16.mxu0 %v934
        %979 = vmatpush1.bf16.msra.mxu0 %v933
        %980 = vmatprep.subr.bf16.mxu0 %v937
        %981 = vmatpush1.bf16.msra.mxu0 %v936
        %982 = vmatprep.subr.bf16.mxu0 %v940
        %983 = vmatpush1.bf16.msra.mxu0 %v939
        %984 = vmatprep.subr.bf16.mxu0 %v943
        %985 = vmatpush1.bf16.msra.mxu0 %v942
        %986 = vmatprep.subr.bf16.mxu0 %v946
        %987 = vmatpush1.bf16.msra.mxu0 %v945
        %988 = vmatprep.subr.bf16.mxu0 0
        %989 = vmatpush1.bf16.msra.mxu0 0
        %990 = vmatprep.subr.bf16.mxu0 0
        %991 = vmatpush1.bf16.msra.mxu0 0
        %992 = vmatprep.subr.bf16.mxu0 0
        %993 = vmatpush1.bf16.msra.mxu0 0
        %994 = vmatprep.subr.bf16.mxu0 0
        %995 = vmatpush1.bf16.msra.mxu0 0
        %996 = vmatprep.subr.bf16.mxu0 0
        %997 = vmatpush1.bf16.msra.mxu0 0
        %998 = vmatprep.subr.bf16.mxu0 0
        %999 = vmatpush1.bf16.msra.mxu0 0
        %1000 = vmatprep.subr.bf16.mxu0 0
        %1001 = vmatpush1.bf16.msra.mxu0 0
        %1002 = vmatprep.subr.bf16.mxu0 0
        %1003 = vmatpush1.bf16.msra.mxu0 0
        %1004 = vmatprep.mubr.bf16.mxu0 0
        %1005 = vmatmul.mubr.bf16.gmra.mrb[0].mxu0 %v811
        %v1006 = vpop.f32.mrb[0].mxu0
        %v1007 = vadd.f32 0.0, %v1006
        %v1008 = vpop.f32.mrb[0].mxu0
        %v1009 = vadd.f32 0.0, %v1008
        %v1010 = vpop.f32.mrb[0].mxu0
        %v1011 = vpop.f32.mrb[0].mxu0
        %1012 = vdwg.mxu0
        %1013 = vmatprep.subr.bf16.mxu0 0
        %1014 = vmatpush1.bf16.msra.mxu0 %v926
        %1015 = vmatprep.subr.bf16.mxu0 0
        %1016 = vmatpush1.bf16.msra.mxu0 %v929
        %1017 = vmatprep.subr.bf16.mxu0 0
        %1018 = vmatpush1.bf16.msra.mxu0 %v932
        %1019 = vmatprep.subr.bf16.mxu0 0
        %1020 = vmatpush1.bf16.msra.mxu0 %v935
        %1021 = vmatprep.subr.bf16.mxu0 0
        %1022 = vmatpush1.bf16.msra.mxu0 %v938
        %1023 = vmatprep.subr.bf16.mxu0 0
        %1024 = vmatpush1.bf16.msra.mxu0 %v941
        %1025 = vmatprep.subr.bf16.mxu0 0
        %1026 = vmatpush1.bf16.msra.mxu0 %v944
        %1027 = vmatprep.subr.bf16.mxu0 0
        %1028 = vmatpush1.bf16.msra.mxu0 %v947
        %1029 = vmatprep.subr.bf16.mxu0 0
        %1030 = vmatpush1.bf16.msra.mxu0 0
        %1031 = vmatprep.subr.bf16.mxu0 0
        %1032 = vmatpush1.bf16.msra.mxu0 0
        %1033 = vmatprep.subr.bf16.mxu0 0
        %1034 = vmatpush1.bf16.msra.mxu0 0
        %1035 = vmatprep.subr.bf16.mxu0 0
        %1036 = vmatpush1.bf16.msra.mxu0 0
        %1037 = vmatprep.subr.bf16.mxu0 0
        %1038 = vmatpush1.bf16.msra.mxu0 0
        %1039 = vmatprep.subr.bf16.mxu0 0
        %1040 = vmatpush1.bf16.msra.mxu0 0
        %1041 = vmatprep.subr.bf16.mxu0 0
        %1042 = vmatpush1.bf16.msra.mxu0 0
        %1043 = vmatprep.subr.bf16.mxu0 0
        %1044 = vmatpush1.bf16.msra.mxu0 0
        %1045 = vmatprep.mubr.bf16.mxu0 0
        %1046 = vmatmul.mubr.bf16.gmra.mrb[0].mxu0 %v811
        %v1047 = vpop.f32.mrb[0].mxu0
        %v1048 = vadd.f32 0.0, %v1047
        %v1049 = vpop.f32.mrb[0].mxu0
        %v1050 = vpop.f32.mrb[0].mxu0
        %v1051 = vpop.f32.mrb[0].mxu0
        %1052 = vdwg.mxu0
        %v1053 = vlaneseq
        %v1054 = vshrl.u32 %v1053, 7
        %v1055 = vsub.s32 0, %v1054
        %v1056 = vrot.slane %v796, %v1055
        %v1057 = vadd.f32 %v1007, %v1056
        %v1058 = vlaneseq
        %v1059 = vshrl.u32 %v1058, 7
        %v1060 = vsub.s32 1, %v1059
        %v1061 = vrot.slane %v796, %v1060
        %v1062 = vadd.f32 %v1009, %v1061
        %v1063 = vlaneseq
        %v1064 = vshrl.u32 %v1063, 7
        %v1065 = vsub.s32 2, %v1064
        %v1066 = vrot.slane %v796, %v1065
        %v1067 = vadd.f32 %v1048, %v1066
        %v1068 = vld [vmem:[%s776] sm:$0xf]
        %v1069 = vld [vmem:[%s776 + $0x4] sm:$0xf]
        %v1070 = vld [vmem:[%s776 + $0x8] sm:$0xf]
        %v1071 = vld [vmem:[%s776 + $0xc] sm:$0xf]
        %v1072 = vld [vmem:[%s776 + $0x10] sm:$0xf]
        %v1073 = vld [vmem:[%s776 + $0x14] sm:$0xf]
        %v1074 = vld [vmem:[%s776 + $0x18] sm:$0xf]
        %v1075 = vld [vmem:[%s776 + $0x1c] sm:$0xf]
        %v1076 = vld [vmem:[%s776 + $0x20] sm:$0xf]
        %v1077 = vld [vmem:[%s776 + $0x24] sm:$0xf]
        %v1078 = vld [vmem:[%s776 + $0x28] sm:$0xf]
        %v1079 = vld [vmem:[%s776 + $0x2c] sm:$0xf]
        %v1080 = vld [vmem:[%s776 + $0x30] sm:$0xf]
        %v1081 = vld [vmem:[%s776 + $0x34] sm:$0xf]
        %v1082 = vld [vmem:[%s776 + $0x38] sm:$0xf]
        %v1083 = vld [vmem:[%s776 + $0x3c] sm:$0xf]
        %v1084 = vpack.c.bf16 %v1057, %v1057
        %v1085 = vpack.c.bf16 %v1062, %v1062
        %v1086 = vpack.c.bf16 %v1067, %v1067
        %vm1087 = vcmask 64512
        %v1089 = vsel %vm1087, %v1084, 0
        %v1092 = vsel %vm1087, %v1085, 0
        %1094 = vmatprep.subr.bf16.mxu0 0
        %1095 = vmatpush1.bf16.xpose.msra.mxu0 %v1092
        %1096 = vmatprep.subr.bf16.mxu0 0
        %1097 = vmatpush1.bf16.xpose.msra.mxu0 0
        %1098 = vmatprep.subr.bf16.mxu0 0
        %1099 = vmatpush1.bf16.xpose.msra.mxu0 0
        %1100 = vmatprep.subr.bf16.mxu0 0
        %1101 = vmatpush1.bf16.xpose.msra.mxu0 0
        %1102 = vmatprep.subr.bf16.mxu0 0
        %1103 = vmatpush1.bf16.xpose.msra.mxu0 0
        %1104 = vmatprep.subr.bf16.mxu0 0
        %1105 = vmatpush1.bf16.xpose.msra.mxu0 0
        %1106 = vmatprep.subr.bf16.mxu0 0
        %1107 = vmatpush1.bf16.xpose.msra.mxu0 0
        %1108 = vmatprep.subr.bf16.mxu0 0
        %1109 = vmatpush1.bf16.xpose.msra.mxu0 0
        %1110 = vmatprep.subr.bf16.mxu0 0
        %1111 = vmatpush1.bf16.xpose.msra.mxu0 0
        %1112 = vmatprep.subr.bf16.mxu0 0
        %1113 = vmatpush1.bf16.xpose.msra.mxu0 0
        %1114 = vmatprep.subr.bf16.mxu0 0
        %1115 = vmatpush1.bf16.xpose.msra.mxu0 0
        %1116 = vmatprep.subr.bf16.mxu0 0
        %1117 = vmatpush1.bf16.xpose.msra.mxu0 0
        %1118 = vmatprep.subr.bf16.mxu0 0
        %1119 = vmatpush1.bf16.xpose.msra.mxu0 0
        %1120 = vmatprep.subr.bf16.mxu0 0
        %1121 = vmatpush1.bf16.xpose.msra.mxu0 0
        %1122 = vmatprep.subr.bf16.mxu0 0
        %1123 = vmatpush1.bf16.xpose.msra.mxu0 0
        %1124 = vmatprep.subr.bf16.mxu0 0
        %1125 = vmatpush1.bf16.xpose.msra.mxu0 0
        %1126 = vmatprep.mubr.bf16.mxu0 0
        %1127 = vmatmul.mubr.bf16.gmra.mrb[0].mxu0 %v1089
        %v1128 = vpop.f32.mrb[0].mxu0
        %v1129 = vadd.f32 0.0, %v1128
        %v1130 = vpop.f32.mrb[0].mxu0
        %v1131 = vpop.f32.mrb[0].mxu0
        %v1132 = vpop.f32.mrb[0].mxu0
        %1133 = vdwg.mxu0
        %v1134 = vmul.f32 %v1129, 0.35355338
        %v1135 = vsel %vm810, %v1134, -1e+09
        %v1136 = vsel %vm1087, %v1135, -inf
        %1137 = vmax.xlane.f32.xlu0 %v1136
        %v1138 = vpop.xlane.xlu0 %1137
        %v1139 = vsub.f32 %v1135, %v1138
        %v1140 = vmul.f32 %v1139, 1.442695
        %v1141 = vpow.pop %v1140
        %v1142 = vsel %vm1087, %v1141, 0.0
        %1143 = vadd.xlane.f32.xlu0 %v1142
        %v1144 = vpop.xlane.xlu0 %1143
        %v1145 = vrcp.pop %v1144
        %v1146 = vmul.f32 %v1141, %v1145
        %v1147 = vpack.c.bf16 %v1146, %v1146
        %v1149 = vsel %vm1087, %v1147, 0
        %vm1151 = vcmask 1043456
        %v1153 = vsel %vm1151, %v1086, 0
        %1155 = vmatprep.subr.bf16.mxu0 0
        %1156 = vmatpush1.bf16.msra.mxu0 %v1153
        %1157 = vmatprep.subr.bf16.mxu0 0
        %1158 = vmatpush1.bf16.msra.mxu0 0
        %1159 = vmatprep.subr.bf16.mxu0 0
        %1160 = vmatpush1.bf16.msra.mxu0 0
        %1161 = vmatprep.subr.bf16.mxu0 0
        %1162 = vmatpush1.bf16.msra.mxu0 0
        %1163 = vmatprep.subr.bf16.mxu0 0
        %1164 = vmatpush1.bf16.msra.mxu0 0
        %1165 = vmatprep.subr.bf16.mxu0 0
        %1166 = vmatpush1.bf16.msra.mxu0 0
        %1167 = vmatprep.subr.bf16.mxu0 0
        %1168 = vmatpush1.bf16.msra.mxu0 0
        %1169 = vmatprep.subr.bf16.mxu0 0
        %1170 = vmatpush1.bf16.msra.mxu0 0
        %1171 = vmatprep.subr.bf16.mxu0 0
        %1172 = vmatpush1.bf16.msra.mxu0 0
        %1173 = vmatprep.subr.bf16.mxu0 0
        %1174 = vmatpush1.bf16.msra.mxu0 0
        %1175 = vmatprep.subr.bf16.mxu0 0
        %1176 = vmatpush1.bf16.msra.mxu0 0
        %1177 = vmatprep.subr.bf16.mxu0 0
        %1178 = vmatpush1.bf16.msra.mxu0 0
        %1179 = vmatprep.subr.bf16.mxu0 0
        %1180 = vmatpush1.bf16.msra.mxu0 0
        %1181 = vmatprep.subr.bf16.mxu0 0
        %1182 = vmatpush1.bf16.msra.mxu0 0
        %1183 = vmatprep.subr.bf16.mxu0 0
        %1184 = vmatpush1.bf16.msra.mxu0 0
        %1185 = vmatprep.subr.bf16.mxu0 0
        %1186 = vmatpush1.bf16.msra.mxu0 0
        %1187 = vmatprep.mubr.bf16.mxu0 0
        %1188 = vmatmul.mubr.bf16.gmra.mrb[0].mxu0 %v1149
        %v1189 = vpop.f32.mrb[0].mxu0
        %v1190 = vadd.f32 0.0, %v1189
        %v1191 = vpop.f32.mrb[0].mxu0
        %v1192 = vpop.f32.mrb[0].mxu0
        %v1193 = vpop.f32.mrb[0].mxu0
        %1194 = vdwg.mxu0
        %1196 = vrot.lane.b32.xlu0 %v1084, 120
        %v1197 = vpop.permute.xlu0 %1196
        %1199 = vrot.lane.b32.xlu0 %v1085, 120
        %v1200 = vpop.permute.xlu0 %1199
        %v1202 = vsel %vm1087, %v1197, 0
        %v1205 = vsel %vm1087, %v1200, 0
        %1207 = vmatprep.subr.bf16.mxu0 0
        %1208 = vmatpush1.bf16.xpose.msra.mxu0 %v1205
        %1209 = vmatprep.subr.bf16.mxu0 0
        %1210 = vmatpush1.bf16.xpose.msra.mxu0 0
        %1211 = vmatprep.subr.bf16.mxu0 0
        %1212 = vmatpush1.bf16.xpose.msra.mxu0 0
        %1213 = vmatprep.subr.bf16.mxu0 0
        %1214 = vmatpush1.bf16.xpose.msra.mxu0 0
        %1215 = vmatprep.subr.bf16.mxu0 0
        %1216 = vmatpush1.bf16.xpose.msra.mxu0 0
        %1217 = vmatprep.subr.bf16.mxu0 0
        %1218 = vmatpush1.bf16.xpose.msra.mxu0 0
        %1219 = vmatprep.subr.bf16.mxu0 0
        %1220 = vmatpush1.bf16.xpose.msra.mxu0 0
        %1221 = vmatprep.subr.bf16.mxu0 0
        %1222 = vmatpush1.bf16.xpose.msra.mxu0 0
        %1223 = vmatprep.subr.bf16.mxu0 0
        %1224 = vmatpush1.bf16.xpose.msra.mxu0 0
        %1225 = vmatprep.subr.bf16.mxu0 0
        %1226 = vmatpush1.bf16.xpose.msra.mxu0 0
        %1227 = vmatprep.subr.bf16.mxu0 0
        %1228 = vmatpush1.bf16.xpose.msra.mxu0 0
        %1229 = vmatprep.subr.bf16.mxu0 0
        %1230 = vmatpush1.bf16.xpose.msra.mxu0 0
        %1231 = vmatprep.subr.bf16.mxu0 0
        %1232 = vmatpush1.bf16.xpose.msra.mxu0 0
        %1233 = vmatprep.subr.bf16.mxu0 0
        %1234 = vmatpush1.bf16.xpose.msra.mxu0 0
        %1235 = vmatprep.subr.bf16.mxu0 0
        %1236 = vmatpush1.bf16.xpose.msra.mxu0 0
        %1237 = vmatprep.subr.bf16.mxu0 0
        %1238 = vmatpush1.bf16.xpose.msra.mxu0 0
        %1239 = vmatprep.mubr.bf16.mxu0 0
        %1240 = vmatmul.mubr.bf16.gmra.mrb[0].mxu0 %v1202
        %v1241 = vpop.f32.mrb[0].mxu0
        %v1242 = vadd.f32 0.0, %v1241
        %v1243 = vpop.f32.mrb[0].mxu0
        %v1244 = vpop.f32.mrb[0].mxu0
        %v1245 = vpop.f32.mrb[0].mxu0
        %1246 = vdwg.mxu0
        %v1247 = vmul.f32 %v1242, 0.35355338
        %v1248 = vsel %vm810, %v1247, -1e+09
        %v1249 = vsel %vm1087, %v1248, -inf
        %1250 = vmax.xlane.f32.xlu0 %v1249
        %v1251 = vpop.xlane.xlu0 %1250
        %v1252 = vsub.f32 %v1248, %v1251
        %v1253 = vmul.f32 %v1252, 1.442695
        %v1254 = vpow.pop %v1253
        %v1255 = vsel %vm1087, %v1254, 0.0
        %1256 = vadd.xlane.f32.xlu0 %v1255
        %v1257 = vpop.xlane.xlu0 %1256
        %v1258 = vrcp.pop %v1257
        %v1259 = vmul.f32 %v1254, %v1258
        %v1260 = vpack.c.bf16 %v1259, %v1259
        %1262 = vrot.lane.b32.xlu0 %v1086, 120
        %v1263 = vpop.permute.xlu0 %1262
        %v1265 = vsel %vm1087, %v1260, 0
        %v1268 = vsel %vm1151, %v1263, 0
        %1270 = vmatprep.subr.bf16.mxu0 0
        %1271 = vmatpush1.bf16.msra.mxu0 %v1268
        %1272 = vmatprep.subr.bf16.mxu0 0
        %1273 = vmatpush1.bf16.msra.mxu0 0
        %1274 = vmatprep.subr.bf16.mxu0 0
        %1275 = vmatpush1.bf16.msra.mxu0 0
        %1276 = vmatprep.subr.bf16.mxu0 0
        %1277 = vmatpush1.bf16.msra.mxu0 0
        %1278 = vmatprep.subr.bf16.mxu0 0
        %1279 = vmatpush1.bf16.msra.mxu0 0
        %1280 = vmatprep.subr.bf16.mxu0 0
        %1281 = vmatpush1.bf16.msra.mxu0 0
        %1282 = vmatprep.subr.bf16.mxu0 0
        %1283 = vmatpush1.bf16.msra.mxu0 0
        %1284 = vmatprep.subr.bf16.mxu0 0
        %1285 = vmatpush1.bf16.msra.mxu0 0
        %1286 = vmatprep.subr.bf16.mxu0 0
        %1287 = vmatpush1.bf16.msra.mxu0 0
        %1288 = vmatprep.subr.bf16.mxu0 0
        %1289 = vmatpush1.bf16.msra.mxu0 0
        %1290 = vmatprep.subr.bf16.mxu0 0
        %1291 = vmatpush1.bf16.msra.mxu0 0
        %1292 = vmatprep.subr.bf16.mxu0 0
        %1293 = vmatpush1.bf16.msra.mxu0 0
        %1294 = vmatprep.subr.bf16.mxu0 0
        %1295 = vmatpush1.bf16.msra.mxu0 0
        %1296 = vmatprep.subr.bf16.mxu0 0
        %1297 = vmatpush1.bf16.msra.mxu0 0
        %1298 = vmatprep.subr.bf16.mxu0 0
        %1299 = vmatpush1.bf16.msra.mxu0 0
        %1300 = vmatprep.subr.bf16.mxu0 0
        %1301 = vmatpush1.bf16.msra.mxu0 0
        %1302 = vmatprep.mubr.bf16.mxu0 0
        %1303 = vmatmul.mubr.bf16.gmra.mrb[0].mxu0 %v1265
        %v1304 = vpop.f32.mrb[0].mxu0
        %v1305 = vadd.f32 0.0, %v1304
        %v1306 = vpop.f32.mrb[0].mxu0
        %v1307 = vpop.f32.mrb[0].mxu0
        %v1308 = vpop.f32.mrb[0].mxu0
        %1309 = vdwg.mxu0
        %1310 = vrot.lane.b32.xlu0 %v1084, 112
        %v1311 = vpop.permute.xlu0 %1310
        %1312 = vrot.lane.b32.xlu0 %v1085, 112
        %v1313 = vpop.permute.xlu0 %1312
        %v1315 = vsel %vm1087, %v1311, 0
        %v1318 = vsel %vm1087, %v1313, 0
        %1320 = vmatprep.subr.bf16.mxu0 0
        %1321 = vmatpush1.bf16.xpose.msra.mxu0 %v1318
        %1322 = vmatprep.subr.bf16.mxu0 0
        %1323 = vmatpush1.bf16.xpose.msra.mxu0 0
        %1324 = vmatprep.subr.bf16.mxu0 0
        %1325 = vmatpush1.bf16.xpose.msra.mxu0 0
        %1326 = vmatprep.subr.bf16.mxu0 0
        %1327 = vmatpush1.bf16.xpose.msra.mxu0 0
        %1328 = vmatprep.subr.bf16.mxu0 0
        %1329 = vmatpush1.bf16.xpose.msra.mxu0 0
        %1330 = vmatprep.subr.bf16.mxu0 0
        %1331 = vmatpush1.bf16.xpose.msra.mxu0 0
        %1332 = vmatprep.subr.bf16.mxu0 0
        %1333 = vmatpush1.bf16.xpose.msra.mxu0 0
        %1334 = vmatprep.subr.bf16.mxu0 0
        %1335 = vmatpush1.bf16.xpose.msra.mxu0 0
        %1336 = vmatprep.subr.bf16.mxu0 0
        %1337 = vmatpush1.bf16.xpose.msra.mxu0 0
        %1338 = vmatprep.subr.bf16.mxu0 0
        %1339 = vmatpush1.bf16.xpose.msra.mxu0 0
        %1340 = vmatprep.subr.bf16.mxu0 0
        %1341 = vmatpush1.bf16.xpose.msra.mxu0 0
        %1342 = vmatprep.subr.bf16.mxu0 0
        %1343 = vmatpush1.bf16.xpose.msra.mxu0 0
        %1344 = vmatprep.subr.bf16.mxu0 0
        %1345 = vmatpush1.bf16.xpose.msra.mxu0 0
        %1346 = vmatprep.subr.bf16.mxu0 0
        %1347 = vmatpush1.bf16.xpose.msra.mxu0 0
        %1348 = vmatprep.subr.bf16.mxu0 0
        %1349 = vmatpush1.bf16.xpose.msra.mxu0 0
        %1350 = vmatprep.subr.bf16.mxu0 0
        %1351 = vmatpush1.bf16.xpose.msra.mxu0 0
        %1352 = vmatprep.mubr.bf16.mxu0 0
        %1353 = vmatmul.mubr.bf16.gmra.mrb[0].mxu0 %v1315
        %v1354 = vpop.f32.mrb[0].mxu0
        %v1355 = vadd.f32 0.0, %v1354
        %v1356 = vpop.f32.mrb[0].mxu0
        %v1357 = vpop.f32.mrb[0].mxu0
        %v1358 = vpop.f32.mrb[0].mxu0
        %1359 = vdwg.mxu0
        %v1360 = vmul.f32 %v1355, 0.35355338
        %v1361 = vsel %vm810, %v1360, -1e+09
        %v1362 = vsel %vm1087, %v1361, -inf
        %1363 = vmax.xlane.f32.xlu0 %v1362
        %v1364 = vpop.xlane.xlu0 %1363
        %v1365 = vsub.f32 %v1361, %v1364
        %v1366 = vmul.f32 %v1365, 1.442695
        %v1367 = vpow.pop %v1366
        %v1368 = vsel %vm1087, %v1367, 0.0
        %1369 = vadd.xlane.f32.xlu0 %v1368
        %v1370 = vpop.xlane.xlu0 %1369
        %v1371 = vrcp.pop %v1370
        %v1372 = vmul.f32 %v1367, %v1371
        %v1373 = vpack.c.bf16 %v1372, %v1372
        %1374 = vrot.lane.b32.xlu0 %v1086, 112
        %v1375 = vpop.permute.xlu0 %1374
        %v1377 = vsel %vm1087, %v1373, 0
        %v1380 = vsel %vm1151, %v1375, 0
        %1382 = vmatprep.subr.bf16.mxu0 0
        %1383 = vmatpush1.bf16.msra.mxu0 %v1380
        %1384 = vmatprep.subr.bf16.mxu0 0
        %1385 = vmatpush1.bf16.msra.mxu0 0
        %1386 = vmatprep.subr.bf16.mxu0 0
        %1387 = vmatpush1.bf16.msra.mxu0 0
        %1388 = vmatprep.subr.bf16.mxu0 0
        %1389 = vmatpush1.bf16.msra.mxu0 0
        %1390 = vmatprep.subr.bf16.mxu0 0
        %1391 = vmatpush1.bf16.msra.mxu0 0
        %1392 = vmatprep.subr.bf16.mxu0 0
        %1393 = vmatpush1.bf16.msra.mxu0 0
        %1394 = vmatprep.subr.bf16.mxu0 0
        %1395 = vmatpush1.bf16.msra.mxu0 0
        %1396 = vmatprep.subr.bf16.mxu0 0
        %1397 = vmatpush1.bf16.msra.mxu0 0
        %1398 = vmatprep.subr.bf16.mxu0 0
        %1399 = vmatpush1.bf16.msra.mxu0 0
        %1400 = vmatprep.subr.bf16.mxu0 0
        %1401 = vmatpush1.bf16.msra.mxu0 0
        %1402 = vmatprep.subr.bf16.mxu0 0
        %1403 = vmatpush1.bf16.msra.mxu0 0
        %1404 = vmatprep.subr.bf16.mxu0 0
        %1405 = vmatpush1.bf16.msra.mxu0 0
        %1406 = vmatprep.subr.bf16.mxu0 0
        %1407 = vmatpush1.bf16.msra.mxu0 0
        %1408 = vmatprep.subr.bf16.mxu0 0
        %1409 = vmatpush1.bf16.msra.mxu0 0
        %1410 = vmatprep.subr.bf16.mxu0 0
        %1411 = vmatpush1.bf16.msra.mxu0 0
        %1412 = vmatprep.subr.bf16.mxu0 0
        %1413 = vmatpush1.bf16.msra.mxu0 0
        %1414 = vmatprep.mubr.bf16.mxu0 0
        %1415 = vmatmul.mubr.bf16.gmra.mrb[0].mxu0 %v1377
        %v1416 = vpop.f32.mrb[0].mxu0
        %v1417 = vadd.f32 0.0, %v1416
        %v1418 = vpop.f32.mrb[0].mxu0
        %v1419 = vpop.f32.mrb[0].mxu0
        %v1420 = vpop.f32.mrb[0].mxu0
        %1421 = vdwg.mxu0
        %1422 = vrot.lane.b32.xlu0 %v1084, 104
        %v1423 = vpop.permute.xlu0 %1422
        %1424 = vrot.lane.b32.xlu0 %v1085, 104
        %v1425 = vpop.permute.xlu0 %1424
        %v1427 = vsel %vm1087, %v1423, 0
        %v1430 = vsel %vm1087, %v1425, 0
        %1432 = vmatprep.subr.bf16.mxu0 0
        %1433 = vmatpush1.bf16.xpose.msra.mxu0 %v1430
        %1434 = vmatprep.subr.bf16.mxu0 0
        %1435 = vmatpush1.bf16.xpose.msra.mxu0 0
        %1436 = vmatprep.subr.bf16.mxu0 0
        %1437 = vmatpush1.bf16.xpose.msra.mxu0 0
        %1438 = vmatprep.subr.bf16.mxu0 0
        %1439 = vmatpush1.bf16.xpose.msra.mxu0 0
        %1440 = vmatprep.subr.bf16.mxu0 0
        %1441 = vmatpush1.bf16.xpose.msra.mxu0 0
        %1442 = vmatprep.subr.bf16.mxu0 0
        %1443 = vmatpush1.bf16.xpose.msra.mxu0 0
        %1444 = vmatprep.subr.bf16.mxu0 0
        %1445 = vmatpush1.bf16.xpose.msra.mxu0 0
        %1446 = vmatprep.subr.bf16.mxu0 0
        %1447 = vmatpush1.bf16.xpose.msra.mxu0 0
        %1448 = vmatprep.subr.bf16.mxu0 0
        %1449 = vmatpush1.bf16.xpose.msra.mxu0 0
        %1450 = vmatprep.subr.bf16.mxu0 0
        %1451 = vmatpush1.bf16.xpose.msra.mxu0 0
        %1452 = vmatprep.subr.bf16.mxu0 0
        %1453 = vmatpush1.bf16.xpose.msra.mxu0 0
        %1454 = vmatprep.subr.bf16.mxu0 0
        %1455 = vmatpush1.bf16.xpose.msra.mxu0 0
        %1456 = vmatprep.subr.bf16.mxu0 0
        %1457 = vmatpush1.bf16.xpose.msra.mxu0 0
        %1458 = vmatprep.subr.bf16.mxu0 0
        %1459 = vmatpush1.bf16.xpose.msra.mxu0 0
        %1460 = vmatprep.subr.bf16.mxu0 0
        %1461 = vmatpush1.bf16.xpose.msra.mxu0 0
        %1462 = vmatprep.subr.bf16.mxu0 0
        %1463 = vmatpush1.bf16.xpose.msra.mxu0 0
        %1464 = vmatprep.mubr.bf16.mxu0 0
        %1465 = vmatmul.mubr.bf16.gmra.mrb[0].mxu0 %v1427
        %v1466 = vpop.f32.mrb[0].mxu0
        %v1467 = vadd.f32 0.0, %v1466
        %v1468 = vpop.f32.mrb[0].mxu0
        %v1469 = vpop.f32.mrb[0].mxu0
        %v1470 = vpop.f32.mrb[0].mxu0
        %1471 = vdwg.mxu0
        %v1472 = vmul.f32 %v1467, 0.35355338
        %v1473 = vsel %vm810, %v1472, -1e+09
        %v1474 = vsel %vm1087, %v1473, -inf
        %1475 = vmax.xlane.f32.xlu0 %v1474
        %v1476 = vpop.xlane.xlu0 %1475
        %v1477 = vsub.f32 %v1473, %v1476
        %v1478 = vmul.f32 %v1477, 1.442695
        %v1479 = vpow.pop %v1478
        %v1480 = vsel %vm1087, %v1479, 0.0
        %1481 = vadd.xlane.f32.xlu0 %v1480
        %v1482 = vpop.xlane.xlu0 %1481
        %v1483 = vrcp.pop %v1482
        %v1484 = vmul.f32 %v1479, %v1483
        %v1485 = vpack.c.bf16 %v1484, %v1484
        %1486 = vrot.lane.b32.xlu0 %v1086, 104
        %v1487 = vpop.permute.xlu0 %1486
        %v1489 = vsel %vm1087, %v1485, 0
        %v1492 = vsel %vm1151, %v1487, 0
        %1494 = vmatprep.subr.bf16.mxu0 0
        %1495 = vmatpush1.bf16.msra.mxu0 %v1492
        %1496 = vmatprep.subr.bf16.mxu0 0
        %1497 = vmatpush1.bf16.msra.mxu0 0
        %1498 = vmatprep.subr.bf16.mxu0 0
        %1499 = vmatpush1.bf16.msra.mxu0 0
        %1500 = vmatprep.subr.bf16.mxu0 0
        %1501 = vmatpush1.bf16.msra.mxu0 0
        %1502 = vmatprep.subr.bf16.mxu0 0
        %1503 = vmatpush1.bf16.msra.mxu0 0
        %1504 = vmatprep.subr.bf16.mxu0 0
        %1505 = vmatpush1.bf16.msra.mxu0 0
        %1506 = vmatprep.subr.bf16.mxu0 0
        %1507 = vmatpush1.bf16.msra.mxu0 0
        %1508 = vmatprep.subr.bf16.mxu0 0
        %1509 = vmatpush1.bf16.msra.mxu0 0
        %1510 = vmatprep.subr.bf16.mxu0 0
        %1511 = vmatpush1.bf16.msra.mxu0 0
        %1512 = vmatprep.subr.bf16.mxu0 0
        %1513 = vmatpush1.bf16.msra.mxu0 0
        %1514 = vmatprep.subr.bf16.mxu0 0
        %1515 = vmatpush1.bf16.msra.mxu0 0
        %1516 = vmatprep.subr.bf16.mxu0 0
        %1517 = vmatpush1.bf16.msra.mxu0 0
        %1518 = vmatprep.subr.bf16.mxu0 0
        %1519 = vmatpush1.bf16.msra.mxu0 0
        %1520 = vmatprep.subr.bf16.mxu0 0
        %1521 = vmatpush1.bf16.msra.mxu0 0
        %1522 = vmatprep.subr.bf16.mxu0 0
        %1523 = vmatpush1.bf16.msra.mxu0 0
        %1524 = vmatprep.subr.bf16.mxu0 0
        %1525 = vmatpush1.bf16.msra.mxu0 0
        %1526 = vmatprep.mubr.bf16.mxu0 0
        %1527 = vmatmul.mubr.bf16.gmra.mrb[0].mxu0 %v1489
        %v1528 = vpop.f32.mrb[0].mxu0
        %v1529 = vadd.f32 0.0, %v1528
        %v1530 = vpop.f32.mrb[0].mxu0
        %v1531 = vpop.f32.mrb[0].mxu0
        %v1532 = vpop.f32.mrb[0].mxu0
        %1533 = vdwg.mxu0
        %1535 = vrot.lane.b32.xlu0 %v1305, 8
        %v1536 = vpop.permute.xlu0 %1535
        %1539 = vrot.lane.b32.xlu0 %v1417, 16
        %v1540 = vpop.permute.xlu0 %1539
        %1543 = vrot.lane.b32.xlu0 %v1529, 24
        %v1544 = vpop.permute.xlu0 %1543
        %v1546 = vsel %vm1087, %v1190, %v1536
        %vm1547 = vcmask 130048
        %v1548 = vsel %vm1547, %v1546, %v1540
        %vm1549 = vcmask 195584
        %v1550 = vsel %vm1549, %v1548, %v1544
        %vm1551 = vcmask 261120
        %v1552 = vsel %vm1551, %v1550, 0.0
        %v1553 = vpack.c.bf16 %v1552, %v1552
        %v1554 = vlaneseq
        %v1555 = vshrl.u32 %v1554, 7
        %v1556 = vsub.s32 3, %v1555
        %v1557 = vrot.slane %v796, %v1556
        %v1574 = vunpack.c.l.b16 %v1068
        %v1575 = vunpack.c.l.b16 %v1069
        %v1576 = vunpack.c.l.b16 %v1070
        %v1577 = vunpack.c.l.b16 %v1071
        %v1578 = vunpack.c.l.b16 %v1072
        %v1579 = vunpack.c.l.b16 %v1073
        %v1580 = vunpack.c.l.b16 %v1074
        %v1581 = vunpack.c.l.b16 %v1075
        %v1582 = vunpack.c.l.b16 %v1076
        %v1583 = vunpack.c.l.b16 %v1077
        %v1584 = vunpack.c.l.b16 %v1078
        %v1585 = vunpack.c.l.b16 %v1079
        %v1586 = vunpack.c.l.b16 %v1080
        %v1587 = vunpack.c.l.b16 %v1081
        %v1588 = vunpack.c.l.b16 %v1082
        %v1589 = vunpack.c.l.b16 %v1083
        %v1590 = vpack.c.b16 %v1575, %v1574
        %v1591 = vpack.c.b16 %v1577, %v1576
        %v1592 = vpack.c.b16 %v1579, %v1578
        %v1593 = vpack.c.b16 %v1581, %v1580
        %v1594 = vpack.c.b16 %v1583, %v1582
        %v1595 = vpack.c.b16 %v1585, %v1584
        %v1596 = vpack.c.b16 %v1587, %v1586
        %v1597 = vpack.c.b16 %v1589, %v1588
        %1606 = vmatprep.subr.bf16.mxu0 0
        %1607 = vmatpush1.bf16.msra.mxu0 %v1590
        %1608 = vmatprep.subr.bf16.mxu0 0
        %1609 = vmatpush1.bf16.msra.mxu0 %v1591
        %1610 = vmatprep.subr.bf16.mxu0 0
        %1611 = vmatpush1.bf16.msra.mxu0 %v1592
        %1612 = vmatprep.subr.bf16.mxu0 0
        %1613 = vmatpush1.bf16.msra.mxu0 %v1593
        %1614 = vmatprep.subr.bf16.mxu0 0
        %1615 = vmatpush1.bf16.msra.mxu0 %v1594
        %1616 = vmatprep.subr.bf16.mxu0 0
        %1617 = vmatpush1.bf16.msra.mxu0 %v1595
        %1618 = vmatprep.subr.bf16.mxu0 0
        %1619 = vmatpush1.bf16.msra.mxu0 %v1596
        %1620 = vmatprep.subr.bf16.mxu0 0
        %1621 = vmatpush1.bf16.msra.mxu0 %v1597
        %1622 = vmatprep.subr.bf16.mxu0 0
        %1623 = vmatpush1.bf16.msra.mxu0 0
        %1624 = vmatprep.subr.bf16.mxu0 0
        %1625 = vmatpush1.bf16.msra.mxu0 0
        %1626 = vmatprep.subr.bf16.mxu0 0
        %1627 = vmatpush1.bf16.msra.mxu0 0
        %1628 = vmatprep.subr.bf16.mxu0 0
        %1629 = vmatpush1.bf16.msra.mxu0 0
        %1630 = vmatprep.subr.bf16.mxu0 0
        %1631 = vmatpush1.bf16.msra.mxu0 0
        %1632 = vmatprep.subr.bf16.mxu0 0
        %1633 = vmatpush1.bf16.msra.mxu0 0
        %1634 = vmatprep.subr.bf16.mxu0 0
        %1635 = vmatpush1.bf16.msra.mxu0 0
        %1636 = vmatprep.subr.bf16.mxu0 0
        %1637 = vmatpush1.bf16.msra.mxu0 0
        %1638 = vmatprep.mubr.bf16.mxu0 0
        %1639 = vmatmul.mubr.bf16.gmra.mrb[0].mxu0 %v1553
        %v1640 = vpop.f32.mrb[0].mxu0
        %v1641 = vadd.f32 %v1557, %v1640
        %v1642 = vpop.f32.mrb[0].mxu0
        %v1643 = vpop.f32.mrb[0].mxu0
        %v1644 = vpop.f32.mrb[0].mxu0
        %1645 = vdwg.mxu0
        %v1646 = vadd.f32 %v794, %v1641
        %vm1647 = vcmp.lt.s32.totalorder %v801, 32
        %v1648 = vsel %vm1647, %v1646, 0.0
        %1649 = vadd.xlane.f32.xlu0 %v1648
        %v1650 = vpop.xlane.xlu0 %1649
        %v1651 = vmul.f32 %v1650, 0.03125
        %v1652 = vsub.f32 %v1646, %v1651
        %v1653 = vsel %vm1647, %v1652, 0.0
        %v1654 = vmul.f32 %v1653, %v1653
        %1655 = vadd.xlane.f32.xlu0 %v1654
        %v1656 = vpop.xlane.xlu0 %1655
        %v1657 = vmul.f32 %v1656, 0.03125
        %v1658 = vadd.f32 %v1657, 1e-05
        %v1659 = vrsqrt.pop %v1658
        %v1660 = vmul.f32 %v1653, %v1659
        %v1661 = vlaneseq
        %v1662 = vshrl.u32 %v1661, 7
        %v1663 = vsub.s32 4, %v1662
        %v1664 = vrot.slane %v796, %v1663
        %v1665 = vmul.f32 %v1660, %v1664
        %v1666 = vlaneseq
        %v1667 = vshrl.u32 %v1666, 7
        %v1668 = vsub.s32 5, %v1667
        %v1669 = vrot.slane %v796, %v1668
        %v1670 = vadd.f32 %v1665, %v1669
        %v1671 = vld [vmem:[%s762] sm:$0x1]
        %vm1672 = vcmp.gt.f32.partialorder %v1671, 0.5
        %v1673 = vpack.c.bf16 %v1670, %v1670
        %v1674 = vld [vmem:[%s781] sm:$0xf]
        %v1675 = vld [vmem:[%s781 + $0x4] sm:$0xf]
        %v1676 = vld [vmem:[%s781 + $0x8] sm:$0xf]
        %v1677 = vld [vmem:[%s781 + $0xc] sm:$0xf]
        %v1678 = vld [vmem:[%s781 + $0x10] sm:$0xf]
        %v1679 = vld [vmem:[%s781 + $0x14] sm:$0xf]
        %v1680 = vld [vmem:[%s781 + $0x18] sm:$0xf]
        %v1681 = vld [vmem:[%s781 + $0x1c] sm:$0xf]
        %v1682 = vld [vmem:[%s781 + $0x20] sm:$0xf]
        %v1683 = vld [vmem:[%s781 + $0x24] sm:$0xf]
        %v1684 = vld [vmem:[%s781 + $0x28] sm:$0xf]
        %v1685 = vld [vmem:[%s781 + $0x2c] sm:$0xf]
        %v1686 = vld [vmem:[%s781 + $0x30] sm:$0xf]
        %v1687 = vld [vmem:[%s781 + $0x34] sm:$0xf]
        %v1688 = vld [vmem:[%s781 + $0x38] sm:$0xf]
        %v1689 = vld [vmem:[%s781 + $0x3c] sm:$0xf]
        %v1690 = vlaneseq
        %v1691 = vshrl.u32 %v1690, 7
        %v1692 = vsub.s32 6, %v1691
        %v1693 = vrot.slane %v796, %v1692
        %v1710 = vunpack.c.l.b16 %v1674
        %v1711 = vunpack.c.l.b16 %v1675
        %v1712 = vunpack.c.l.b16 %v1676
        %v1713 = vunpack.c.l.b16 %v1677
        %v1714 = vunpack.c.l.b16 %v1678
        %v1715 = vunpack.c.l.b16 %v1679
        %v1716 = vunpack.c.l.b16 %v1680
        %v1717 = vunpack.c.l.b16 %v1681
        %v1718 = vunpack.c.l.b16 %v1682
        %v1719 = vunpack.c.l.b16 %v1683
        %v1720 = vunpack.c.l.b16 %v1684
        %v1721 = vunpack.c.l.b16 %v1685
        %v1722 = vunpack.c.l.b16 %v1686
        %v1723 = vunpack.c.l.b16 %v1687
        %v1724 = vunpack.c.l.b16 %v1688
        %v1725 = vunpack.c.l.b16 %v1689
        %v1726 = vpack.c.b16 %v1711, %v1710
        %v1727 = vpack.c.b16 %v1713, %v1712
        %v1728 = vpack.c.b16 %v1715, %v1714
        %v1729 = vpack.c.b16 %v1717, %v1716
        %v1730 = vpack.c.b16 %v1719, %v1718
        %v1731 = vpack.c.b16 %v1721, %v1720
        %v1732 = vpack.c.b16 %v1723, %v1722
        %v1733 = vpack.c.b16 %v1725, %v1724
        %1742 = vmatprep.subr.bf16.mxu0 0
        %1743 = vmatpush1.bf16.msra.mxu0 %v1726
        %1744 = vmatprep.subr.bf16.mxu0 0
        %1745 = vmatpush1.bf16.msra.mxu0 %v1727
        %1746 = vmatprep.subr.bf16.mxu0 0
        %1747 = vmatpush1.bf16.msra.mxu0 %v1728
        %1748 = vmatprep.subr.bf16.mxu0 0
        %1749 = vmatpush1.bf16.msra.mxu0 %v1729
        %1750 = vmatprep.subr.bf16.mxu0 0
        %1751 = vmatpush1.bf16.msra.mxu0 %v1730
        %1752 = vmatprep.subr.bf16.mxu0 0
        %1753 = vmatpush1.bf16.msra.mxu0 %v1731
        %1754 = vmatprep.subr.bf16.mxu0 0
        %1755 = vmatpush1.bf16.msra.mxu0 %v1732
        %1756 = vmatprep.subr.bf16.mxu0 0
        %1757 = vmatpush1.bf16.msra.mxu0 %v1733
        %1758 = vmatprep.subr.bf16.mxu0 0
        %1759 = vmatpush1.bf16.msra.mxu0 0
        %1760 = vmatprep.subr.bf16.mxu0 0
        %1761 = vmatpush1.bf16.msra.mxu0 0
        %1762 = vmatprep.subr.bf16.mxu0 0
        %1763 = vmatpush1.bf16.msra.mxu0 0
        %1764 = vmatprep.subr.bf16.mxu0 0
        %1765 = vmatpush1.bf16.msra.mxu0 0
        %1766 = vmatprep.subr.bf16.mxu0 0
        %1767 = vmatpush1.bf16.msra.mxu0 0
        %1768 = vmatprep.subr.bf16.mxu0 0
        %1769 = vmatpush1.bf16.msra.mxu0 0
        %1770 = vmatprep.subr.bf16.mxu0 0
        %1771 = vmatpush1.bf16.msra.mxu0 0
        %1772 = vmatprep.subr.bf16.mxu0 0
        %1773 = vmatpush1.bf16.msra.mxu0 0
        %1774 = vmatprep.mubr.bf16.mxu0 0
        %1775 = vmatmul.mubr.bf16.gmra.mrb[0].mxu0 %v1673
        %v1776 = vpop.f32.mrb[0].mxu0
        %v1777 = vadd.f32 %v1693, %v1776
        %v1778 = vpop.f32.mrb[0].mxu0
        %v1779 = vpop.f32.mrb[0].mxu0
        %v1780 = vpop.f32.mrb[0].mxu0
        %1781 = vdwg.mxu0
        %v1782 = vpack.c.bf16 %v795, %v795
        %v1783 = vld [vmem:[%s786] sm:$0xff]
        %v1784 = vld [vmem:[%s786 + $0x8] sm:$0xff]
        %v1785 = vld [vmem:[%s786 + $0x10] sm:$0xff]
        %v1786 = vld [vmem:[%s786 + $0x18] sm:$0xff]
        %v1787 = vld [vmem:[%s786 + $0x20] sm:$0xff]
        %v1788 = vld [vmem:[%s786 + $0x28] sm:$0xff]
        %v1789 = vld [vmem:[%s786 + $0x30] sm:$0xff]
        %v1790 = vld [vmem:[%s786 + $0x38] sm:$0xff]
        %v1791 = vld [vmem:[%s786 + $0x40] sm:$0xff]
        %v1792 = vld [vmem:[%s786 + $0x48] sm:$0xff]
        %v1793 = vld [vmem:[%s786 + $0x50] sm:$0xff]
        %v1794 = vld [vmem:[%s786 + $0x58] sm:$0xff]
        %v1795 = vld [vmem:[%s786 + $0x60] sm:$0xff]
        %v1796 = vld [vmem:[%s786 + $0x68] sm:$0xff]
        %v1797 = vld [vmem:[%s786 + $0x70] sm:$0xff]
        %v1798 = vld [vmem:[%s786 + $0x78] sm:$0xff]
        %v1815 = vunpack.c.l.b16 %v1783
        %v1816 = vunpack.c.h.b16 %v1783
        %v1817 = vunpack.c.l.b16 %v1784
        %v1818 = vunpack.c.h.b16 %v1784
        %v1819 = vunpack.c.l.b16 %v1785
        %v1820 = vunpack.c.h.b16 %v1785
        %v1821 = vunpack.c.l.b16 %v1786
        %v1822 = vunpack.c.h.b16 %v1786
        %v1823 = vunpack.c.l.b16 %v1787
        %v1824 = vunpack.c.h.b16 %v1787
        %v1825 = vunpack.c.l.b16 %v1788
        %v1826 = vunpack.c.h.b16 %v1788
        %v1827 = vunpack.c.l.b16 %v1789
        %v1828 = vunpack.c.h.b16 %v1789
        %v1829 = vunpack.c.l.b16 %v1790
        %v1830 = vunpack.c.h.b16 %v1790
        %v1831 = vunpack.c.l.b16 %v1791
        %v1832 = vunpack.c.h.b16 %v1791
        %v1833 = vunpack.c.l.b16 %v1792
        %v1834 = vunpack.c.h.b16 %v1792
        %v1835 = vunpack.c.l.b16 %v1793
        %v1836 = vunpack.c.h.b16 %v1793
        %v1837 = vunpack.c.l.b16 %v1794
        %v1838 = vunpack.c.h.b16 %v1794
        %v1839 = vunpack.c.l.b16 %v1795
        %v1840 = vunpack.c.h.b16 %v1795
        %v1841 = vunpack.c.l.b16 %v1796
        %v1842 = vunpack.c.h.b16 %v1796
        %v1843 = vunpack.c.l.b16 %v1797
        %v1844 = vunpack.c.h.b16 %v1797
        %v1845 = vunpack.c.l.b16 %v1798
        %v1846 = vunpack.c.h.b16 %v1798
        %v1847 = vpack.c.b16 %v1817, %v1815
        %v1848 = vpack.c.b16 %v1818, %v1816
        %v1849 = vpack.c.b16 %v1821, %v1819
        %v1850 = vpack.c.b16 %v1822, %v1820
        %v1851 = vpack.c.b16 %v1825, %v1823
        %v1852 = vpack.c.b16 %v1826, %v1824
        %v1853 = vpack.c.b16 %v1829, %v1827
        %v1854 = vpack.c.b16 %v1830, %v1828
        %v1855 = vpack.c.b16 %v1833, %v1831
        %v1856 = vpack.c.b16 %v1834, %v1832
        %v1857 = vpack.c.b16 %v1837, %v1835
        %v1858 = vpack.c.b16 %v1838, %v1836
        %v1859 = vpack.c.b16 %v1841, %v1839
        %v1860 = vpack.c.b16 %v1842, %v1840
        %v1861 = vpack.c.b16 %v1845, %v1843
        %v1862 = vpack.c.b16 %v1846, %v1844
        %1879 = vmatprep.subr.bf16.mxu0 %v1848
        %1880 = vmatpush1.bf16.msra.mxu0 %v1847
        %1881 = vmatprep.subr.bf16.mxu0 %v1850
        %1882 = vmatpush1.bf16.msra.mxu0 %v1849
        %1883 = vmatprep.subr.bf16.mxu0 %v1852
        %1884 = vmatpush1.bf16.msra.mxu0 %v1851
        %1885 = vmatprep.subr.bf16.mxu0 %v1854
        %1886 = vmatpush1.bf16.msra.mxu0 %v1853
        %1887 = vmatprep.subr.bf16.mxu0 %v1856
        %1888 = vmatpush1.bf16.msra.mxu0 %v1855
        %1889 = vmatprep.subr.bf16.mxu0 %v1858
        %1890 = vmatpush1.bf16.msra.mxu0 %v1857
        %1891 = vmatprep.subr.bf16.mxu0 %v1860
        %1892 = vmatpush1.bf16.msra.mxu0 %v1859
        %1893 = vmatprep.subr.bf16.mxu0 %v1862
        %1894 = vmatpush1.bf16.msra.mxu0 %v1861
        %1895 = vmatprep.subr.bf16.mxu0 0
        %1896 = vmatpush1.bf16.msra.mxu0 0
        %1897 = vmatprep.subr.bf16.mxu0 0
        %1898 = vmatpush1.bf16.msra.mxu0 0
        %1899 = vmatprep.subr.bf16.mxu0 0
        %1900 = vmatpush1.bf16.msra.mxu0 0
        %1901 = vmatprep.subr.bf16.mxu0 0
        %1902 = vmatpush1.bf16.msra.mxu0 0
        %1903 = vmatprep.subr.bf16.mxu0 0
        %1904 = vmatpush1.bf16.msra.mxu0 0
        %1905 = vmatprep.subr.bf16.mxu0 0
        %1906 = vmatpush1.bf16.msra.mxu0 0
        %1907 = vmatprep.subr.bf16.mxu0 0
        %1908 = vmatpush1.bf16.msra.mxu0 0
        %1909 = vmatprep.subr.bf16.mxu0 0
        %1910 = vmatpush1.bf16.msra.mxu0 0
        %1911 = vmatprep.mubr.bf16.mxu0 0
        %1912 = vmatmul.mubr.bf16.gmra.mrb[0].mxu0 %v1782
        %v1913 = vpop.f32.mrb[0].mxu0
        %v1914 = vadd.f32 0.0, %v1913
        %v1915 = vpop.f32.mrb[0].mxu0
        %v1916 = vadd.f32 0.0, %v1915
        %v1917 = vpop.f32.mrb[0].mxu0
        %v1918 = vpop.f32.mrb[0].mxu0
        %1919 = vdwg.mxu0
        %v1920 = vlaneseq
        %v1921 = vshrl.u32 %v1920, 7
        %v1922 = vsub.s32 7, %v1921
        %v1923 = vrot.slane %v796, %v1922
        %v1924 = vadd.f32 %v1914, %v1923
        %v1925 = vlaneseq
        %v1926 = vshrl.u32 %v1925, 7
        %v1927 = vsub.s32 0, %v1926
        %v1928 = vrot.slane %v797, %v1927
        %v1929 = vadd.f32 %v1916, %v1928
        %v1930 = vld [vmem:[%s622] sm:$0xf]
        %v1931 = vld [vmem:[%s622 + $0x4] sm:$0xf]
        %v1932 = vld [vmem:[%s622 + $0x8] sm:$0xf]
        %v1933 = vld [vmem:[%s622 + $0xc] sm:$0xf]
        %v1934 = vld [vmem:[%s622 + $0x10] sm:$0xf]
        %v1935 = vld [vmem:[%s622 + $0x14] sm:$0xf]
        %v1936 = vld [vmem:[%s622 + $0x18] sm:$0xf]
        %v1937 = vld [vmem:[%s622 + $0x1c] sm:$0xf]
        %v1938 = vld [vmem:[%s622 + $0x20] sm:$0xf]
        %v1939 = vld [vmem:[%s622 + $0x24] sm:$0xf]
        %v1940 = vld [vmem:[%s622 + $0x28] sm:$0xf]
        %v1941 = vld [vmem:[%s622 + $0x2c] sm:$0xf]
        %v1942 = vld [vmem:[%s622 + $0x30] sm:$0xf]
        %v1943 = vld [vmem:[%s622 + $0x34] sm:$0xf]
        %v1944 = vld [vmem:[%s622 + $0x38] sm:$0xf]
        %v1945 = vld [vmem:[%s622 + $0x3c] sm:$0xf]
        %v1946 = vpack.c.bf16 %v1777, %v1777
        %v1947 = vpack.c.bf16 %v1924, %v1924
        %v1948 = vpack.c.bf16 %v1929, %v1929
        %v1950 = vsel %vm1087, %v1946, 0
        %v1953 = vsel %vm1087, %v1947, 0
        %1955 = vmatprep.subr.bf16.mxu0 0
        %1956 = vmatpush1.bf16.xpose.msra.mxu0 %v1953
        %1957 = vmatprep.subr.bf16.mxu0 0
        %1958 = vmatpush1.bf16.xpose.msra.mxu0 0
        %1959 = vmatprep.subr.bf16.mxu0 0
        %1960 = vmatpush1.bf16.xpose.msra.mxu0 0
        %1961 = vmatprep.subr.bf16.mxu0 0
        %1962 = vmatpush1.bf16.xpose.msra.mxu0 0
        %1963 = vmatprep.subr.bf16.mxu0 0
        %1964 = vmatpush1.bf16.xpose.msra.mxu0 0
        %1965 = vmatprep.subr.bf16.mxu0 0
        %1966 = vmatpush1.bf16.xpose.msra.mxu0 0
        %1967 = vmatprep.subr.bf16.mxu0 0
        %1968 = vmatpush1.bf16.xpose.msra.mxu0 0
        %1969 = vmatprep.subr.bf16.mxu0 0
        %1970 = vmatpush1.bf16.xpose.msra.mxu0 0
        %1971 = vmatprep.subr.bf16.mxu0 0
        %1972 = vmatpush1.bf16.xpose.msra.mxu0 0
        %1973 = vmatprep.subr.bf16.mxu0 0
        %1974 = vmatpush1.bf16.xpose.msra.mxu0 0
        %1975 = vmatprep.subr.bf16.mxu0 0
        %1976 = vmatpush1.bf16.xpose.msra.mxu0 0
        %1977 = vmatprep.subr.bf16.mxu0 0
        %1978 = vmatpush1.bf16.xpose.msra.mxu0 0
        %1979 = vmatprep.subr.bf16.mxu0 0
        %1980 = vmatpush1.bf16.xpose.msra.mxu0 0
        %1981 = vmatprep.subr.bf16.mxu0 0
        %1982 = vmatpush1.bf16.xpose.msra.mxu0 0
        %1983 = vmatprep.subr.bf16.mxu0 0
        %1984 = vmatpush1.bf16.xpose.msra.mxu0 0
        %1985 = vmatprep.subr.bf16.mxu0 0
        %1986 = vmatpush1.bf16.xpose.msra.mxu0 0
        %1987 = vmatprep.mubr.bf16.mxu0 0
        %1988 = vmatmul.mubr.bf16.gmra.mrb[0].mxu0 %v1950
        %v1989 = vpop.f32.mrb[0].mxu0
        %v1990 = vadd.f32 0.0, %v1989
        %v1991 = vpop.f32.mrb[0].mxu0
        %v1992 = vpop.f32.mrb[0].mxu0
        %v1993 = vpop.f32.mrb[0].mxu0
        %1994 = vdwg.mxu0
        %v1995 = vmul.f32 %v1990, 0.35355338
        %v1996 = vsel %vm1672, 1, 0
        %v1997 = vlaneseq
        %v1998 = vshrl.u32 %v1997, 7
        %v1999 = vsub.s32 0, %v1998
        %v2000 = vrot.slane %v1996, %v1999
        %vm2001 = vcmp.eq.s32.totalorder %v2000, 1
        %v2002 = vsel %vm2001, %v1995, -1e+09
        %v2003 = vsel %vm1087, %v2002, -inf
        %2004 = vmax.xlane.f32.xlu0 %v2003
        %v2005 = vpop.xlane.xlu0 %2004
        %v2006 = vsub.f32 %v2002, %v2005
        %v2007 = vmul.f32 %v2006, 1.442695
        %v2008 = vpow.pop %v2007
        %v2009 = vsel %vm1087, %v2008, 0.0
        %2010 = vadd.xlane.f32.xlu0 %v2009
        %v2011 = vpop.xlane.xlu0 %2010
        %v2012 = vrcp.pop %v2011
        %v2013 = vmul.f32 %v2008, %v2012
        %v2014 = vpack.c.bf16 %v2013, %v2013
        %v2016 = vsel %vm1087, %v2014, 0
        %v2019 = vsel %vm1151, %v1948, 0
        %2021 = vmatprep.subr.bf16.mxu0 0
        %2022 = vmatpush1.bf16.msra.mxu0 %v2019
        %2023 = vmatprep.subr.bf16.mxu0 0
        %2024 = vmatpush1.bf16.msra.mxu0 0
        %2025 = vmatprep.subr.bf16.mxu0 0
        %2026 = vmatpush1.bf16.msra.mxu0 0
        %2027 = vmatprep.subr.bf16.mxu0 0
        %2028 = vmatpush1.bf16.msra.mxu0 0
        %2029 = vmatprep.subr.bf16.mxu0 0
        %2030 = vmatpush1.bf16.msra.mxu0 0
        %2031 = vmatprep.subr.bf16.mxu0 0
        %2032 = vmatpush1.bf16.msra.mxu0 0
        %2033 = vmatprep.subr.bf16.mxu0 0
        %2034 = vmatpush1.bf16.msra.mxu0 0
        %2035 = vmatprep.subr.bf16.mxu0 0
        %2036 = vmatpush1.bf16.msra.mxu0 0
        %2037 = vmatprep.subr.bf16.mxu0 0
        %2038 = vmatpush1.bf16.msra.mxu0 0
        %2039 = vmatprep.subr.bf16.mxu0 0
        %2040 = vmatpush1.bf16.msra.mxu0 0
        %2041 = vmatprep.subr.bf16.mxu0 0
        %2042 = vmatpush1.bf16.msra.mxu0 0
        %2043 = vmatprep.subr.bf16.mxu0 0
        %2044 = vmatpush1.bf16.msra.mxu0 0
        %2045 = vmatprep.subr.bf16.mxu0 0
        %2046 = vmatpush1.bf16.msra.mxu0 0
        %2047 = vmatprep.subr.bf16.mxu0 0
        %2048 = vmatpush1.bf16.msra.mxu0 0
        %2049 = vmatprep.subr.bf16.mxu0 0
        %2050 = vmatpush1.bf16.msra.mxu0 0
        %2051 = vmatprep.subr.bf16.mxu0 0
        %2052 = vmatpush1.bf16.msra.mxu0 0
        %2053 = vmatprep.mubr.bf16.mxu0 0
        %2054 = vmatmul.mubr.bf16.gmra.mrb[0].mxu0 %v2016
        %v2055 = vpop.f32.mrb[0].mxu0
        %v2056 = vadd.f32 0.0, %v2055
        %v2057 = vpop.f32.mrb[0].mxu0
        %v2058 = vpop.f32.mrb[0].mxu0
        %v2059 = vpop.f32.mrb[0].mxu0
        %2060 = vdwg.mxu0
        %2062 = vrot.lane.b32.xlu0 %v1946, 120
        %v2063 = vpop.permute.xlu0 %2062
        %2065 = vrot.lane.b32.xlu0 %v1947, 120
        %v2066 = vpop.permute.xlu0 %2065
        %v2068 = vsel %vm1087, %v2063, 0
        %v2071 = vsel %vm1087, %v2066, 0
        %2073 = vmatprep.subr.bf16.mxu0 0
        %2074 = vmatpush1.bf16.xpose.msra.mxu0 %v2071
        %2075 = vmatprep.subr.bf16.mxu0 0
        %2076 = vmatpush1.bf16.xpose.msra.mxu0 0
        %2077 = vmatprep.subr.bf16.mxu0 0
        %2078 = vmatpush1.bf16.xpose.msra.mxu0 0
        %2079 = vmatprep.subr.bf16.mxu0 0
        %2080 = vmatpush1.bf16.xpose.msra.mxu0 0
        %2081 = vmatprep.subr.bf16.mxu0 0
        %2082 = vmatpush1.bf16.xpose.msra.mxu0 0
        %2083 = vmatprep.subr.bf16.mxu0 0
        %2084 = vmatpush1.bf16.xpose.msra.mxu0 0
        %2085 = vmatprep.subr.bf16.mxu0 0
        %2086 = vmatpush1.bf16.xpose.msra.mxu0 0
        %2087 = vmatprep.subr.bf16.mxu0 0
        %2088 = vmatpush1.bf16.xpose.msra.mxu0 0
        %2089 = vmatprep.subr.bf16.mxu0 0
        %2090 = vmatpush1.bf16.xpose.msra.mxu0 0
        %2091 = vmatprep.subr.bf16.mxu0 0
        %2092 = vmatpush1.bf16.xpose.msra.mxu0 0
        %2093 = vmatprep.subr.bf16.mxu0 0
        %2094 = vmatpush1.bf16.xpose.msra.mxu0 0
        %2095 = vmatprep.subr.bf16.mxu0 0
        %2096 = vmatpush1.bf16.xpose.msra.mxu0 0
        %2097 = vmatprep.subr.bf16.mxu0 0
        %2098 = vmatpush1.bf16.xpose.msra.mxu0 0
        %2099 = vmatprep.subr.bf16.mxu0 0
        %2100 = vmatpush1.bf16.xpose.msra.mxu0 0
        %2101 = vmatprep.subr.bf16.mxu0 0
        %2102 = vmatpush1.bf16.xpose.msra.mxu0 0
        %2103 = vmatprep.subr.bf16.mxu0 0
        %2104 = vmatpush1.bf16.xpose.msra.mxu0 0
        %2105 = vmatprep.mubr.bf16.mxu0 0
        %2106 = vmatmul.mubr.bf16.gmra.mrb[0].mxu0 %v2068
        %v2107 = vpop.f32.mrb[0].mxu0
        %v2108 = vadd.f32 0.0, %v2107
        %v2109 = vpop.f32.mrb[0].mxu0
        %v2110 = vpop.f32.mrb[0].mxu0
        %v2111 = vpop.f32.mrb[0].mxu0
        %2112 = vdwg.mxu0
        %v2113 = vmul.f32 %v2108, 0.35355338
        %v2114 = vsel %vm2001, %v2113, -1e+09
        %v2115 = vsel %vm1087, %v2114, -inf
        %2116 = vmax.xlane.f32.xlu0 %v2115
        %v2117 = vpop.xlane.xlu0 %2116
        %v2118 = vsub.f32 %v2114, %v2117
        %v2119 = vmul.f32 %v2118, 1.442695
        %v2120 = vpow.pop %v2119
        %v2121 = vsel %vm1087, %v2120, 0.0
        %2122 = vadd.xlane.f32.xlu0 %v2121
        %v2123 = vpop.xlane.xlu0 %2122
        %v2124 = vrcp.pop %v2123
        %v2125 = vmul.f32 %v2120, %v2124
        %v2126 = vpack.c.bf16 %v2125, %v2125
        %2128 = vrot.lane.b32.xlu0 %v1948, 120
        %v2129 = vpop.permute.xlu0 %2128
        %v2131 = vsel %vm1087, %v2126, 0
        %v2134 = vsel %vm1151, %v2129, 0
        %2136 = vmatprep.subr.bf16.mxu0 0
        %2137 = vmatpush1.bf16.msra.mxu0 %v2134
        %2138 = vmatprep.subr.bf16.mxu0 0
        %2139 = vmatpush1.bf16.msra.mxu0 0
        %2140 = vmatprep.subr.bf16.mxu0 0
        %2141 = vmatpush1.bf16.msra.mxu0 0
        %2142 = vmatprep.subr.bf16.mxu0 0
        %2143 = vmatpush1.bf16.msra.mxu0 0
        %2144 = vmatprep.subr.bf16.mxu0 0
        %2145 = vmatpush1.bf16.msra.mxu0 0
        %2146 = vmatprep.subr.bf16.mxu0 0
        %2147 = vmatpush1.bf16.msra.mxu0 0
        %2148 = vmatprep.subr.bf16.mxu0 0
        %2149 = vmatpush1.bf16.msra.mxu0 0
        %2150 = vmatprep.subr.bf16.mxu0 0
        %2151 = vmatpush1.bf16.msra.mxu0 0
        %2152 = vmatprep.subr.bf16.mxu0 0
        %2153 = vmatpush1.bf16.msra.mxu0 0
        %2154 = vmatprep.subr.bf16.mxu0 0
        %2155 = vmatpush1.bf16.msra.mxu0 0
        %2156 = vmatprep.subr.bf16.mxu0 0
        %2157 = vmatpush1.bf16.msra.mxu0 0
        %2158 = vmatprep.subr.bf16.mxu0 0
        %2159 = vmatpush1.bf16.msra.mxu0 0
        %2160 = vmatprep.subr.bf16.mxu0 0
        %2161 = vmatpush1.bf16.msra.mxu0 0
        %2162 = vmatprep.subr.bf16.mxu0 0
        %2163 = vmatpush1.bf16.msra.mxu0 0
        %2164 = vmatprep.subr.bf16.mxu0 0
        %2165 = vmatpush1.bf16.msra.mxu0 0
        %2166 = vmatprep.subr.bf16.mxu0 0
        %2167 = vmatpush1.bf16.msra.mxu0 0
        %2168 = vmatprep.mubr.bf16.mxu0 0
        %2169 = vmatmul.mubr.bf16.gmra.mrb[0].mxu0 %v2131
        %v2170 = vpop.f32.mrb[0].mxu0
        %v2171 = vadd.f32 0.0, %v2170
        %v2172 = vpop.f32.mrb[0].mxu0
        %v2173 = vpop.f32.mrb[0].mxu0
        %v2174 = vpop.f32.mrb[0].mxu0
        %2175 = vdwg.mxu0
        %2176 = vrot.lane.b32.xlu0 %v1946, 112
        %v2177 = vpop.permute.xlu0 %2176
        %2178 = vrot.lane.b32.xlu0 %v1947, 112
        %v2179 = vpop.permute.xlu0 %2178
        %v2181 = vsel %vm1087, %v2177, 0
        %v2184 = vsel %vm1087, %v2179, 0
        %2186 = vmatprep.subr.bf16.mxu0 0
        %2187 = vmatpush1.bf16.xpose.msra.mxu0 %v2184
        %2188 = vmatprep.subr.bf16.mxu0 0
        %2189 = vmatpush1.bf16.xpose.msra.mxu0 0
        %2190 = vmatprep.subr.bf16.mxu0 0
        %2191 = vmatpush1.bf16.xpose.msra.mxu0 0
        %2192 = vmatprep.subr.bf16.mxu0 0
        %2193 = vmatpush1.bf16.xpose.msra.mxu0 0
        %2194 = vmatprep.subr.bf16.mxu0 0
        %2195 = vmatpush1.bf16.xpose.msra.mxu0 0
        %2196 = vmatprep.subr.bf16.mxu0 0
        %2197 = vmatpush1.bf16.xpose.msra.mxu0 0
        %2198 = vmatprep.subr.bf16.mxu0 0
        %2199 = vmatpush1.bf16.xpose.msra.mxu0 0
        %2200 = vmatprep.subr.bf16.mxu0 0
        %2201 = vmatpush1.bf16.xpose.msra.mxu0 0
        %2202 = vmatprep.subr.bf16.mxu0 0
        %2203 = vmatpush1.bf16.xpose.msra.mxu0 0
        %2204 = vmatprep.subr.bf16.mxu0 0
        %2205 = vmatpush1.bf16.xpose.msra.mxu0 0
        %2206 = vmatprep.subr.bf16.mxu0 0
        %2207 = vmatpush1.bf16.xpose.msra.mxu0 0
        %2208 = vmatprep.subr.bf16.mxu0 0
        %2209 = vmatpush1.bf16.xpose.msra.mxu0 0
        %2210 = vmatprep.subr.bf16.mxu0 0
        %2211 = vmatpush1.bf16.xpose.msra.mxu0 0
        %2212 = vmatprep.subr.bf16.mxu0 0
        %2213 = vmatpush1.bf16.xpose.msra.mxu0 0
        %2214 = vmatprep.subr.bf16.mxu0 0
        %2215 = vmatpush1.bf16.xpose.msra.mxu0 0
        %2216 = vmatprep.subr.bf16.mxu0 0
        %2217 = vmatpush1.bf16.xpose.msra.mxu0 0
        %2218 = vmatprep.mubr.bf16.mxu0 0
        %2219 = vmatmul.mubr.bf16.gmra.mrb[0].mxu0 %v2181
        %v2220 = vpop.f32.mrb[0].mxu0
        %v2221 = vadd.f32 0.0, %v2220
        %v2222 = vpop.f32.mrb[0].mxu0
        %v2223 = vpop.f32.mrb[0].mxu0
        %v2224 = vpop.f32.mrb[0].mxu0
        %2225 = vdwg.mxu0
        %v2226 = vmul.f32 %v2221, 0.35355338
        %v2227 = vsel %vm2001, %v2226, -1e+09
        %v2228 = vsel %vm1087, %v2227, -inf
        %2229 = vmax.xlane.f32.xlu0 %v2228
        %v2230 = vpop.xlane.xlu0 %2229
        %v2231 = vsub.f32 %v2227, %v2230
        %v2232 = vmul.f32 %v2231, 1.442695
        %v2233 = vpow.pop %v2232
        %v2234 = vsel %vm1087, %v2233, 0.0
        %2235 = vadd.xlane.f32.xlu0 %v2234
        %v2236 = vpop.xlane.xlu0 %2235
        %v2237 = vrcp.pop %v2236
        %v2238 = vmul.f32 %v2233, %v2237
        %v2239 = vpack.c.bf16 %v2238, %v2238
        %2240 = vrot.lane.b32.xlu0 %v1948, 112
        %v2241 = vpop.permute.xlu0 %2240
        %v2243 = vsel %vm1087, %v2239, 0
        %v2246 = vsel %vm1151, %v2241, 0
        %2248 = vmatprep.subr.bf16.mxu0 0
        %2249 = vmatpush1.bf16.msra.mxu0 %v2246
        %2250 = vmatprep.subr.bf16.mxu0 0
        %2251 = vmatpush1.bf16.msra.mxu0 0
        %2252 = vmatprep.subr.bf16.mxu0 0
        %2253 = vmatpush1.bf16.msra.mxu0 0
        %2254 = vmatprep.subr.bf16.mxu0 0
        %2255 = vmatpush1.bf16.msra.mxu0 0
        %2256 = vmatprep.subr.bf16.mxu0 0
        %2257 = vmatpush1.bf16.msra.mxu0 0
        %2258 = vmatprep.subr.bf16.mxu0 0
        %2259 = vmatpush1.bf16.msra.mxu0 0
        %2260 = vmatprep.subr.bf16.mxu0 0
        %2261 = vmatpush1.bf16.msra.mxu0 0
        %2262 = vmatprep.subr.bf16.mxu0 0
        %2263 = vmatpush1.bf16.msra.mxu0 0
        %2264 = vmatprep.subr.bf16.mxu0 0
        %2265 = vmatpush1.bf16.msra.mxu0 0
        %2266 = vmatprep.subr.bf16.mxu0 0
        %2267 = vmatpush1.bf16.msra.mxu0 0
        %2268 = vmatprep.subr.bf16.mxu0 0
        %2269 = vmatpush1.bf16.msra.mxu0 0
        %2270 = vmatprep.subr.bf16.mxu0 0
        %2271 = vmatpush1.bf16.msra.mxu0 0
        %2272 = vmatprep.subr.bf16.mxu0 0
        %2273 = vmatpush1.bf16.msra.mxu0 0
        %2274 = vmatprep.subr.bf16.mxu0 0
        %2275 = vmatpush1.bf16.msra.mxu0 0
        %2276 = vmatprep.subr.bf16.mxu0 0
        %2277 = vmatpush1.bf16.msra.mxu0 0
        %2278 = vmatprep.subr.bf16.mxu0 0
        %2279 = vmatpush1.bf16.msra.mxu0 0
        %2280 = vmatprep.mubr.bf16.mxu0 0
        %2281 = vmatmul.mubr.bf16.gmra.mrb[0].mxu0 %v2243
        %v2282 = vpop.f32.mrb[0].mxu0
        %v2283 = vadd.f32 0.0, %v2282
        %v2284 = vpop.f32.mrb[0].mxu0
        %v2285 = vpop.f32.mrb[0].mxu0
        %v2286 = vpop.f32.mrb[0].mxu0
        %2287 = vdwg.mxu0
        %2288 = vrot.lane.b32.xlu0 %v1946, 104
        %v2289 = vpop.permute.xlu0 %2288
        %2290 = vrot.lane.b32.xlu0 %v1947, 104
        %v2291 = vpop.permute.xlu0 %2290
        %v2293 = vsel %vm1087, %v2289, 0
        %v2296 = vsel %vm1087, %v2291, 0
        %2298 = vmatprep.subr.bf16.mxu0 0
        %2299 = vmatpush1.bf16.xpose.msra.mxu0 %v2296
        %2300 = vmatprep.subr.bf16.mxu0 0
        %2301 = vmatpush1.bf16.xpose.msra.mxu0 0
        %2302 = vmatprep.subr.bf16.mxu0 0
        %2303 = vmatpush1.bf16.xpose.msra.mxu0 0
        %2304 = vmatprep.subr.bf16.mxu0 0
        %2305 = vmatpush1.bf16.xpose.msra.mxu0 0
        %2306 = vmatprep.subr.bf16.mxu0 0
        %2307 = vmatpush1.bf16.xpose.msra.mxu0 0
        %2308 = vmatprep.subr.bf16.mxu0 0
        %2309 = vmatpush1.bf16.xpose.msra.mxu0 0
        %2310 = vmatprep.subr.bf16.mxu0 0
        %2311 = vmatpush1.bf16.xpose.msra.mxu0 0
        %2312 = vmatprep.subr.bf16.mxu0 0
        %2313 = vmatpush1.bf16.xpose.msra.mxu0 0
        %2314 = vmatprep.subr.bf16.mxu0 0
        %2315 = vmatpush1.bf16.xpose.msra.mxu0 0
        %2316 = vmatprep.subr.bf16.mxu0 0
        %2317 = vmatpush1.bf16.xpose.msra.mxu0 0
        %2318 = vmatprep.subr.bf16.mxu0 0
        %2319 = vmatpush1.bf16.xpose.msra.mxu0 0
        %2320 = vmatprep.subr.bf16.mxu0 0
        %2321 = vmatpush1.bf16.xpose.msra.mxu0 0
        %2322 = vmatprep.subr.bf16.mxu0 0
        %2323 = vmatpush1.bf16.xpose.msra.mxu0 0
        %2324 = vmatprep.subr.bf16.mxu0 0
        %2325 = vmatpush1.bf16.xpose.msra.mxu0 0
        %2326 = vmatprep.subr.bf16.mxu0 0
        %2327 = vmatpush1.bf16.xpose.msra.mxu0 0
        %2328 = vmatprep.subr.bf16.mxu0 0
        %2329 = vmatpush1.bf16.xpose.msra.mxu0 0
        %2330 = vmatprep.mubr.bf16.mxu0 0
        %2331 = vmatmul.mubr.bf16.gmra.mrb[0].mxu0 %v2293
        %v2332 = vpop.f32.mrb[0].mxu0
        %v2333 = vadd.f32 0.0, %v2332
        %v2334 = vpop.f32.mrb[0].mxu0
        %v2335 = vpop.f32.mrb[0].mxu0
        %v2336 = vpop.f32.mrb[0].mxu0
        %2337 = vdwg.mxu0
        %v2338 = vmul.f32 %v2333, 0.35355338
        %v2339 = vsel %vm2001, %v2338, -1e+09
        %v2340 = vsel %vm1087, %v2339, -inf
        %2341 = vmax.xlane.f32.xlu0 %v2340
        %v2342 = vpop.xlane.xlu0 %2341
        %v2343 = vsub.f32 %v2339, %v2342
        %v2344 = vmul.f32 %v2343, 1.442695
        %v2345 = vpow.pop %v2344
        %v2346 = vsel %vm1087, %v2345, 0.0
        %2347 = vadd.xlane.f32.xlu0 %v2346
        %v2348 = vpop.xlane.xlu0 %2347
        %v2349 = vrcp.pop %v2348
        %v2350 = vmul.f32 %v2345, %v2349
        %v2351 = vpack.c.bf16 %v2350, %v2350
        %2352 = vrot.lane.b32.xlu0 %v1948, 104
        %v2353 = vpop.permute.xlu0 %2352
        %v2355 = vsel %vm1087, %v2351, 0
        %v2358 = vsel %vm1151, %v2353, 0
        %2360 = vmatprep.subr.bf16.mxu0 0
        %2361 = vmatpush1.bf16.msra.mxu0 %v2358
        %2362 = vmatprep.subr.bf16.mxu0 0
        %2363 = vmatpush1.bf16.msra.mxu0 0
        %2364 = vmatprep.subr.bf16.mxu0 0
        %2365 = vmatpush1.bf16.msra.mxu0 0
        %2366 = vmatprep.subr.bf16.mxu0 0
        %2367 = vmatpush1.bf16.msra.mxu0 0
        %2368 = vmatprep.subr.bf16.mxu0 0
        %2369 = vmatpush1.bf16.msra.mxu0 0
        %2370 = vmatprep.subr.bf16.mxu0 0
        %2371 = vmatpush1.bf16.msra.mxu0 0
        %2372 = vmatprep.subr.bf16.mxu0 0
        %2373 = vmatpush1.bf16.msra.mxu0 0
        %2374 = vmatprep.subr.bf16.mxu0 0
        %2375 = vmatpush1.bf16.msra.mxu0 0
        %2376 = vmatprep.subr.bf16.mxu0 0
        %2377 = vmatpush1.bf16.msra.mxu0 0
        %2378 = vmatprep.subr.bf16.mxu0 0
        %2379 = vmatpush1.bf16.msra.mxu0 0
        %2380 = vmatprep.subr.bf16.mxu0 0
        %2381 = vmatpush1.bf16.msra.mxu0 0
        %2382 = vmatprep.subr.bf16.mxu0 0
        %2383 = vmatpush1.bf16.msra.mxu0 0
        %2384 = vmatprep.subr.bf16.mxu0 0
        %2385 = vmatpush1.bf16.msra.mxu0 0
        %2386 = vmatprep.subr.bf16.mxu0 0
        %2387 = vmatpush1.bf16.msra.mxu0 0
        %2388 = vmatprep.subr.bf16.mxu0 0
        %2389 = vmatpush1.bf16.msra.mxu0 0
        %2390 = vmatprep.subr.bf16.mxu0 0
        %2391 = vmatpush1.bf16.msra.mxu0 0
        %2392 = vmatprep.mubr.bf16.mxu0 0
        %2393 = vmatmul.mubr.bf16.gmra.mrb[0].mxu0 %v2355
        %v2394 = vpop.f32.mrb[0].mxu0
        %v2395 = vadd.f32 0.0, %v2394
        %v2396 = vpop.f32.mrb[0].mxu0
        %v2397 = vpop.f32.mrb[0].mxu0
        %v2398 = vpop.f32.mrb[0].mxu0
        %2399 = vdwg.mxu0
        %2401 = vrot.lane.b32.xlu0 %v2171, 8
        %v2402 = vpop.permute.xlu0 %2401
        %2405 = vrot.lane.b32.xlu0 %v2283, 16
        %v2406 = vpop.permute.xlu0 %2405
        %2409 = vrot.lane.b32.xlu0 %v2395, 24
        %v2410 = vpop.permute.xlu0 %2409
        %v2412 = vsel %vm1087, %v2056, %v2402
        %v2413 = vsel %vm1547, %v2412, %v2406
        %v2414 = vsel %vm1549, %v2413, %v2410
        %v2415 = vsel %vm1551, %v2414, 0.0
        %v2416 = vpack.c.bf16 %v2415, %v2415
        %v2417 = vlaneseq
        %v2418 = vshrl.u32 %v2417, 7
        %v2419 = vsub.s32 1, %v2418
        %v2420 = vrot.slane %v797, %v2419
        %v2437 = vunpack.c.l.b16 %v1930
        %v2438 = vunpack.c.l.b16 %v1931
        %v2439 = vunpack.c.l.b16 %v1932
        %v2440 = vunpack.c.l.b16 %v1933
        %v2441 = vunpack.c.l.b16 %v1934
        %v2442 = vunpack.c.l.b16 %v1935
        %v2443 = vunpack.c.l.b16 %v1936
        %v2444 = vunpack.c.l.b16 %v1937
        %v2445 = vunpack.c.l.b16 %v1938
        %v2446 = vunpack.c.l.b16 %v1939
        %v2447 = vunpack.c.l.b16 %v1940
        %v2448 = vunpack.c.l.b16 %v1941
        %v2449 = vunpack.c.l.b16 %v1942
        %v2450 = vunpack.c.l.b16 %v1943
        %v2451 = vunpack.c.l.b16 %v1944
        %v2452 = vunpack.c.l.b16 %v1945
        %v2453 = vpack.c.b16 %v2438, %v2437
        %v2454 = vpack.c.b16 %v2440, %v2439
        %v2455 = vpack.c.b16 %v2442, %v2441
        %v2456 = vpack.c.b16 %v2444, %v2443
        %v2457 = vpack.c.b16 %v2446, %v2445
        %v2458 = vpack.c.b16 %v2448, %v2447
        %v2459 = vpack.c.b16 %v2450, %v2449
        %v2460 = vpack.c.b16 %v2452, %v2451
        %2469 = vmatprep.subr.bf16.mxu0 0
        %2470 = vmatpush1.bf16.msra.mxu0 %v2453
        %2471 = vmatprep.subr.bf16.mxu0 0
        %2472 = vmatpush1.bf16.msra.mxu0 %v2454
        %2473 = vmatprep.subr.bf16.mxu0 0
        %2474 = vmatpush1.bf16.msra.mxu0 %v2455
        %2475 = vmatprep.subr.bf16.mxu0 0
        %2476 = vmatpush1.bf16.msra.mxu0 %v2456
        %2477 = vmatprep.subr.bf16.mxu0 0
        %2478 = vmatpush1.bf16.msra.mxu0 %v2457
        %2479 = vmatprep.subr.bf16.mxu0 0
        %2480 = vmatpush1.bf16.msra.mxu0 %v2458
        %2481 = vmatprep.subr.bf16.mxu0 0
        %2482 = vmatpush1.bf16.msra.mxu0 %v2459
        %2483 = vmatprep.subr.bf16.mxu0 0
        %2484 = vmatpush1.bf16.msra.mxu0 %v2460
        %2485 = vmatprep.subr.bf16.mxu0 0
        %2486 = vmatpush1.bf16.msra.mxu0 0
        %2487 = vmatprep.subr.bf16.mxu0 0
        %2488 = vmatpush1.bf16.msra.mxu0 0
        %2489 = vmatprep.subr.bf16.mxu0 0
        %2490 = vmatpush1.bf16.msra.mxu0 0
        %2491 = vmatprep.subr.bf16.mxu0 0
        %2492 = vmatpush1.bf16.msra.mxu0 0
        %2493 = vmatprep.subr.bf16.mxu0 0
        %2494 = vmatpush1.bf16.msra.mxu0 0
        %2495 = vmatprep.subr.bf16.mxu0 0
        %2496 = vmatpush1.bf16.msra.mxu0 0
        %2497 = vmatprep.subr.bf16.mxu0 0
        %2498 = vmatpush1.bf16.msra.mxu0 0
        %2499 = vmatprep.subr.bf16.mxu0 0
        %2500 = vmatpush1.bf16.msra.mxu0 0
        %2501 = vmatprep.mubr.bf16.mxu0 0
        %2502 = vmatmul.mubr.bf16.gmra.mrb[0].mxu0 %v2416
        %v2503 = vpop.f32.mrb[0].mxu0
        %v2504 = vadd.f32 %v2420, %v2503
        %v2505 = vpop.f32.mrb[0].mxu0
        %v2506 = vpop.f32.mrb[0].mxu0
        %v2507 = vpop.f32.mrb[0].mxu0
        %2508 = vdwg.mxu0
        %v2509 = vadd.f32 %v1670, %v2504
        %v2510 = vsel %vm1647, %v2509, 0.0
        %2511 = vadd.xlane.f32.xlu0 %v2510
        %v2512 = vpop.xlane.xlu0 %2511
        %v2513 = vmul.f32 %v2512, 0.03125
        %v2514 = vsub.f32 %v2509, %v2513
        %v2515 = vsel %vm1647, %v2514, 0.0
        %v2516 = vmul.f32 %v2515, %v2515
        %2517 = vadd.xlane.f32.xlu0 %v2516
        %v2518 = vpop.xlane.xlu0 %2517
        %v2519 = vmul.f32 %v2518, 0.03125
        %v2520 = vadd.f32 %v2519, 1e-05
        %v2521 = vrsqrt.pop %v2520
        %v2522 = vmul.f32 %v2515, %v2521
        %v2523 = vlaneseq
        %v2524 = vshrl.u32 %v2523, 7
        %v2525 = vsub.s32 2, %v2524
        %v2526 = vrot.slane %v797, %v2525
        %v2527 = vmul.f32 %v2522, %v2526
        %v2528 = vlaneseq
        %v2529 = vshrl.u32 %v2528, 7
        %v2530 = vsub.s32 3, %v2529
        %v2531 = vrot.slane %v797, %v2530
        %v2532 = vadd.f32 %v2527, %v2531
        %v2533 = vpack.c.bf16 %v2532, %v2532
        %v2534 = vld [vmem:[%s631] sm:$0xf]
        %v2535 = vld [vmem:[%s631 + $0x4] sm:$0xf]
        %v2536 = vld [vmem:[%s631 + $0x8] sm:$0xf]
        %v2537 = vld [vmem:[%s631 + $0xc] sm:$0xf]
        %v2538 = vld [vmem:[%s631 + $0x10] sm:$0xf]
        %v2539 = vld [vmem:[%s631 + $0x14] sm:$0xf]
        %v2540 = vld [vmem:[%s631 + $0x18] sm:$0xf]
        %v2541 = vld [vmem:[%s631 + $0x1c] sm:$0xf]
        %v2542 = vld [vmem:[%s631 + $0x20] sm:$0xf]
        %v2543 = vld [vmem:[%s631 + $0x24] sm:$0xf]
        %v2544 = vld [vmem:[%s631 + $0x28] sm:$0xf]
        %v2545 = vld [vmem:[%s631 + $0x2c] sm:$0xf]
        %v2546 = vld [vmem:[%s631 + $0x30] sm:$0xf]
        %v2547 = vld [vmem:[%s631 + $0x34] sm:$0xf]
        %v2548 = vld [vmem:[%s631 + $0x38] sm:$0xf]
        %v2549 = vld [vmem:[%s631 + $0x3c] sm:$0xf]
        %v2550 = vlaneseq
        %v2551 = vshrl.u32 %v2550, 7
        %v2552 = vsub.s32 4, %v2551
        %v2553 = vrot.slane %v797, %v2552
        %v2570 = vunpack.c.l.b16 %v2534
        %v2571 = vunpack.c.l.b16 %v2535
        %v2572 = vunpack.c.l.b16 %v2536
        %v2573 = vunpack.c.l.b16 %v2537
        %v2574 = vunpack.c.l.b16 %v2538
        %v2575 = vunpack.c.l.b16 %v2539
        %v2576 = vunpack.c.l.b16 %v2540
        %v2577 = vunpack.c.l.b16 %v2541
        %v2578 = vunpack.c.l.b16 %v2542
        %v2579 = vunpack.c.l.b16 %v2543
        %v2580 = vunpack.c.l.b16 %v2544
        %v2581 = vunpack.c.l.b16 %v2545
        %v2582 = vunpack.c.l.b16 %v2546
        %v2583 = vunpack.c.l.b16 %v2547
        %v2584 = vunpack.c.l.b16 %v2548
        %v2585 = vunpack.c.l.b16 %v2549
        %v2586 = vpack.c.b16 %v2571, %v2570
        %v2587 = vpack.c.b16 %v2573, %v2572
        %v2588 = vpack.c.b16 %v2575, %v2574
        %v2589 = vpack.c.b16 %v2577, %v2576
        %v2590 = vpack.c.b16 %v2579, %v2578
        %v2591 = vpack.c.b16 %v2581, %v2580
        %v2592 = vpack.c.b16 %v2583, %v2582
        %v2593 = vpack.c.b16 %v2585, %v2584
        %2602 = vmatprep.subr.bf16.mxu0 0
        %2603 = vmatpush1.bf16.msra.mxu0 %v2586
        %2604 = vmatprep.subr.bf16.mxu0 0
        %2605 = vmatpush1.bf16.msra.mxu0 %v2587
        %2606 = vmatprep.subr.bf16.mxu0 0
        %2607 = vmatpush1.bf16.msra.mxu0 %v2588
        %2608 = vmatprep.subr.bf16.mxu0 0
        %2609 = vmatpush1.bf16.msra.mxu0 %v2589
        %2610 = vmatprep.subr.bf16.mxu0 0
        %2611 = vmatpush1.bf16.msra.mxu0 %v2590
        %2612 = vmatprep.subr.bf16.mxu0 0
        %2613 = vmatpush1.bf16.msra.mxu0 %v2591
        %2614 = vmatprep.subr.bf16.mxu0 0
        %2615 = vmatpush1.bf16.msra.mxu0 %v2592
        %2616 = vmatprep.subr.bf16.mxu0 0
        %2617 = vmatpush1.bf16.msra.mxu0 %v2593
        %2618 = vmatprep.subr.bf16.mxu0 0
        %2619 = vmatpush1.bf16.msra.mxu0 0
        %2620 = vmatprep.subr.bf16.mxu0 0
        %2621 = vmatpush1.bf16.msra.mxu0 0
        %2622 = vmatprep.subr.bf16.mxu0 0
        %2623 = vmatpush1.bf16.msra.mxu0 0
        %2624 = vmatprep.subr.bf16.mxu0 0
        %2625 = vmatpush1.bf16.msra.mxu0 0
        %2626 = vmatprep.subr.bf16.mxu0 0
        %2627 = vmatpush1.bf16.msra.mxu0 0
        %2628 = vmatprep.subr.bf16.mxu0 0
        %2629 = vmatpush1.bf16.msra.mxu0 0
        %2630 = vmatprep.subr.bf16.mxu0 0
        %2631 = vmatpush1.bf16.msra.mxu0 0
        %2632 = vmatprep.subr.bf16.mxu0 0
        %2633 = vmatpush1.bf16.msra.mxu0 0
        %2634 = vmatprep.mubr.bf16.mxu0 0
        %2635 = vmatmul.mubr.bf16.gmra.mrb[0].mxu0 %v2533
        %v2636 = vpop.f32.mrb[0].mxu0
        %v2637 = vadd.f32 %v2553, %v2636
        %v2638 = vpop.f32.mrb[0].mxu0
        %v2639 = vpop.f32.mrb[0].mxu0
        %v2640 = vpop.f32.mrb[0].mxu0
        %2641 = vdwg.mxu0
        %v2642 = vmax.f32 %v2637, 0.0
        %v2643 = vpack.c.bf16 %v2642, %v2642
        %v2644 = vld [vmem:[%s640] sm:$0xf]
        %v2645 = vld [vmem:[%s640 + $0x4] sm:$0xf]
        %v2646 = vld [vmem:[%s640 + $0x8] sm:$0xf]
        %v2647 = vld [vmem:[%s640 + $0xc] sm:$0xf]
        %v2648 = vld [vmem:[%s640 + $0x10] sm:$0xf]
        %v2649 = vld [vmem:[%s640 + $0x14] sm:$0xf]
        %v2650 = vld [vmem:[%s640 + $0x18] sm:$0xf]
        %v2651 = vld [vmem:[%s640 + $0x1c] sm:$0xf]
        %v2652 = vld [vmem:[%s640 + $0x20] sm:$0xf]
        %v2653 = vld [vmem:[%s640 + $0x24] sm:$0xf]
        %v2654 = vld [vmem:[%s640 + $0x28] sm:$0xf]
        %v2655 = vld [vmem:[%s640 + $0x2c] sm:$0xf]
        %v2656 = vld [vmem:[%s640 + $0x30] sm:$0xf]
        %v2657 = vld [vmem:[%s640 + $0x34] sm:$0xf]
        %v2658 = vld [vmem:[%s640 + $0x38] sm:$0xf]
        %v2659 = vld [vmem:[%s640 + $0x3c] sm:$0xf]
        %v2660 = vlaneseq
        %v2661 = vshrl.u32 %v2660, 7
        %v2662 = vsub.s32 5, %v2661
        %v2663 = vrot.slane %v797, %v2662
        %v2680 = vunpack.c.l.b16 %v2644
        %v2681 = vunpack.c.l.b16 %v2645
        %v2682 = vunpack.c.l.b16 %v2646
        %v2683 = vunpack.c.l.b16 %v2647
        %v2684 = vunpack.c.l.b16 %v2648
        %v2685 = vunpack.c.l.b16 %v2649
        %v2686 = vunpack.c.l.b16 %v2650
        %v2687 = vunpack.c.l.b16 %v2651
        %v2688 = vunpack.c.l.b16 %v2652
        %v2689 = vunpack.c.l.b16 %v2653
        %v2690 = vunpack.c.l.b16 %v2654
        %v2691 = vunpack.c.l.b16 %v2655
        %v2692 = vunpack.c.l.b16 %v2656
        %v2693 = vunpack.c.l.b16 %v2657
        %v2694 = vunpack.c.l.b16 %v2658
        %v2695 = vunpack.c.l.b16 %v2659
        %v2696 = vpack.c.b16 %v2681, %v2680
        %v2697 = vpack.c.b16 %v2683, %v2682
        %v2698 = vpack.c.b16 %v2685, %v2684
        %v2699 = vpack.c.b16 %v2687, %v2686
        %v2700 = vpack.c.b16 %v2689, %v2688
        %v2701 = vpack.c.b16 %v2691, %v2690
        %v2702 = vpack.c.b16 %v2693, %v2692
        %v2703 = vpack.c.b16 %v2695, %v2694
        %2712 = vmatprep.subr.bf16.mxu0 0
        %2713 = vmatpush1.bf16.msra.mxu0 %v2696
        %2714 = vmatprep.subr.bf16.mxu0 0
        %2715 = vmatpush1.bf16.msra.mxu0 %v2697
        %2716 = vmatprep.subr.bf16.mxu0 0
        %2717 = vmatpush1.bf16.msra.mxu0 %v2698
        %2718 = vmatprep.subr.bf16.mxu0 0
        %2719 = vmatpush1.bf16.msra.mxu0 %v2699
        %2720 = vmatprep.subr.bf16.mxu0 0
        %2721 = vmatpush1.bf16.msra.mxu0 %v2700
        %2722 = vmatprep.subr.bf16.mxu0 0
        %2723 = vmatpush1.bf16.msra.mxu0 %v2701
        %2724 = vmatprep.subr.bf16.mxu0 0
        %2725 = vmatpush1.bf16.msra.mxu0 %v2702
        %2726 = vmatprep.subr.bf16.mxu0 0
        %2727 = vmatpush1.bf16.msra.mxu0 %v2703
        %2728 = vmatprep.subr.bf16.mxu0 0
        %2729 = vmatpush1.bf16.msra.mxu0 0
        %2730 = vmatprep.subr.bf16.mxu0 0
        %2731 = vmatpush1.bf16.msra.mxu0 0
        %2732 = vmatprep.subr.bf16.mxu0 0
        %2733 = vmatpush1.bf16.msra.mxu0 0
        %2734 = vmatprep.subr.bf16.mxu0 0
        %2735 = vmatpush1.bf16.msra.mxu0 0
        %2736 = vmatprep.subr.bf16.mxu0 0
        %2737 = vmatpush1.bf16.msra.mxu0 0
        %2738 = vmatprep.subr.bf16.mxu0 0
        %2739 = vmatpush1.bf16.msra.mxu0 0
        %2740 = vmatprep.subr.bf16.mxu0 0
        %2741 = vmatpush1.bf16.msra.mxu0 0
        %2742 = vmatprep.subr.bf16.mxu0 0
        %2743 = vmatpush1.bf16.msra.mxu0 0
        %2744 = vmatprep.mubr.bf16.mxu0 0
        %2745 = vmatmul.mubr.bf16.gmra.mrb[0].mxu0 %v2643
        %v2746 = vpop.f32.mrb[0].mxu0
        %v2747 = vadd.f32 %v2663, %v2746
        %v2748 = vpop.f32.mrb[0].mxu0
        %v2749 = vpop.f32.mrb[0].mxu0
        %v2750 = vpop.f32.mrb[0].mxu0
        %2751 = vdwg.mxu0
        %v2752 = vadd.f32 %v2532, %v2747
        %v2753 = vsel %vm1647, %v2752, 0.0
        %2754 = vadd.xlane.f32.xlu0 %v2753
        %v2755 = vpop.xlane.xlu0 %2754
        %v2756 = vmul.f32 %v2755, 0.03125
        %v2757 = vsub.f32 %v2752, %v2756
        %v2758 = vsel %vm1647, %v2757, 0.0
        %v2759 = vmul.f32 %v2758, %v2758
        %2760 = vadd.xlane.f32.xlu0 %v2759
        %v2761 = vpop.xlane.xlu0 %2760
        %v2762 = vmul.f32 %v2761, 0.03125
        %v2763 = vadd.f32 %v2762, 1e-05
        %v2764 = vrsqrt.pop %v2763
        %v2765 = vmul.f32 %v2758, %v2764
        %v2766 = vlaneseq
        %v2767 = vshrl.u32 %v2766, 7
        %v2768 = vsub.s32 6, %v2767
        %v2769 = vrot.slane %v797, %v2768
        %v2770 = vmul.f32 %v2765, %v2769
        %v2771 = vlaneseq
        %v2772 = vshrl.u32 %v2771, 7
        %v2773 = vsub.s32 7, %v2772
        %v2774 = vrot.slane %v797, %v2773
        %v2775 = vadd.f32 %v2770, %v2774
        %2776 = vst [vmem:[#allocation2] sm:$0xff] %v2775
        %p2777 = scmp.eq.s32.totalorder %s43, 1
        // Predicated region
        $region105: #{transformer_forward.3} parent=75 // pred_check
          %p2778 = pneg %p2777
        $region106: #{transformer_forward.3} parent=75 // pred_check_branch
          %2780 = sbr.rel (%p2778) target = $region108
        $region107: #{transformer_forward.3} parent=75 // pred_region
          %v2781 = vpack.c.bf16 %v2775, %v2775
          %v2782 = vld [vmem:[#allocation11] sm:$0xf]
          %v2783 = vld [vmem:[#allocation11 + $0x4] sm:$0xf]
          %v2784 = vld [vmem:[#allocation11 + $0x8] sm:$0xf]
          %v2785 = vld [vmem:[#allocation11 + $0xc] sm:$0xf]
          %v2786 = vld [vmem:[#allocation11 + $0x10] sm:$0xf]
          %v2787 = vld [vmem:[#allocation11 + $0x14] sm:$0xf]
          %v2788 = vld [vmem:[#allocation11 + $0x18] sm:$0xf]
          %v2789 = vld [vmem:[#allocation11 + $0x1c] sm:$0xf]
          %v2790 = vld [vmem:[#allocation11 + $0x20] sm:$0xf]
          %v2791 = vld [vmem:[#allocation11 + $0x24] sm:$0xf]
          %v2792 = vld [vmem:[#allocation11 + $0x28] sm:$0xf]
          %v2793 = vld [vmem:[#allocation11 + $0x2c] sm:$0xf]
          %v2794 = vld [vmem:[#allocation11 + $0x30] sm:$0xf]
          %v2795 = vld [vmem:[#allocation11 + $0x34] sm:$0xf]
          %v2796 = vld [vmem:[#allocation11 + $0x38] sm:$0xf]
          %v2797 = vld [vmem:[#allocation11 + $0x3c] sm:$0xf]
          %v2798 = vld [vmem:[#allocation12] sm:$0x1]
          %v2800 = vlaneseq
          %v2801 = vshrl.u32 %v2800, 7
          %v2802 = vsub.s32 0, %v2801
          %v2803 = vrot.slane %v2798, %v2802
          %v2821 = vunpack.c.l.b16 %v2782
          %v2822 = vunpack.c.l.b16 %v2783
          %v2823 = vunpack.c.l.b16 %v2784
          %v2824 = vunpack.c.l.b16 %v2785
          %v2825 = vunpack.c.l.b16 %v2786
          %v2826 = vunpack.c.l.b16 %v2787
          %v2827 = vunpack.c.l.b16 %v2788
          %v2828 = vunpack.c.l.b16 %v2789
          %v2829 = vunpack.c.l.b16 %v2790
          %v2830 = vunpack.c.l.b16 %v2791
          %v2831 = vunpack.c.l.b16 %v2792
          %v2832 = vunpack.c.l.b16 %v2793
          %v2833 = vunpack.c.l.b16 %v2794
          %v2834 = vunpack.c.l.b16 %v2795
          %v2835 = vunpack.c.l.b16 %v2796
          %v2836 = vunpack.c.l.b16 %v2797
          %v2837 = vpack.c.b16 %v2822, %v2821
          %v2838 = vpack.c.b16 %v2824, %v2823
          %v2839 = vpack.c.b16 %v2826, %v2825
          %v2840 = vpack.c.b16 %v2828, %v2827
          %v2841 = vpack.c.b16 %v2830, %v2829
          %v2842 = vpack.c.b16 %v2832, %v2831
          %v2843 = vpack.c.b16 %v2834, %v2833
          %v2844 = vpack.c.b16 %v2836, %v2835
          %2853 = vmatprep.subr.bf16.mxu0 0
          %2854 = vmatpush1.bf16.msra.mxu0 %v2837
          %2855 = vmatprep.subr.bf16.mxu0 0
          %2856 = vmatpush1.bf16.msra.mxu0 %v2838
          %2857 = vmatprep.subr.bf16.mxu0 0
          %2858 = vmatpush1.bf16.msra.mxu0 %v2839
          %2859 = vmatprep.subr.bf16.mxu0 0
          %2860 = vmatpush1.bf16.msra.mxu0 %v2840
          %2861 = vmatprep.subr.bf16.mxu0 0
          %2862 = vmatpush1.bf16.msra.mxu0 %v2841
          %2863 = vmatprep.subr.bf16.mxu0 0
          %2864 = vmatpush1.bf16.msra.mxu0 %v2842
          %2865 = vmatprep.subr.bf16.mxu0 0
          %2866 = vmatpush1.bf16.msra.mxu0 %v2843
          %2867 = vmatprep.subr.bf16.mxu0 0
          %2868 = vmatpush1.bf16.msra.mxu0 %v2844
          %2869 = vmatprep.subr.bf16.mxu0 0
          %2870 = vmatpush1.bf16.msra.mxu0 0
          %2871 = vmatprep.subr.bf16.mxu0 0
          %2872 = vmatpush1.bf16.msra.mxu0 0
          %2873 = vmatprep.subr.bf16.mxu0 0
          %2874 = vmatpush1.bf16.msra.mxu0 0
          %2875 = vmatprep.subr.bf16.mxu0 0
          %2876 = vmatpush1.bf16.msra.mxu0 0
          %2877 = vmatprep.subr.bf16.mxu0 0
          %2878 = vmatpush1.bf16.msra.mxu0 0
          %2879 = vmatprep.subr.bf16.mxu0 0
          %2880 = vmatpush1.bf16.msra.mxu0 0
          %2881 = vmatprep.subr.bf16.mxu0 0
          %2882 = vmatpush1.bf16.msra.mxu0 0
          %2883 = vmatprep.subr.bf16.mxu0 0
          %2884 = vmatpush1.bf16.msra.mxu0 0
          %2885 = vmatprep.mubr.bf16.mxu0 0
          %2886 = vmatmul.mubr.bf16.gmra.mrb[0].mxu0 %v2781
          %v2887 = vpop.f32.mrb[0].mxu0
          %v2888 = vadd.f32 %v2803, %v2887
          %v2889 = vpop.f32.mrb[0].mxu0
          %v2890 = vpop.f32.mrb[0].mxu0
          %v2891 = vpop.f32.mrb[0].mxu0
          %2892 = vdwg.mxu0
          %2893 = vst [vmem:[%s751] sm:$0xff] %v2888
        $region108: #{transformer_forward.3} parent=75 // pred_fallthru
          _
        %s2894 = sand.u32 %s412, 1
        %s2895 = scalar_lea.sflag [#allocation5], %s2894
        %s2896 = sand.u32 %s412, 1
        %s2897 = smul.addr %s2896, 8
        %s2898 = scalar_lea.vmem [#allocation14], %s2897
        // Predicated region
        $region109: #{transformer_forward.3} parent=75 // pred_check
          %p2899 = pneg %p422
        $region110: #{transformer_forward.3} parent=75 // pred_check_branch
          %2901 = sbr.rel (%p2899) target = $region112
        $region111: #{transformer_forward.3} parent=75 // pred_region
          %s2903 = ssub.s32 128, 128
          %2904 = vsyncadd %s2895, %s2903
          %s2905 = smul.addr %s42, 128
          %s2906 = scalar_lea.hbm %s14, %s2905
          %s2908 = sshll.u32 %s2898, 4
          %s2909 = int_to_ptr.vmem [resolvable:$true] %s2908
          %2911 = dma.vmem_to_hbm [thread:$0]  %s2909, 128, %s2906, %s2895
        $region112: #{transformer_forward.3} parent=75 // pred_fallthru
          _
      $region76: #{transformer_forward.3} parent=5 // pred_fallthru
        _
      %p2912 = scmp.le.s32.totalorder 2, %s33
      // Predicated region
      $region113: #{transformer_forward.3} parent=5 // pred_check
        %p2913 = pneg %p2912
      $region114: #{transformer_forward.3} parent=5 // pred_check_branch
        %2915 = sbr.rel (%p2913) target = $region116
      $region115: #{transformer_forward.3} parent=5 // pred_region
        %s2916 = ssub.s32 %s33, 2
        // Predicated region
        $region117: #{transformer_forward.3} parent=115 // pred_check
          %p2917 = pneg %p428
        $region118: #{transformer_forward.3} parent=115 // pred_check_branch
          %2919 = sbr.rel (%p2917) target = $region120
        $region119: #{transformer_forward.3} parent=115 // pred_region
          %s2920 = sand.u32 %s413, 1
          %s2921 = scalar_lea.sflag [#allocation5], %s2920
          %s2922 = sand.u32 %s413, 1
          %s2923 = smul.addr %s2922, 8
          %s2924 = scalar_lea.vmem [#allocation14], %s2923
          %2925 = dma.done %s2921, 128
        $region120: #{transformer_forward.3} parent=115 // pred_fallthru
          _
      $region116: #{transformer_forward.3} parent=5 // pred_fallthru
        _
    $region6: #{transformer_forward.3} parent=1 // loop_footer
      %s37 = sadd.s32 1, %s33
    $region7: #{transformer_forward.3} parent=1 // loop_footer_branch
      %32 = sbr.rel target = $region3
    $region8: #{transformer_forward.3} parent=1 // loop_exit
      _
    %2926 = vsyncpa [#allocation4], 1
    %s2927 = scalar_lea.sflag [#allocation4], 1
    %2928 = vsyncpa %s2927, 1
    %2929 = vsyncpa [#allocation7], 1
    %s2930 = scalar_lea.sflag [#allocation7], 1
    %2931 = vsyncpa %s2930, 1
    %2932 = vsyncpa [#allocation10], 1
    %s2933 = scalar_lea.sflag [#allocation10], 1
    %2934 = vsyncpa %s2933, 1
    %2935 = vsyncpa [#allocation13], 1
    %2936 = vsyncpa [#allocation5], 1
    %s2937 = scalar_lea.sflag [#allocation5], 1
    %2938 = vsyncpa %s2937, 1

</llo_original>
